<compile_context>
chip_gen: v5e
topology: v5e:2x2
jax: 0.10.0
libtpu: 0.0.40
codegen_flags: <defaults>
</compile_context>

<pallas_src>
import jax
import jax.numpy as jnp
from jax.experimental import pallas as pl
from jax.experimental.pallas import tpu as pltpu


def _basic_block_kernel(x_hbm, w1_ref, b1_ref, w2_ref, b2_ref, out_ref,
                        xpad_ref, hpad_ref, dma_sem):
    """One (batch, row-tile) step of the fused BasicBlock.

    x_hbm   : (N, H+4, W+2, Cp)  pre-padded input, left in HBM (pl.ANY)
    w1_ref  : (9, Cp, Cp)        conv1 weights per tap (HWIO), BN1 scale folded in
    b1_ref  : (1, Cp)            BN1 shift (f32)
    w2_ref  : (9, Cp, Cp)        conv2 weights per tap, BN2 scale folded in
    b2_ref  : (1, Cp)            BN2 shift (f32)
    out_ref : (1, TH, W, Cp)     output row tile
    xpad_ref: (TH+4, W+2, Cp)    VMEM scratch: input halo window
    hpad_ref: (TH+2, W+2, Cp)    VMEM scratch: conv1 activation (+ 1-pixel halo for conv2)
    """
    n = pl.program_id(0)
    r = pl.program_id(1)
    TH = out_ref.shape[1]
    W = out_ref.shape[2]
    C = out_ref.shape[3]

    # ---- fetch the (TH+4, W+2, Cp) halo window of the pre-padded input ----
    cp = pltpu.make_async_copy(x_hbm.at[n, pl.ds(r * TH, TH + 4)], xpad_ref, dma_sem)
    cp.start()
    cp.wait()

    def conv3x3(src_ref, rows, w_ref):
        # 9 shifted-view matmuls accumulated in f32 — no im2col slab is materialized.
        acc = jnp.zeros((rows * W, C), jnp.float32)
        for t in range(9):
            dy, dx = divmod(t, 3)
            tap = src_ref[dy:dy + rows, dx:dx + W, :].reshape(rows * W, C)
            acc = acc + jnp.dot(tap, w_ref[t], preferred_element_type=jnp.float32)
        return acc

    # ---- stage 1: conv1 (+ folded BN1) + ReLU over TH+2 rows (1-row halo for conv2) ----
    h = jnp.maximum(conv3x3(xpad_ref, TH + 2, w1_ref) + b1_ref[...], 0.0)
    hpad_ref[:, 1:W + 1, :] = h.reshape(TH + 2, W, C).astype(hpad_ref.dtype)

    # Zero only the halo border strips (conv2's zero padding) — never the whole buffer.
    hpad_ref[:, 0:1, :] = jnp.zeros((TH + 2, 1, C), hpad_ref.dtype)
    hpad_ref[:, W + 1:W + 2, :] = jnp.zeros((TH + 2, 1, C), hpad_ref.dtype)

    @pl.when(r == 0)
    def _():  # h row "-1" lies outside the image -> conv2 must see zeros there
        hpad_ref[0:1, :, :] = jnp.zeros((1, W + 2, C), hpad_ref.dtype)

    @pl.when(r == pl.num_programs(1) - 1)
    def _():  # h row "H" lies outside the image -> conv2 must see zeros there
        hpad_ref[TH + 1:TH + 2, :, :] = jnp.zeros((1, W + 2, C), hpad_ref.dtype)

    # ---- stage 2: conv2 (+ folded BN2) + residual + ReLU over TH rows ----
    y = conv3x3(hpad_ref, TH, w2_ref) + b2_ref[...]
    resid = xpad_ref[2:TH + 2, 1:W + 1, :].reshape(TH * W, C).astype(jnp.float32)
    out_ref[0] = jnp.maximum(y + resid, 0.0).reshape(TH, W, C).astype(out_ref.dtype)


def _largest_divisor_leq(n, cap):
    cap = max(1, min(cap, n))
    for t in range(cap, 0, -1):
        if n % t == 0:
            return t
    return 1


def basic_block_forward(x_nchw, params, eps=1e-5, *, compute_dtype=None, row_tile=32):
    """BasicBlock forward. x_nchw: (N, C, H, W) -> (N, C, H, W)."""
    N, C, H, W = x_nchw.shape
    kh, kw, cin, cout = params["w1"].shape
    assert (kh, kw) == (3, 3) and cin == C and cout == C, (
        "kernel implements the module defaults: inplanes == planes, stride=1, downsample=None")
    # TODO(synk): stride>1 / downsample path not implemented (module defaults have neither).

    dt = jnp.dtype(compute_dtype) if compute_dtype is not None else x_nchw.dtype
    Cp = ((C + 127) // 128) * 128            # pad channels to a lane multiple (128)
    th = _largest_divisor_leq(H, row_tile)   # row-tile height
    R = H // th

    # NCHW -> NHWC; pre-pad spatially (2-row / 1-col halo) and channels to Cp with zeros.
    x = jnp.transpose(x_nchw, (0, 2, 3, 1)).astype(dt)
    x_p = jnp.pad(x, ((0, 0), (2, 2), (1, 1), (0, Cp - C)))

    # Fold BN scale into the conv weights; the shift stays as the f32 epilogue bias.
    s1 = params["bn1_gamma"] / jnp.sqrt(params["bn1_var"] + eps)
    s2 = params["bn2_gamma"] / jnp.sqrt(params["bn2_var"] + eps)
    b1 = jnp.pad(params["bn1_beta"] - params["bn1_mean"] * s1, (0, Cp - C))
    b2 = jnp.pad(params["bn2_beta"] - params["bn2_mean"] * s2, (0, Cp - C))
    b1 = b1.reshape(1, Cp).astype(jnp.float32)
    b2 = b2.reshape(1, Cp).astype(jnp.float32)

    def fold(w, s):   # HWIO (3,3,C,C) * s[Cout] -> (9, Cp, Cp) in the compute dtype
        w = (w * s).astype(dt)
        w = jnp.pad(w, ((0, 0), (0, 0), (0, Cp - C), (0, Cp - C)))
        return w.reshape(9, Cp, Cp)

    w1 = fold(params["w1"], s1)
    w2 = fold(params["w2"], s2)

    out = pl.pallas_call(
        _basic_block_kernel,
        out_shape=jax.ShapeDtypeStruct((N, H, W, Cp), dt),
        grid_spec=pltpu.PrefetchScalarGridSpec(
            num_scalar_prefetch=0,
            grid=(N, R),
            in_specs=[
                pl.BlockSpec(memory_space=pl.ANY),                   # x_p stays in HBM
                pl.BlockSpec((9, Cp, Cp), lambda n, r: (0, 0, 0)),   # weights: VMEM-resident
                pl.BlockSpec((1, Cp), lambda n, r: (0, 0)),
                pl.BlockSpec((9, Cp, Cp), lambda n, r: (0, 0, 0)),
                pl.BlockSpec((1, Cp), lambda n, r: (0, 0)),
            ],
            out_specs=pl.BlockSpec((1, th, W, Cp), lambda n, r: (n, r, 0, 0)),
            scratch_shapes=[
                pltpu.VMEM((th + 4, W + 2, Cp), dt),   # input halo window
                pltpu.VMEM((th + 2, W + 2, Cp), dt),   # conv1 activation (+ halo)
                pltpu.SemaphoreType.DMA,
            ],
        ),
        compiler_params=pltpu.CompilerParams(
            dimension_semantics=("parallel", "parallel"),
            vmem_limit_bytes=64 * 1024 * 1024),
    )(x_p, w1, b1, w2, b2)

    return jnp.transpose(out[..., :C], (0, 3, 1, 2))   # un-pad channels, NHWC -> NCHW


def _reference_forward(x_nchw, params, eps=1e-5):
    """Pure-JAX reference (lax conv) for correctness checking."""
    x = jnp.transpose(x_nchw, (0, 2, 3, 1)).astype(jnp.float32)

    def conv_bn(h, w, g, b, m, v):
        y = jax.lax.conv_general_dilated(
            h, w.astype(jnp.float32), window_strides=(1, 1), padding="SAME",
            dimension_numbers=("NHWC", "HWIO", "NHWC"))
        s = g / jnp.sqrt(v + eps)
        return y * s + (b - m * s)

    h = jnp.maximum(conv_bn(x, params["w1"], params["bn1_gamma"], params["bn1_beta"],
                            params["bn1_mean"], params["bn1_var"]), 0.0)
    h = conv_bn(h, params["w2"], params["bn2_gamma"], params["bn2_beta"],
                params["bn2_mean"], params["bn2_var"])
    h = jnp.maximum(h + x, 0.0)
    return jnp.transpose(h, (0, 3, 1, 2))


def make_params(key, inplanes, planes):
    ks = jax.random.split(key, 10)
    fan1 = 3 * 3 * inplanes
    fan2 = 3 * 3 * planes
    return {
        # conv weights stored in HWIO layout directly
        "w1": jax.random.normal(ks[0], (3, 3, inplanes, planes), jnp.float32) * (2.0 / fan1) ** 0.5,
        "w2": jax.random.normal(ks[1], (3, 3, planes, planes), jnp.float32) * (2.0 / fan2) ** 0.5,
        "bn1_gamma": 1.0 + 0.1 * jax.random.normal(ks[2], (planes,), jnp.float32),
        "bn1_beta": 0.1 * jax.random.normal(ks[3], (planes,), jnp.float32),
        "bn1_mean": 0.05 * jax.random.normal(ks[4], (planes,), jnp.float32),
        "bn1_var": jnp.abs(1.0 + 0.1 * jax.random.normal(ks[5], (planes,), jnp.float32)),
        "bn2_gamma": 1.0 + 0.1 * jax.random.normal(ks[6], (planes,), jnp.float32),
        "bn2_beta": 0.1 * jax.random.normal(ks[7], (planes,), jnp.float32),
        "bn2_mean": 0.05 * jax.random.normal(ks[8], (planes,), jnp.float32),
        "bn2_var": jnp.abs(1.0 + 0.1 * jax.random.normal(ks[9], (planes,), jnp.float32)),
    }


if __name__ == "__main__":
    key = jax.random.PRNGKey(0)
    kx, kp = jax.random.split(key)

    N, C, H, W = 2, 4, 16, 16          # inplanes = planes = 4, stride = 1
    x = jax.random.normal(kx, (N, C, H, W), jnp.float32)
    params = make_params(kp, C, C)

    ref = _reference_forward(x, params)

    # Exact path: f32 operands, tight tolerance.
    f32_fn = jax.jit(lambda a, p: basic_block_forward(a, p, compute_dtype=jnp.float32))
    out_f32 = jax.block_until_ready(f32_fn(x, params))
    assert out_f32.shape == (N, C, H, W)
    assert jnp.allclose(out_f32, ref, atol=2e-4, rtol=2e-4), (
        float(jnp.max(jnp.abs(out_f32 - ref))))

    # Fast MXU path: bf16 operands / weights, f32 accumulation & epilogue (loose tolerance).
    bf16_fn = jax.jit(lambda a, p: basic_block_forward(a, p, compute_dtype=jnp.bfloat16))
    out_bf16 = jax.block_until_ready(bf16_fn(x, params)).astype(jnp.float32)
    assert out_bf16.shape == (N, C, H, W)
    assert jnp.allclose(out_bf16, ref, atol=0.3, rtol=0.1), (
        float(jnp.max(jnp.abs(out_bf16 - ref))))

    print("KERNEL_OK")
</pallas_src>

<mosaic_0001>
module attributes {stable_mosaic.version = 11 : i64} {
  func.func @_basic_block_kernel(%arg0: i32, %arg1: i32, %arg2: memref<2x20x18x128xf32, #tpu.memory_space<any>>, %arg3: memref<9x128x128xf32, #tpu.memory_space<vmem>>, %arg4: memref<1x128xf32, #tpu.memory_space<vmem>>, %arg5: memref<9x128x128xf32, #tpu.memory_space<vmem>>, %arg6: memref<1x128xf32, #tpu.memory_space<vmem>>, %arg7: memref<1x16x16x128xf32, #tpu.memory_space<vmem>>, %arg8: memref<20x18x128xf32, #tpu.memory_space<vmem>>, %arg9: memref<18x18x128xf32, #tpu.memory_space<vmem>>, %arg10: memref<!tpu.dma_semaphore, #tpu.memory_space<semaphore_mem>>) attributes {dimension_semantics = [#tpu.dimension_semantics<parallel>, #tpu.dimension_semantics<parallel>], iteration_bounds = array<i64: 2, 1>, scalar_prefetch = 0 : i64, scratch_operands = 3 : i64, tpu.core_type = #tpu.core_type<tc>, window_params = [{}, {pipeline_mode = #tpu.pipeline_mode<synchronous>, transform_indices = @transform_1, window_bounds = array<i64: 9, 128, 128>}, {pipeline_mode = #tpu.pipeline_mode<synchronous>, transform_indices = @transform_2, window_bounds = array<i64: 1, 128>}, {pipeline_mode = #tpu.pipeline_mode<synchronous>, transform_indices = @transform_3, window_bounds = array<i64: 9, 128, 128>}, {pipeline_mode = #tpu.pipeline_mode<synchronous>, transform_indices = @transform_4, window_bounds = array<i64: 1, 128>}, {transform_indices = @transform_5, window_bounds = array<i64: 1, 16, 16, 128>}]} {
    %c16_i32 = arith.constant 16 : i32
    %0 = arith.muli %arg1, %c16_i32 : i32
    %c0_i32 = arith.constant 0 : i32
    %c0_i32_0 = arith.constant 0 : i32
    %1 = tpu.memref_slice %arg2[%arg0, %0, %c0_i32, %c0_i32_0] : memref<2x20x18x128xf32, #tpu.memory_space<any>> -> memref<1x20x18x128xf32, #tpu.memory_space<any>>
    %2 = tpu.memref_squeeze %1 : memref<1x20x18x128xf32, #tpu.memory_space<any>> -> memref<20x18x128xf32, #tpu.memory_space<any>>
    tpu.enqueue_dma source(%2 : memref<20x18x128xf32, #tpu.memory_space<any>>) target(%arg8 : memref<20x18x128xf32, #tpu.memory_space<vmem>>) target_semaphore(%arg10 : memref<!tpu.dma_semaphore, #tpu.memory_space<semaphore_mem>>)
    %c0_i32_1 = arith.constant 0 : i32
    %c0_i32_2 = arith.constant 0 : i32
    %3 = tpu.memref_slice %arg2[%arg0, %0, %c0_i32_1, %c0_i32_2] : memref<2x20x18x128xf32, #tpu.memory_space<any>> -> memref<1x20x18x128xf32, #tpu.memory_space<any>>
    %4 = tpu.memref_squeeze %3 : memref<1x20x18x128xf32, #tpu.memory_space<any>> -> memref<20x18x128xf32, #tpu.memory_space<any>>
    tpu.wait_dma2 semaphore(%arg10 : memref<!tpu.dma_semaphore, #tpu.memory_space<semaphore_mem>>) src(%4 : memref<20x18x128xf32, #tpu.memory_space<any>>) dst(%arg8 : memref<20x18x128xf32, #tpu.memory_space<vmem>>)
    %cst = arith.constant 0.000000e+00 : f32
    %5 = vector.broadcast %cst : f32 to vector<288x128xf32>
    %c0 = arith.constant 0 : index
    %c0_3 = arith.constant 0 : index
    %c0_4 = arith.constant 0 : index
    %6 = vector.load %arg8[%c0, %c0_3, %c0_4] : memref<20x18x128xf32, #tpu.memory_space<vmem>>, vector<18x16x128xf32>
    %7 = vector.shape_cast %6 : vector<18x16x128xf32> to vector<288x128xf32>
    %c0_5 = arith.constant 0 : index
    %c0_6 = arith.constant 0 : index
    %c0_7 = arith.constant 0 : index
    %8 = vector.load %arg3[%c0_5, %c0_6, %c0_7] : memref<9x128x128xf32, #tpu.memory_space<vmem>>, vector<1x128x128xf32>
    %9 = vector.shape_cast %8 : vector<1x128x128xf32> to vector<128x128xf32>
    %cst_8 = arith.constant dense<0.000000e+00> : vector<288x128xf32>
    %10 = tpu.matmul %7, %9, %cst_8 {dimension_numbers = #tpu.dot_dimension_numbers<[1], [0], [0], [1], [0, 0, 1, 1], [], []>} : vector<288x128xf32>, vector<128x128xf32>, vector<288x128xf32> -> vector<288x128xf32>
    %11 = arith.addf %5, %10 : vector<288x128xf32>
    %c0_9 = arith.constant 0 : index
    %c1 = arith.constant 1 : index
    %c0_10 = arith.constant 0 : index
    %12 = vector.load %arg8[%c0_9, %c1, %c0_10] : memref<20x18x128xf32, #tpu.memory_space<vmem>>, vector<18x16x128xf32>
    %13 = vector.shape_cast %12 : vector<18x16x128xf32> to vector<288x128xf32>
    %c1_11 = arith.constant 1 : index
    %c0_12 = arith.constant 0 : index
    %c0_13 = arith.constant 0 : index
    %14 = vector.load %arg3[%c1_11, %c0_12, %c0_13] : memref<9x128x128xf32, #tpu.memory_space<vmem>>, vector<1x128x128xf32>
    %15 = vector.shape_cast %14 : vector<1x128x128xf32> to vector<128x128xf32>
    %cst_14 = arith.constant dense<0.000000e+00> : vector<288x128xf32>
    %16 = tpu.matmul %13, %15, %cst_14 {dimension_numbers = #tpu.dot_dimension_numbers<[1], [0], [0], [1], [0, 0, 1, 1], [], []>} : vector<288x128xf32>, vector<128x128xf32>, vector<288x128xf32> -> vector<288x128xf32>
    %17 = arith.addf %11, %16 : vector<288x128xf32>
    %c0_15 = arith.constant 0 : index
    %c2 = arith.constant 2 : index
    %c0_16 = arith.constant 0 : index
    %18 = vector.load %arg8[%c0_15, %c2, %c0_16] : memref<20x18x128xf32, #tpu.memory_space<vmem>>, vector<18x16x128xf32>
    %19 = vector.shape_cast %18 : vector<18x16x128xf32> to vector<288x128xf32>
    %c2_17 = arith.constant 2 : index
    %c0_18 = arith.constant 0 : index
    %c0_19 = arith.constant 0 : index
    %20 = vector.load %arg3[%c2_17, %c0_18, %c0_19] : memref<9x128x128xf32, #tpu.memory_space<vmem>>, vector<1x128x128xf32>
    %21 = vector.shape_cast %20 : vector<1x128x128xf32> to vector<128x128xf32>
    %cst_20 = arith.constant dense<0.000000e+00> : vector<288x128xf32>
    %22 = tpu.matmul %19, %21, %cst_20 {dimension_numbers = #tpu.dot_dimension_numbers<[1], [0], [0], [1], [0, 0, 1, 1], [], []>} : vector<288x128xf32>, vector<128x128xf32>, vector<288x128xf32> -> vector<288x128xf32>
    %23 = arith.addf %17, %22 : vector<288x128xf32>
    %c1_21 = arith.constant 1 : index
    %c0_22 = arith.constant 0 : index
    %c0_23 = arith.constant 0 : index
    %24 = vector.load %arg8[%c1_21, %c0_22, %c0_23] : memref<20x18x128xf32, #tpu.memory_space<vmem>>, vector<18x16x128xf32>
    %25 = vector.shape_cast %24 : vector<18x16x128xf32> to vector<288x128xf32>
    %c3 = arith.constant 3 : index
    %c0_24 = arith.constant 0 : index
    %c0_25 = arith.constant 0 : index
    %26 = vector.load %arg3[%c3, %c0_24, %c0_25] : memref<9x128x128xf32, #tpu.memory_space<vmem>>, vector<1x128x128xf32>
    %27 = vector.shape_cast %26 : vector<1x128x128xf32> to vector<128x128xf32>
    %cst_26 = arith.constant dense<0.000000e+00> : vector<288x128xf32>
    %28 = tpu.matmul %25, %27, %cst_26 {dimension_numbers = #tpu.dot_dimension_numbers<[1], [0], [0], [1], [0, 0, 1, 1], [], []>} : vector<288x128xf32>, vector<128x128xf32>, vector<288x128xf32> -> vector<288x128xf32>
    %29 = arith.addf %23, %28 : vector<288x128xf32>
    %c1_27 = arith.constant 1 : index
    %c1_28 = arith.constant 1 : index
    %c0_29 = arith.constant 0 : index
    %30 = vector.load %arg8[%c1_27, %c1_28, %c0_29] : memref<20x18x128xf32, #tpu.memory_space<vmem>>, vector<18x16x128xf32>
    %31 = vector.shape_cast %30 : vector<18x16x128xf32> to vector<288x128xf32>
    %c4 = arith.constant 4 : index
    %c0_30 = arith.constant 0 : index
    %c0_31 = arith.constant 0 : index
    %32 = vector.load %arg3[%c4, %c0_30, %c0_31] : memref<9x128x128xf32, #tpu.memory_space<vmem>>, vector<1x128x128xf32>
    %33 = vector.shape_cast %32 : vector<1x128x128xf32> to vector<128x128xf32>
    %cst_32 = arith.constant dense<0.000000e+00> : vector<288x128xf32>
    %34 = tpu.matmul %31, %33, %cst_32 {dimension_numbers = #tpu.dot_dimension_numbers<[1], [0], [0], [1], [0, 0, 1, 1], [], []>} : vector<288x128xf32>, vector<128x128xf32>, vector<288x128xf32> -> vector<288x128xf32>
    %35 = arith.addf %29, %34 : vector<288x128xf32>
    %c1_33 = arith.constant 1 : index
    %c2_34 = arith.constant 2 : index
    %c0_35 = arith.constant 0 : index
    %36 = vector.load %arg8[%c1_33, %c2_34, %c0_35] : memref<20x18x128xf32, #tpu.memory_space<vmem>>, vector<18x16x128xf32>
    %37 = vector.shape_cast %36 : vector<18x16x128xf32> to vector<288x128xf32>
    %c5 = arith.constant 5 : index
    %c0_36 = arith.constant 0 : index
    %c0_37 = arith.constant 0 : index
    %38 = vector.load %arg3[%c5, %c0_36, %c0_37] : memref<9x128x128xf32, #tpu.memory_space<vmem>>, vector<1x128x128xf32>
    %39 = vector.shape_cast %38 : vector<1x128x128xf32> to vector<128x128xf32>
    %cst_38 = arith.constant dense<0.000000e+00> : vector<288x128xf32>
    %40 = tpu.matmul %37, %39, %cst_38 {dimension_numbers = #tpu.dot_dimension_numbers<[1], [0], [0], [1], [0, 0, 1, 1], [], []>} : vector<288x128xf32>, vector<128x128xf32>, vector<288x128xf32> -> vector<288x128xf32>
    %41 = arith.addf %35, %40 : vector<288x128xf32>
    %c2_39 = arith.constant 2 : index
    %c0_40 = arith.constant 0 : index
    %c0_41 = arith.constant 0 : index
    %42 = vector.load %arg8[%c2_39, %c0_40, %c0_41] : memref<20x18x128xf32, #tpu.memory_space<vmem>>, vector<18x16x128xf32>
    %43 = vector.shape_cast %42 : vector<18x16x128xf32> to vector<288x128xf32>
    %c6 = arith.constant 6 : index
    %c0_42 = arith.constant 0 : index
    %c0_43 = arith.constant 0 : index
    %44 = vector.load %arg3[%c6, %c0_42, %c0_43] : memref<9x128x128xf32, #tpu.memory_space<vmem>>, vector<1x128x128xf32>
    %45 = vector.shape_cast %44 : vector<1x128x128xf32> to vector<128x128xf32>
    %cst_44 = arith.constant dense<0.000000e+00> : vector<288x128xf32>
    %46 = tpu.matmul %43, %45, %cst_44 {dimension_numbers = #tpu.dot_dimension_numbers<[1], [0], [0], [1], [0, 0, 1, 1], [], []>} : vector<288x128xf32>, vector<128x128xf32>, vector<288x128xf32> -> vector<288x128xf32>
    %47 = arith.addf %41, %46 : vector<288x128xf32>
    %c2_45 = arith.constant 2 : index
    %c1_46 = arith.constant 1 : index
    %c0_47 = arith.constant 0 : index
    %48 = vector.load %arg8[%c2_45, %c1_46, %c0_47] : memref<20x18x128xf32, #tpu.memory_space<vmem>>, vector<18x16x128xf32>
    %49 = vector.shape_cast %48 : vector<18x16x128xf32> to vector<288x128xf32>
    %c7 = arith.constant 7 : index
    %c0_48 = arith.constant 0 : index
    %c0_49 = arith.constant 0 : index
    %50 = vector.load %arg3[%c7, %c0_48, %c0_49] : memref<9x128x128xf32, #tpu.memory_space<vmem>>, vector<1x128x128xf32>
    %51 = vector.shape_cast %50 : vector<1x128x128xf32> to vector<128x128xf32>
    %cst_50 = arith.constant dense<0.000000e+00> : vector<288x128xf32>
    %52 = tpu.matmul %49, %51, %cst_50 {dimension_numbers = #tpu.dot_dimension_numbers<[1], [0], [0], [1], [0, 0, 1, 1], [], []>} : vector<288x128xf32>, vector<128x128xf32>, vector<288x128xf32> -> vector<288x128xf32>
    %53 = arith.addf %47, %52 : vector<288x128xf32>
    %c2_51 = arith.constant 2 : index
    %c2_52 = arith.constant 2 : index
    %c0_53 = arith.constant 0 : index
    %54 = vector.load %arg8[%c2_51, %c2_52, %c0_53] : memref<20x18x128xf32, #tpu.memory_space<vmem>>, vector<18x16x128xf32>
    %55 = vector.shape_cast %54 : vector<18x16x128xf32> to vector<288x128xf32>
    %c8 = arith.constant 8 : index
    %c0_54 = arith.constant 0 : index
    %c0_55 = arith.constant 0 : index
    %56 = vector.load %arg3[%c8, %c0_54, %c0_55] : memref<9x128x128xf32, #tpu.memory_space<vmem>>, vector<1x128x128xf32>
    %57 = vector.shape_cast %56 : vector<1x128x128xf32> to vector<128x128xf32>
    %cst_56 = arith.constant dense<0.000000e+00> : vector<288x128xf32>
    %58 = tpu.matmul %55, %57, %cst_56 {dimension_numbers = #tpu.dot_dimension_numbers<[1], [0], [0], [1], [0, 0, 1, 1], [], []>} : vector<288x128xf32>, vector<128x128xf32>, vector<288x128xf32> -> vector<288x128xf32>
    %59 = arith.addf %53, %58 : vector<288x128xf32>
    %c0_57 = arith.constant 0 : index
    %c0_58 = arith.constant 0 : index
    %60 = vector.load %arg4[%c0_57, %c0_58] : memref<1x128xf32, #tpu.memory_space<vmem>>, vector<1x128xf32>
    %61 = vector.broadcast %60 : vector<1x128xf32> to vector<288x128xf32>
    %62 = arith.addf %59, %61 : vector<288x128xf32>
    %cst_59 = arith.constant 0.000000e+00 : f32
    %63 = vector.broadcast %cst_59 : f32 to vector<288x128xf32>
    %64 = arith.maximumf %62, %63 : vector<288x128xf32>
    %65 = vector.shape_cast %64 : vector<288x128xf32> to vector<18x16x128xf32>
    %c0_60 = arith.constant 0 : index
    %c1_61 = arith.constant 1 : index
    %c0_62 = arith.constant 0 : index
    %66 = vector.load %arg9[%c0_60, %c1_61, %c0_62] : memref<18x18x128xf32, #tpu.memory_space<vmem>>, vector<18x16x128xf32>
    tpu.vector_store %arg9[%c0_60, %c1_61, %c0_62], %65 {strides = array<i32>} : memref<18x18x128xf32, #tpu.memory_space<vmem>>, vector<18x16x128xf32>,
    %cst_63 = arith.constant 0.000000e+00 : f32
    %67 = vector.broadcast %cst_63 : f32 to vector<18x1x128xf32>
    %c0_64 = arith.constant 0 : index
    %c0_65 = arith.constant 0 : index
    %c0_66 = arith.constant 0 : index
    %68 = vector.load %arg9[%c0_64, %c0_65, %c0_66] : memref<18x18x128xf32, #tpu.memory_space<vmem>>, vector<18x1x128xf32>
    tpu.vector_store %arg9[%c0_64, %c0_65, %c0_66], %67 {strides = array<i32>} : memref<18x18x128xf32, #tpu.memory_space<vmem>>, vector<18x1x128xf32>,
    %cst_67 = arith.constant 0.000000e+00 : f32
    %69 = vector.broadcast %cst_67 : f32 to vector<18x1x128xf32>
    %c0_68 = arith.constant 0 : index
    %c17 = arith.constant 17 : index
    %c0_69 = arith.constant 0 : index
    %70 = vector.load %arg9[%c0_68, %c17, %c0_69] : memref<18x18x128xf32, #tpu.memory_space<vmem>>, vector<18x1x128xf32>
    tpu.vector_store %arg9[%c0_68, %c17, %c0_69], %69 {strides = array<i32>} : memref<18x18x128xf32, #tpu.memory_space<vmem>>, vector<18x1x128xf32>,
    %c0_i32_70 = arith.constant 0 : i32
    %71 = arith.cmpi eq, %arg1, %c0_i32_70 : i32
    %72 = arith.extui %71 : i1 to i32
    %c0_i32_71 = arith.constant 0 : i32
    %73 = arith.cmpi ne, %72, %c0_i32_71 : i32
    scf.if %73 {
      %cst_148 = arith.constant 0.000000e+00 : f32
      %144 = vector.broadcast %cst_148 : f32 to vector<1x18x128xf32>
      %c0_149 = arith.constant 0 : index
      %c0_150 = arith.constant 0 : index
      %c0_151 = arith.constant 0 : index
      %145 = vector.load %arg9[%c0_149, %c0_150, %c0_151] : memref<18x18x128xf32, #tpu.memory_space<vmem>>, vector<1x18x128xf32>
      tpu.vector_store %arg9[%c0_149, %c0_150, %c0_151], %144 {strides = array<i32>} : memref<18x18x128xf32, #tpu.memory_space<vmem>>, vector<1x18x128xf32>,
    } else {
    }
    %c0_i32_72 = arith.constant 0 : i32
    %74 = arith.cmpi eq, %arg1, %c0_i32_72 : i32
    %75 = arith.extui %74 : i1 to i32
    %c0_i32_73 = arith.constant 0 : i32
    %76 = arith.cmpi ne, %75, %c0_i32_73 : i32
    scf.if %76 {
      %cst_148 = arith.constant 0.000000e+00 : f32
      %144 = vector.broadcast %cst_148 : f32 to vector<1x18x128xf32>
      %c17_149 = arith.constant 17 : index
      %c0_150 = arith.constant 0 : index
      %c0_151 = arith.constant 0 : index
      %145 = vector.load %arg9[%c17_149, %c0_150, %c0_151] : memref<18x18x128xf32, #tpu.memory_space<vmem>>, vector<1x18x128xf32>
      tpu.vector_store %arg9[%c17_149, %c0_150, %c0_151], %144 {strides = array<i32>} : memref<18x18x128xf32, #tpu.memory_space<vmem>>, vector<1x18x128xf32>,
    } else {
    }
    %cst_74 = arith.constant 0.000000e+00 : f32
    %77 = vector.broadcast %cst_74 : f32 to vector<256x128xf32>
    %c0_75 = arith.constant 0 : index
    %c0_76 = arith.constant 0 : index
    %c0_77 = arith.constant 0 : index
    %78 = vector.load %arg9[%c0_75, %c0_76, %c0_77] : memref<18x18x128xf32, #tpu.memory_space<vmem>>, vector<16x16x128xf32>
    %79 = vector.shape_cast %78 : vector<16x16x128xf32> to vector<256x128xf32>
    %c0_78 = arith.constant 0 : index
    %c0_79 = arith.constant 0 : index
    %c0_80 = arith.constant 0 : index
    %80 = vector.load %arg5[%c0_78, %c0_79, %c0_80] : memref<9x128x128xf32, #tpu.memory_space<vmem>>, vector<1x128x128xf32>
    %81 = vector.shape_cast %80 : vector<1x128x128xf32> to vector<128x128xf32>
    %cst_81 = arith.constant dense<0.000000e+00> : vector<256x128xf32>
    %82 = tpu.matmul %79, %81, %cst_81 {dimension_numbers = #tpu.dot_dimension_numbers<[1], [0], [0], [1], [0, 0, 1, 1], [], []>} : vector<256x128xf32>, vector<128x128xf32>, vector<256x128xf32> -> vector<256x128xf32>
    %83 = arith.addf %77, %82 : vector<256x128xf32>
    %c0_82 = arith.constant 0 : index
    %c1_83 = arith.constant 1 : index
    %c0_84 = arith.constant 0 : index
    %84 = vector.load %arg9[%c0_82, %c1_83, %c0_84] : memref<18x18x128xf32, #tpu.memory_space<vmem>>, vector<16x16x128xf32>
    %85 = vector.shape_cast %84 : vector<16x16x128xf32> to vector<256x128xf32>
    %c1_85 = arith.constant 1 : index
    %c0_86 = arith.constant 0 : index
    %c0_87 = arith.constant 0 : index
    %86 = vector.load %arg5[%c1_85, %c0_86, %c0_87] : memref<9x128x128xf32, #tpu.memory_space<vmem>>, vector<1x128x128xf32>
    %87 = vector.shape_cast %86 : vector<1x128x128xf32> to vector<128x128xf32>
    %cst_88 = arith.constant dense<0.000000e+00> : vector<256x128xf32>
    %88 = tpu.matmul %85, %87, %cst_88 {dimension_numbers = #tpu.dot_dimension_numbers<[1], [0], [0], [1], [0, 0, 1, 1], [], []>} : vector<256x128xf32>, vector<128x128xf32>, vector<256x128xf32> -> vector<256x128xf32>
    %89 = arith.addf %83, %88 : vector<256x128xf32>
    %c0_89 = arith.constant 0 : index
    %c2_90 = arith.constant 2 : index
    %c0_91 = arith.constant 0 : index
    %90 = vector.load %arg9[%c0_89, %c2_90, %c0_91] : memref<18x18x128xf32, #tpu.memory_space<vmem>>, vector<16x16x128xf32>
    %91 = vector.shape_cast %90 : vector<16x16x128xf32> to vector<256x128xf32>
    %c2_92 = arith.constant 2 : index
    %c0_93 = arith.constant 0 : index
    %c0_94 = arith.constant 0 : index
    %92 = vector.load %arg5[%c2_92, %c0_93, %c0_94] : memref<9x128x128xf32, #tpu.memory_space<vmem>>, vector<1x128x128xf32>
    %93 = vector.shape_cast %92 : vector<1x128x128xf32> to vector<128x128xf32>
    %cst_95 = arith.constant dense<0.000000e+00> : vector<256x128xf32>
    %94 = tpu.matmul %91, %93, %cst_95 {dimension_numbers = #tpu.dot_dimension_numbers<[1], [0], [0], [1], [0, 0, 1, 1], [], []>} : vector<256x128xf32>, vector<128x128xf32>, vector<256x128xf32> -> vector<256x128xf32>
    %95 = arith.addf %89, %94 : vector<256x128xf32>
    %c1_96 = arith.constant 1 : index
    %c0_97 = arith.constant 0 : index
    %c0_98 = arith.constant 0 : index
    %96 = vector.load %arg9[%c1_96, %c0_97, %c0_98] : memref<18x18x128xf32, #tpu.memory_space<vmem>>, vector<16x16x128xf32>
    %97 = vector.shape_cast %96 : vector<16x16x128xf32> to vector<256x128xf32>
    %c3_99 = arith.constant 3 : index
    %c0_100 = arith.constant 0 : index
    %c0_101 = arith.constant 0 : index
    %98 = vector.load %arg5[%c3_99, %c0_100, %c0_101] : memref<9x128x128xf32, #tpu.memory_space<vmem>>, vector<1x128x128xf32>
    %99 = vector.shape_cast %98 : vector<1x128x128xf32> to vector<128x128xf32>
    %cst_102 = arith.constant dense<0.000000e+00> : vector<256x128xf32>
    %100 = tpu.matmul %97, %99, %cst_102 {dimension_numbers = #tpu.dot_dimension_numbers<[1], [0], [0], [1], [0, 0, 1, 1], [], []>} : vector<256x128xf32>, vector<128x128xf32>, vector<256x128xf32> -> vector<256x128xf32>
    %101 = arith.addf %95, %100 : vector<256x128xf32>
    %c1_103 = arith.constant 1 : index
    %c1_104 = arith.constant 1 : index
    %c0_105 = arith.constant 0 : index
    %102 = vector.load %arg9[%c1_103, %c1_104, %c0_105] : memref<18x18x128xf32, #tpu.memory_space<vmem>>, vector<16x16x128xf32>
    %103 = vector.shape_cast %102 : vector<16x16x128xf32> to vector<256x128xf32>
    %c4_106 = arith.constant 4 : index
    %c0_107 = arith.constant 0 : index
    %c0_108 = arith.constant 0 : index
    %104 = vector.load %arg5[%c4_106, %c0_107, %c0_108] : memref<9x128x128xf32, #tpu.memory_space<vmem>>, vector<1x128x128xf32>
    %105 = vector.shape_cast %104 : vector<1x128x128xf32> to vector<128x128xf32>
    %cst_109 = arith.constant dense<0.000000e+00> : vector<256x128xf32>
    %106 = tpu.matmul %103, %105, %cst_109 {dimension_numbers = #tpu.dot_dimension_numbers<[1], [0], [0], [1], [0, 0, 1, 1], [], []>} : vector<256x128xf32>, vector<128x128xf32>, vector<256x128xf32> -> vector<256x128xf32>
    %107 = arith.addf %101, %106 : vector<256x128xf32>
    %c1_110 = arith.constant 1 : index
    %c2_111 = arith.constant 2 : index
    %c0_112 = arith.constant 0 : index
    %108 = vector.load %arg9[%c1_110, %c2_111, %c0_112] : memref<18x18x128xf32, #tpu.memory_space<vmem>>, vector<16x16x128xf32>
    %109 = vector.shape_cast %108 : vector<16x16x128xf32> to vector<256x128xf32>
    %c5_113 = arith.constant 5 : index
    %c0_114 = arith.constant 0 : index
    %c0_115 = arith.constant 0 : index
    %110 = vector.load %arg5[%c5_113, %c0_114, %c0_115] : memref<9x128x128xf32, #tpu.memory_space<vmem>>, vector<1x128x128xf32>
    %111 = vector.shape_cast %110 : vector<1x128x128xf32> to vector<128x128xf32>
    %cst_116 = arith.constant dense<0.000000e+00> : vector<256x128xf32>
    %112 = tpu.matmul %109, %111, %cst_116 {dimension_numbers = #tpu.dot_dimension_numbers<[1], [0], [0], [1], [0, 0, 1, 1], [], []>} : vector<256x128xf32>, vector<128x128xf32>, vector<256x128xf32> -> vector<256x128xf32>
    %113 = arith.addf %107, %112 : vector<256x128xf32>
    %c2_117 = arith.constant 2 : index
    %c0_118 = arith.constant 0 : index
    %c0_119 = arith.constant 0 : index
    %114 = vector.load %arg9[%c2_117, %c0_118, %c0_119] : memref<18x18x128xf32, #tpu.memory_space<vmem>>, vector<16x16x128xf32>
    %115 = vector.shape_cast %114 : vector<16x16x128xf32> to vector<256x128xf32>
    %c6_120 = arith.constant 6 : index
    %c0_121 = arith.constant 0 : index
    %c0_122 = arith.constant 0 : index
    %116 = vector.load %arg5[%c6_120, %c0_121, %c0_122] : memref<9x128x128xf32, #tpu.memory_space<vmem>>, vector<1x128x128xf32>
    %117 = vector.shape_cast %116 : vector<1x128x128xf32> to vector<128x128xf32>
    %cst_123 = arith.constant dense<0.000000e+00> : vector<256x128xf32>
    %118 = tpu.matmul %115, %117, %cst_123 {dimension_numbers = #tpu.dot_dimension_numbers<[1], [0], [0], [1], [0, 0, 1, 1], [], []>} : vector<256x128xf32>, vector<128x128xf32>, vector<256x128xf32> -> vector<256x128xf32>
    %119 = arith.addf %113, %118 : vector<256x128xf32>
    %c2_124 = arith.constant 2 : index
    %c1_125 = arith.constant 1 : index
    %c0_126 = arith.constant 0 : index
    %120 = vector.load %arg9[%c2_124, %c1_125, %c0_126] : memref<18x18x128xf32, #tpu.memory_space<vmem>>, vector<16x16x128xf32>
    %121 = vector.shape_cast %120 : vector<16x16x128xf32> to vector<256x128xf32>
    %c7_127 = arith.constant 7 : index
    %c0_128 = arith.constant 0 : index
    %c0_129 = arith.constant 0 : index
    %122 = vector.load %arg5[%c7_127, %c0_128, %c0_129] : memref<9x128x128xf32, #tpu.memory_space<vmem>>, vector<1x128x128xf32>
    %123 = vector.shape_cast %122 : vector<1x128x128xf32> to vector<128x128xf32>
    %cst_130 = arith.constant dense<0.000000e+00> : vector<256x128xf32>
    %124 = tpu.matmul %121, %123, %cst_130 {dimension_numbers = #tpu.dot_dimension_numbers<[1], [0], [0], [1], [0, 0, 1, 1], [], []>} : vector<256x128xf32>, vector<128x128xf32>, vector<256x128xf32> -> vector<256x128xf32>
    %125 = arith.addf %119, %124 : vector<256x128xf32>
    %c2_131 = arith.constant 2 : index
    %c2_132 = arith.constant 2 : index
    %c0_133 = arith.constant 0 : index
    %126 = vector.load %arg9[%c2_131, %c2_132, %c0_133] : memref<18x18x128xf32, #tpu.memory_space<vmem>>, vector<16x16x128xf32>
    %127 = vector.shape_cast %126 : vector<16x16x128xf32> to vector<256x128xf32>
    %c8_134 = arith.constant 8 : index
    %c0_135 = arith.constant 0 : index
    %c0_136 = arith.constant 0 : index
    %128 = vector.load %arg5[%c8_134, %c0_135, %c0_136] : memref<9x128x128xf32, #tpu.memory_space<vmem>>, vector<1x128x128xf32>
    %129 = vector.shape_cast %128 : vector<1x128x128xf32> to vector<128x128xf32>
    %cst_137 = arith.constant dense<0.000000e+00> : vector<256x128xf32>
    %130 = tpu.matmul %127, %129, %cst_137 {dimension_numbers = #tpu.dot_dimension_numbers<[1], [0], [0], [1], [0, 0, 1, 1], [], []>} : vector<256x128xf32>, vector<128x128xf32>, vector<256x128xf32> -> vector<256x128xf32>
    %131 = arith.addf %125, %130 : vector<256x128xf32>
    %c0_138 = arith.constant 0 : index
    %c0_139 = arith.constant 0 : index
    %132 = vector.load %arg6[%c0_138, %c0_139] : memref<1x128xf32, #tpu.memory_space<vmem>>, vector<1x128xf32>
    %133 = vector.broadcast %132 : vector<1x128xf32> to vector<256x128xf32>
    %134 = arith.addf %131, %133 : vector<256x128xf32>
    %c2_140 = arith.constant 2 : index
    %c1_141 = arith.constant 1 : index
    %c0_142 = arith.constant 0 : index
    %135 = vector.load %arg8[%c2_140, %c1_141, %c0_142] : memref<20x18x128xf32, #tpu.memory_space<vmem>>, vector<16x16x128xf32>
    %136 = vector.shape_cast %135 : vector<16x16x128xf32> to vector<256x128xf32>
    %137 = arith.addf %134, %136 : vector<256x128xf32>
    %cst_143 = arith.constant 0.000000e+00 : f32
    %138 = vector.broadcast %cst_143 : f32 to vector<256x128xf32>
    %139 = arith.maximumf %137, %138 : vector<256x128xf32>
    %140 = vector.shape_cast %139 : vector<256x128xf32> to vector<16x16x128xf32>
    %c0_144 = arith.constant 0 : index
    %c0_145 = arith.constant 0 : index
    %c0_146 = arith.constant 0 : index
    %c0_147 = arith.constant 0 : index
    %141 = vector.load %arg7[%c0_144, %c0_145, %c0_146, %c0_147] : memref<1x16x16x128xf32, #tpu.memory_space<vmem>>, vector<1x16x16x128xf32>
    %142 = vector.shape_cast %141 : vector<1x16x16x128xf32> to vector<16x16x128xf32>
    %143 = vector.shape_cast %140 : vector<16x16x128xf32> to vector<1x16x16x128xf32>
    tpu.vector_store %arg7[%c0_144, %c0_145, %c0_146, %c0_147], %143 {strides = array<i32>} : memref<1x16x16x128xf32, #tpu.memory_space<vmem>>, vector<1x16x16x128xf32>,
    return
  }
  func.func @transform_1(%arg0: i32, %arg1: i32) -> (i32, i32, i32) {
    %c0_i32 = arith.constant 0 : i32
    %c0_i32_0 = arith.constant 0 : i32
    %c0_i32_1 = arith.constant 0 : i32
    %c0_i32_2 = arith.constant 0 : i32
    return %c0_i32, %c0_i32_0, %c0_i32_1 : i32, i32, i32
  }
  func.func @transform_2(%arg0: i32, %arg1: i32) -> (i32, i32) {
    %c0_i32 = arith.constant 0 : i32
    %c0_i32_0 = arith.constant 0 : i32
    %c0_i32_1 = arith.constant 0 : i32
    return %c0_i32, %c0_i32_0 : i32, i32
  }
  func.func @transform_3(%arg0: i32, %arg1: i32) -> (i32, i32, i32) {
    %c0_i32 = arith.constant 0 : i32
    %c0_i32_0 = arith.constant 0 : i32
    %c0_i32_1 = arith.constant 0 : i32
    %c0_i32_2 = arith.constant 0 : i32
    return %c0_i32, %c0_i32_0, %c0_i32_1 : i32, i32, i32
  }
  func.func @transform_4(%arg0: i32, %arg1: i32) -> (i32, i32) {
    %c0_i32 = arith.constant 0 : i32
    %c0_i32_0 = arith.constant 0 : i32
    %c0_i32_1 = arith.constant 0 : i32
    return %c0_i32, %c0_i32_0 : i32, i32
  }
  func.func @transform_5(%arg0: i32, %arg1: i32) -> (i32, i32, i32, i32) {
    %c0_i32 = arith.constant 0 : i32
    %c0_i32_0 = arith.constant 0 : i32
    %c0_i32_1 = arith.constant 0 : i32
    return %arg0, %arg1, %c0_i32, %c0_i32_0 : i32, i32, i32, i32
  }
}

</mosaic_0001>

<llo_original>
// kernel: _lambda_.1
$region0: #{_lambda_.1}
  #allocation0 [shape = 'u32[]', space=smem, size = 0x4, offset = 0x4, fixed_abs, tag = 'smem constant byte address 0x4 - core index']
  #allocation1 [shape = 'u32[72,128]{1,0:T(1,128)}', space=vmem, size = 0x9000, scoped, tag = 'internal scratch']
  #allocation2 [shape = 'f32[20,18,128]{2,1,0:T(8,128)}', space=vmem, size = 0x3c000, scoped, tag = 'scratch operand']
  #allocation3 [shape = 'f32[18,18,128]{2,1,0:T(8,128)}', space=vmem, size = 0x36000, scoped, tag = 'scratch operand']
  #allocation4 [shape = 's32[1]{0}', space=sflag, size = 0x4, scoped, tag = 'scratch operand']
  #allocation5 [shape = 's32[]', space=sflag, size = 0x4, offset = 0, fixed_abs, tag = 'sflag constant byte address 0x0 - dummy sync flag']
  %s0 = inlined_call_operand.vmem [shape: f32[2,20,18,128], index: 0, kind: input, shape index: {}]
  %s1 = inlined_call_operand.vmem [shape: f32[9,128,128], index: 1, kind: input, shape index: {}]
  %s2 = inlined_call_operand.vmem [shape: f32[1,128], index: 2, kind: input, shape index: {}]
  %s3 = inlined_call_operand.vmem [shape: f32[9,128,128], index: 3, kind: input, shape index: {}]
  %s4 = inlined_call_operand.vmem [shape: f32[1,128], index: 4, kind: input, shape index: {}]
  %s5 = inlined_call_operand.vmem [shape: f32[2,16,16,128], index: 5, kind: output, shape index: {}]
  %s6 = sld [smem:[#allocation0]]
  $region75: #{_lambda_.1} parent=0
    _
  %s8 = ssub.s32 1, %s6
  %s9 = scalar_select 0, %s8, %s6
  loop: start=0, step=1, limit=4
  $region2: #{_lambda_.1} parent=0 // loop_pre_header
    _
  $region3: #{_lambda_.1} parent=0 // loop_header
    %s11 = sphi 0, %s15
    %p12 = scmp.ge.s32.totalorder %s11, 4
    %s18 = sphi 0, %s30
    %s19 = sphi 0, %s26
    %s20 = sphi 0, %s18
    %s21 = sphi 0, %s19
    %s22 = sphi 0, %s20
    %s23 = sphi 0, %s21
    %s31 = sphi 0, %s31
    %s33 = sphi 0, %s31
    %s34 = sphi 0, %s33
    %s48 = sphi 0, %s34
    %s52 = sphi 0, %s52
    %s54 = sphi 0, %s52
    %s55 = sphi 0, %s54
    %s69 = sphi 0, %s55
    %s73 = sphi 0, %s73
    %s75 = sphi 0, %s73
    %s76 = sphi 0, %s75
    %s90 = sphi 0, %s76
    %s94 = sphi 0, %s94
    %s96 = sphi 0, %s94
    %s97 = sphi 0, %s96
    %s111 = sphi 0, %s97
    %s119 = sphi 0, %s121
    %s122 = sphi 0, %s119
    %s123 = sphi 0, %s122
    %s139 = sphi 0, %s123
  $region4: #{_lambda_.1} parent=0 // loop_header_branch
    %14 = sbr.rel (%p12) target = $region8
  $region5: #{_lambda_.1} parent=0 // loop_body
    %s16 = ssub.s32 %s11, 1
    %s17 = ssub.s32 %s11, 2
    %s24 = sadd.s32 1, %s19
    %p25 = scmp.ge.s32.totalorder %s24, 1
    %s26 = scalar_select %p25, 0, %s24
    %s27 = sadd.s32 1, %s18
    %s28 = scalar_select %p25, %s27, %s18
    %p29 = scmp.ge.s32.totalorder %s28, 2
    %s30 = scalar_select %p29, 0, %s28
    %s32 = sadd.s32 %s31, 1
    %p35 = scmp.eq.s32.totalorder %s11, 1
    %p36 = scmp.ne.s32.totalorder %s31, %s33
    %p37 = scmp.eq.s32.totalorder %s11, 0
    %p38 = por %p36, %p37
    %p39 = scmp.ne.s32.totalorder %s31, %s33
    %p40 = scmp.eq.s32.totalorder %s16, 1
    %p41 = por %p39, %p40
    %p42 = scmp.ne.s32.totalorder %s33, %s34
    %p43 = scmp.eq.s32.totalorder %s16, 0
    %p44 = por %p42, %p43
    %p45 = scmp.ne.s32.totalorder %s33, %s34
    %p46 = scmp.eq.s32.totalorder %s17, 1
    %p47 = por %p45, %p46
    %p49 = scmp.ne.s32.totalorder %s34, %s48
    %p50 = scmp.eq.s32.totalorder %s17, 0
    %p51 = por %p49, %p50
    %s53 = sadd.s32 %s52, 1
    %p56 = scmp.eq.s32.totalorder %s11, 1
    %p57 = scmp.ne.s32.totalorder %s52, %s54
    %p58 = scmp.eq.s32.totalorder %s11, 0
    %p59 = por %p57, %p58
    %p60 = scmp.ne.s32.totalorder %s52, %s54
    %p61 = scmp.eq.s32.totalorder %s16, 1
    %p62 = por %p60, %p61
    %p63 = scmp.ne.s32.totalorder %s54, %s55
    %p64 = scmp.eq.s32.totalorder %s16, 0
    %p65 = por %p63, %p64
    %p66 = scmp.ne.s32.totalorder %s54, %s55
    %p67 = scmp.eq.s32.totalorder %s17, 1
    %p68 = por %p66, %p67
    %p70 = scmp.ne.s32.totalorder %s55, %s69
    %p71 = scmp.eq.s32.totalorder %s17, 0
    %p72 = por %p70, %p71
    %s74 = sadd.s32 %s73, 1
    %p77 = scmp.eq.s32.totalorder %s11, 1
    %p78 = scmp.ne.s32.totalorder %s73, %s75
    %p79 = scmp.eq.s32.totalorder %s11, 0
    %p80 = por %p78, %p79
    %p81 = scmp.ne.s32.totalorder %s73, %s75
    %p82 = scmp.eq.s32.totalorder %s16, 1
    %p83 = por %p81, %p82
    %p84 = scmp.ne.s32.totalorder %s75, %s76
    %p85 = scmp.eq.s32.totalorder %s16, 0
    %p86 = por %p84, %p85
    %p87 = scmp.ne.s32.totalorder %s75, %s76
    %p88 = scmp.eq.s32.totalorder %s17, 1
    %p89 = por %p87, %p88
    %p91 = scmp.ne.s32.totalorder %s76, %s90
    %p92 = scmp.eq.s32.totalorder %s17, 0
    %p93 = por %p91, %p92
    %s95 = sadd.s32 %s94, 1
    %p98 = scmp.eq.s32.totalorder %s11, 1
    %p99 = scmp.ne.s32.totalorder %s94, %s96
    %p100 = scmp.eq.s32.totalorder %s11, 0
    %p101 = por %p99, %p100
    %p102 = scmp.ne.s32.totalorder %s94, %s96
    %p103 = scmp.eq.s32.totalorder %s16, 1
    %p104 = por %p102, %p103
    %p105 = scmp.ne.s32.totalorder %s96, %s97
    %p106 = scmp.eq.s32.totalorder %s16, 0
    %p107 = por %p105, %p106
    %p108 = scmp.ne.s32.totalorder %s96, %s97
    %p109 = scmp.eq.s32.totalorder %s17, 1
    %p110 = por %p108, %p109
    %p112 = scmp.ne.s32.totalorder %s97, %s111
    %p113 = scmp.eq.s32.totalorder %s17, 0
    %p114 = por %p112, %p113
    %s115 = ssub.s32 %s18, %s30
    %s116 = ssub.s32 %s19, %s26
    %s117 = sor.u32 %s115, %s116
    %p118 = scmp.eq.s32.totalorder %s117, 0
    %s120 = sadd.s32 %s119, 1
    %s121 = scalar_select %p118, %s119, %s120
    %p124 = pneg %p118
    %p125 = scmp.eq.s32.totalorder %s11, 1
    %p126 = por %p124, %p125
    %p127 = scmp.ne.s32.totalorder %s119, %s122
    %p128 = scmp.eq.s32.totalorder %s11, 0
    %p129 = por %p127, %p128
    %p130 = scmp.ne.s32.totalorder %s119, %s122
    %p131 = scmp.eq.s32.totalorder %s16, 1
    %p132 = por %p130, %p131
    %p133 = scmp.ne.s32.totalorder %s122, %s123
    %p134 = scmp.eq.s32.totalorder %s16, 0
    %p135 = por %p133, %p134
    %p136 = scmp.ne.s32.totalorder %s122, %s123
    %p137 = scmp.eq.s32.totalorder %s17, 1
    %p138 = por %p136, %p137
    %p140 = scmp.ne.s32.totalorder %s123, %s139
    %p141 = scmp.eq.s32.totalorder %s17, 0
    %p142 = por %p140, %p141
    %p143 = scmp.le.s32.totalorder 1, %s11
    %p144 = scmp.lt.s32.totalorder %s11, 3
    %p145 = pnand %p143, %p144
    %p146 = pneg %p145
    // Predicated region
    $region9: #{_lambda_.1} parent=5 // pred_check
      _
    $region10: #{_lambda_.1} parent=5 // pred_check_branch
      %148 = sbr.rel (%p145) target = $region12
    $region11: #{_lambda_.1} parent=5 // pred_region
      %s149 = ssub.s32 %s11, 1
      // Predicated region
      $region13: #{_lambda_.1} parent=11 // pred_check
        %p150 = pneg %p44
      $region14: #{_lambda_.1} parent=11 // pred_check_branch
        %152 = sbr.rel (%p150) target = $region16
      $region15: #{_lambda_.1} parent=11 // pred_region
        _
      $region16: #{_lambda_.1} parent=11 // pred_fallthru
        _
      // Predicated region
      $region17: #{_lambda_.1} parent=11 // pred_check
        %p153 = pneg %p65
      $region18: #{_lambda_.1} parent=11 // pred_check_branch
        %155 = sbr.rel (%p153) target = $region20
      $region19: #{_lambda_.1} parent=11 // pred_region
        _
      $region20: #{_lambda_.1} parent=11 // pred_fallthru
        _
      // Predicated region
      $region21: #{_lambda_.1} parent=11 // pred_check
        %p156 = pneg %p86
      $region22: #{_lambda_.1} parent=11 // pred_check_branch
        %158 = sbr.rel (%p156) target = $region24
      $region23: #{_lambda_.1} parent=11 // pred_region
        _
      $region24: #{_lambda_.1} parent=11 // pred_fallthru
        _
      // Predicated region
      $region25: #{_lambda_.1} parent=11 // pred_check
        %p159 = pneg %p107
      $region26: #{_lambda_.1} parent=11 // pred_check_branch
        %161 = sbr.rel (%p159) target = $region28
      $region27: #{_lambda_.1} parent=11 // pred_region
        _
      $region28: #{_lambda_.1} parent=11 // pred_fallthru
        _
    $region12: #{_lambda_.1} parent=5 // pred_fallthru
      _
    %p162 = scmp.lt.s32.totalorder %s11, 2
    // Predicated region
    $region29: #{_lambda_.1} parent=5 // pred_check
      %p163 = pneg %p162
    $region30: #{_lambda_.1} parent=5 // pred_check_branch
      %165 = sbr.rel (%p163) target = $region32
    $region31: #{_lambda_.1} parent=5 // pred_region
      _
    $region32: #{_lambda_.1} parent=5 // pred_fallthru
      _
    %p166 = scmp.le.s32.totalorder 1, %s11
    %p167 = scmp.lt.s32.totalorder %s11, 3
    %p168 = pnand %p166, %p167
    %p169 = pneg %p168
    // Predicated region
    $region33: #{_lambda_.1} parent=5 // pred_check
      _
    $region34: #{_lambda_.1} parent=5 // pred_check_branch
      %171 = sbr.rel (%p168) target = $region36
    $region35: #{_lambda_.1} parent=5 // pred_region
      %s172 = ssub.s32 %s11, 1
      %p173 = pneg %p44
      %p174 = pneg %p41
      %p175 = pneg %p65
      %p176 = pneg %p62
      %p177 = pneg %p86
      %p178 = pneg %p83
      %p179 = pneg %p107
      %p180 = pneg %p104
      %p181 = pneg %p135
      %p182 = pneg %p132
      %s183 = smul.u32 16, %s21
      %p184 = scmp.lt.s32.totalorder %s20, 1
      %s185 = scalar_select %p184, %s20, 1
      %p186 = scmp.lt.s32.totalorder %s183, 15
      %s187 = scalar_select %p186, %s183, 15
      %s188 = smul.addr %s187, 2
      %s189 = smul.addr %s185, 32
      %s190 = sadd.s32 %s188, %s189
      %s191 = smul.addr %s190, 8
      %s192 = scalar_lea.vmem %s5, %s191
      %s193 = smul.u32 16, %s21
      %p194 = scmp.lt.s32.totalorder %s20, 1
      %s195 = scalar_select %p194, %s20, 1
      %p196 = scmp.lt.s32.totalorder %s193, 15
      %s197 = scalar_select %p196, %s193, 15
      %s198 = smul.addr %s197, 2
      %s199 = smul.addr %s195, 32
      %s200 = sadd.s32 %s198, %s199
      %s201 = smul.addr %s200, 8
      %s202 = scalar_lea.vmem %s5, %s201
      %s203 = smul.u32 16, %s21
      %s204 = smul.u32 %s21, 16
      %s205 = smul.u32 %s204, 24
      %s206 = smul.u32 %s20, 480
      %s207 = sadd.s32 %s205, %s206
      %s208 = scalar_lea.vmem %s0, %s207
      // Predicated region
      $region37: #{_lambda_.1} parent=35 // pred_check
        _
      $region38: #{_lambda_.1} parent=35 // pred_check_branch
        %210 = sbr.rel (0) target = $region40
      $region39: #{_lambda_.1} parent=35 // pred_region
        %s211 = scalar_lea.vmem %s208, 16
        %s212 = scalar_lea.vmem [#allocation2], 16
        loop: start=0, step=1, limit=1
        $region41: #{_lambda_.1} parent=39 // loop_pre_header
          _
        $region42: #{_lambda_.1} parent=39 // loop_header
          %s214 = sphi 0, %s218
          %p215 = scmp.ge.s32.totalorder %s214, 1
          %s219 = sphi %s208, %s208
          %s220 = sphi [#allocation2], [#allocation2]
        $region43: #{_lambda_.1} parent=39 // loop_header_branch
          %217 = sbr.rel (%p215) target = $region47
        $region44: #{_lambda_.1} parent=39 // loop_body
          %v221 = vld [vmem:[%s219] sm:$0xff]
          %222 = vst [vmem:[%s220] sm:$0xff] %v221
          %v223 = vld [vmem:[%s219 + $0x8] sm:$0xff]
          %224 = vst [vmem:[%s220 + $0x8] sm:$0xff] %v223
          %v225 = vld [vmem:[%s219 + $0x18] sm:$0xff]
          %226 = vst [vmem:[%s220 + $0x18] sm:$0xff] %v225
          %v227 = vld [vmem:[%s219 + $0x20] sm:$0xff]
          %228 = vst [vmem:[%s220 + $0x20] sm:$0xff] %v227
          %v229 = vld [vmem:[%s219 + $0x30] sm:$0xff]
          %230 = vst [vmem:[%s220 + $0x30] sm:$0xff] %v229
          %v231 = vld [vmem:[%s219 + $0x38] sm:$0xff]
          %232 = vst [vmem:[%s220 + $0x38] sm:$0xff] %v231
          %v233 = vld [vmem:[%s219 + $0x48] sm:$0xff]
          %234 = vst [vmem:[%s220 + $0x48] sm:$0xff] %v233
          %v235 = vld [vmem:[%s219 + $0x50] sm:$0xff]
          %236 = vst [vmem:[%s220 + $0x50] sm:$0xff] %v235
          %v237 = vld [vmem:[%s219 + $0x60] sm:$0xff]
          %238 = vst [vmem:[%s220 + $0x60] sm:$0xff] %v237
          %v239 = vld [vmem:[%s219 + $0x68] sm:$0xff]
          %240 = vst [vmem:[%s220 + $0x68] sm:$0xff] %v239
          %v241 = vld [vmem:[%s219 + $0x78] sm:$0xff]
          %242 = vst [vmem:[%s220 + $0x78] sm:$0xff] %v241
          %v243 = vld [vmem:[%s219 + $0x80] sm:$0xff]
          %244 = vst [vmem:[%s220 + $0x80] sm:$0xff] %v243
          %v245 = vld [vmem:[%s219 + $0x90] sm:$0xff]
          %246 = vst [vmem:[%s220 + $0x90] sm:$0xff] %v245
          %v247 = vld [vmem:[%s219 + $0x98] sm:$0xff]
          %248 = vst [vmem:[%s220 + $0x98] sm:$0xff] %v247
          %v249 = vld [vmem:[%s219 + $0xa8] sm:$0xff]
          %250 = vst [vmem:[%s220 + $0xa8] sm:$0xff] %v249
          %v251 = vld [vmem:[%s219 + $0xb0] sm:$0xff]
          %252 = vst [vmem:[%s220 + $0xb0] sm:$0xff] %v251
          %v253 = vld [vmem:[%s219 + $0xc0] sm:$0xff]
          %254 = vst [vmem:[%s220 + $0xc0] sm:$0xff] %v253
          %v255 = vld [vmem:[%s219 + $0xc8] sm:$0xff]
          %256 = vst [vmem:[%s220 + $0xc8] sm:$0xff] %v255
          %v257 = vld [vmem:[%s219 + $0xd8] sm:$0xff]
          %258 = vst [vmem:[%s220 + $0xd8] sm:$0xff] %v257
          %v259 = vld [vmem:[%s219 + $0xe0] sm:$0xff]
          %260 = vst [vmem:[%s220 + $0xe0] sm:$0xff] %v259
          %v261 = vld [vmem:[%s219 + $0xf0] sm:$0xff]
          %262 = vst [vmem:[%s220 + $0xf0] sm:$0xff] %v261
          %v263 = vld [vmem:[%s219 + $0xf8] sm:$0xff]
          %264 = vst [vmem:[%s220 + $0xf8] sm:$0xff] %v263
          %v265 = vld [vmem:[%s219 + $0x108] sm:$0xff]
          %266 = vst [vmem:[%s220 + $0x108] sm:$0xff] %v265
          %v267 = vld [vmem:[%s219 + $0x110] sm:$0xff]
          %268 = vst [vmem:[%s220 + $0x110] sm:$0xff] %v267
          %v269 = vld [vmem:[%s219 + $0x120] sm:$0xff]
          %270 = vst [vmem:[%s220 + $0x120] sm:$0xff] %v269
          %v271 = vld [vmem:[%s219 + $0x128] sm:$0xff]
          %272 = vst [vmem:[%s220 + $0x128] sm:$0xff] %v271
          %v273 = vld [vmem:[%s219 + $0x138] sm:$0xff]
          %274 = vst [vmem:[%s220 + $0x138] sm:$0xff] %v273
          %v275 = vld [vmem:[%s219 + $0x140] sm:$0xff]
          %276 = vst [vmem:[%s220 + $0x140] sm:$0xff] %v275
          %v277 = vld [vmem:[%s219 + $0x150] sm:$0xff]
          %278 = vst [vmem:[%s220 + $0x150] sm:$0xff] %v277
          %v279 = vld [vmem:[%s219 + $0x158] sm:$0xff]
          %280 = vst [vmem:[%s220 + $0x158] sm:$0xff] %v279
          %v281 = vld [vmem:[%s219 + $0x168] sm:$0xff]
          %282 = vst [vmem:[%s220 + $0x168] sm:$0xff] %v281
          %v283 = vld [vmem:[%s219 + $0x170] sm:$0xff]
          %284 = vst [vmem:[%s220 + $0x170] sm:$0xff] %v283
          %v285 = vld [vmem:[%s219 + $0x180] sm:$0xff]
          %286 = vst [vmem:[%s220 + $0x180] sm:$0xff] %v285
          %v287 = vld [vmem:[%s219 + $0x188] sm:$0xff]
          %288 = vst [vmem:[%s220 + $0x188] sm:$0xff] %v287
          %v289 = vld [vmem:[%s219 + $0x198] sm:$0xff]
          %290 = vst [vmem:[%s220 + $0x198] sm:$0xff] %v289
          %v291 = vld [vmem:[%s219 + $0x1a0] sm:$0xff]
          %292 = vst [vmem:[%s220 + $0x1a0] sm:$0xff] %v291
          %v293 = vld [vmem:[%s219 + $0x1b0] sm:$0xff]
          %294 = vst [vmem:[%s220 + $0x1b0] sm:$0xff] %v293
          %v295 = vld [vmem:[%s219 + $0x1b8] sm:$0xff]
          %296 = vst [vmem:[%s220 + $0x1b8] sm:$0xff] %v295
          %v297 = vld [vmem:[%s219 + $0x1c8] sm:$0xff]
          %298 = vst [vmem:[%s220 + $0x1c8] sm:$0xff] %v297
          %v299 = vld [vmem:[%s219 + $0x1d0] sm:$0xff]
          %300 = vst [vmem:[%s220 + $0x1d0] sm:$0xff] %v299
        $region45: #{_lambda_.1} parent=39 // loop_footer
          %s218 = sadd.s32 1, %s214
        $region46: #{_lambda_.1} parent=39 // loop_footer_branch
          %213 = sbr.rel target = $region42
        $region47: #{_lambda_.1} parent=39 // loop_exit
          _
        %s302 = ssub.s32 4, 1
        loop: start=0, step=1, limit=1
        $region48: #{_lambda_.1} parent=39 // loop_pre_header
          _
        $region49: #{_lambda_.1} parent=39 // loop_header
          %s304 = sphi 0, %s308
          %p305 = scmp.ge.s32.totalorder %s304, 1
          %s309 = sphi %s211, %s211
          %s310 = sphi %s212, %s212
        $region50: #{_lambda_.1} parent=39 // loop_header_branch
          %307 = sbr.rel (%p305) target = $region54
        $region51: #{_lambda_.1} parent=39 // loop_body
          %v311 = vld [vmem:[%s309] sm:%s302]
          %312 = vst [vmem:[%s310] sm:%s302] %v311
          %v313 = vld [vmem:[%s309 + $0x18] sm:%s302]
          %314 = vst [vmem:[%s310 + $0x18] sm:%s302] %v313
          %v315 = vld [vmem:[%s309 + $0x30] sm:%s302]
          %316 = vst [vmem:[%s310 + $0x30] sm:%s302] %v315
          %v317 = vld [vmem:[%s309 + $0x48] sm:%s302]
          %318 = vst [vmem:[%s310 + $0x48] sm:%s302] %v317
          %v319 = vld [vmem:[%s309 + $0x60] sm:%s302]
          %320 = vst [vmem:[%s310 + $0x60] sm:%s302] %v319
          %v321 = vld [vmem:[%s309 + $0x78] sm:%s302]
          %322 = vst [vmem:[%s310 + $0x78] sm:%s302] %v321
          %v323 = vld [vmem:[%s309 + $0x90] sm:%s302]
          %324 = vst [vmem:[%s310 + $0x90] sm:%s302] %v323
          %v325 = vld [vmem:[%s309 + $0xa8] sm:%s302]
          %326 = vst [vmem:[%s310 + $0xa8] sm:%s302] %v325
          %v327 = vld [vmem:[%s309 + $0xc0] sm:%s302]
          %328 = vst [vmem:[%s310 + $0xc0] sm:%s302] %v327
          %v329 = vld [vmem:[%s309 + $0xd8] sm:%s302]
          %330 = vst [vmem:[%s310 + $0xd8] sm:%s302] %v329
          %v331 = vld [vmem:[%s309 + $0xf0] sm:%s302]
          %332 = vst [vmem:[%s310 + $0xf0] sm:%s302] %v331
          %v333 = vld [vmem:[%s309 + $0x108] sm:%s302]
          %334 = vst [vmem:[%s310 + $0x108] sm:%s302] %v333
          %v335 = vld [vmem:[%s309 + $0x120] sm:%s302]
          %336 = vst [vmem:[%s310 + $0x120] sm:%s302] %v335
          %v337 = vld [vmem:[%s309 + $0x138] sm:%s302]
          %338 = vst [vmem:[%s310 + $0x138] sm:%s302] %v337
          %v339 = vld [vmem:[%s309 + $0x150] sm:%s302]
          %340 = vst [vmem:[%s310 + $0x150] sm:%s302] %v339
          %v341 = vld [vmem:[%s309 + $0x168] sm:%s302]
          %342 = vst [vmem:[%s310 + $0x168] sm:%s302] %v341
          %v343 = vld [vmem:[%s309 + $0x180] sm:%s302]
          %344 = vst [vmem:[%s310 + $0x180] sm:%s302] %v343
          %v345 = vld [vmem:[%s309 + $0x198] sm:%s302]
          %346 = vst [vmem:[%s310 + $0x198] sm:%s302] %v345
          %v347 = vld [vmem:[%s309 + $0x1b0] sm:%s302]
          %348 = vst [vmem:[%s310 + $0x1b0] sm:%s302] %v347
          %v349 = vld [vmem:[%s309 + $0x1c8] sm:%s302]
          %350 = vst [vmem:[%s310 + $0x1c8] sm:%s302] %v349
        $region52: #{_lambda_.1} parent=39 // loop_footer
          %s308 = sadd.s32 1, %s304
        $region53: #{_lambda_.1} parent=39 // loop_footer_branch
          %303 = sbr.rel target = $region49
        $region54: #{_lambda_.1} parent=39 // loop_exit
          _
      $region40: #{_lambda_.1} parent=35 // pred_fallthru
        _
      // Predicated region
      $region55: #{_lambda_.1} parent=35 // pred_check
        _
      $region56: #{_lambda_.1} parent=35 // pred_check_branch
        %353 = sbr.rel (0) target = $region58
      $region57: #{_lambda_.1} parent=35 // pred_region
        %354 = vsyncadd [#allocation4], 5760
      $region58: #{_lambda_.1} parent=35 // pred_fallthru
        _
      %s355 = smul.u32 20, 18
      %s356 = smul.u32 %s355, 1
      %s357 = sshll.u32 %s356, 4
      %358 = dma.done [#allocation4], %s357
      %v359 = vld [vmem:[#allocation2] sm:$0xff]
      %v360 = vld [vmem:[#allocation2 + $0x8] sm:$0xff]
      %v361 = vld [vmem:[#allocation2 + $0x18] sm:$0xff]
      %v362 = vld [vmem:[#allocation2 + $0x20] sm:$0xff]
      %v363 = vld [vmem:[#allocation2 + $0x30] sm:$0xff]
      %v364 = vld [vmem:[#allocation2 + $0x38] sm:$0xff]
      %v365 = vld [vmem:[#allocation2 + $0x48] sm:$0xff]
      %v366 = vld [vmem:[#allocation2 + $0x50] sm:$0xff]
      %v367 = vld [vmem:[#allocation2 + $0x60] sm:$0xff]
      %v368 = vld [vmem:[#allocation2 + $0x68] sm:$0xff]
      %v369 = vld [vmem:[#allocation2 + $0x78] sm:$0xff]
      %v370 = vld [vmem:[#allocation2 + $0x80] sm:$0xff]
      %v371 = vld [vmem:[#allocation2 + $0x90] sm:$0xff]
      %v372 = vld [vmem:[#allocation2 + $0x98] sm:$0xff]
      %v373 = vld [vmem:[#allocation2 + $0xa8] sm:$0xff]
      %v374 = vld [vmem:[#allocation2 + $0xb0] sm:$0xff]
      %v375 = vld [vmem:[#allocation2 + $0xc0] sm:$0xff]
      %v376 = vld [vmem:[#allocation2 + $0xc8] sm:$0xff]
      %v377 = vld [vmem:[#allocation2 + $0xd8] sm:$0xff]
      %v378 = vld [vmem:[#allocation2 + $0xe0] sm:$0xff]
      %v379 = vld [vmem:[#allocation2 + $0xf0] sm:$0xff]
      %v380 = vld [vmem:[#allocation2 + $0xf8] sm:$0xff]
      %v381 = vld [vmem:[#allocation2 + $0x108] sm:$0xff]
      %v382 = vld [vmem:[#allocation2 + $0x110] sm:$0xff]
      %v383 = vld [vmem:[#allocation2 + $0x120] sm:$0xff]
      %v384 = vld [vmem:[#allocation2 + $0x128] sm:$0xff]
      %v385 = vld [vmem:[#allocation2 + $0x138] sm:$0xff]
      %v386 = vld [vmem:[#allocation2 + $0x140] sm:$0xff]
      %v387 = vld [vmem:[#allocation2 + $0x150] sm:$0xff]
      %v388 = vld [vmem:[#allocation2 + $0x158] sm:$0xff]
      %v389 = vld [vmem:[#allocation2 + $0x168] sm:$0xff]
      %v390 = vld [vmem:[#allocation2 + $0x170] sm:$0xff]
      %v391 = vld [vmem:[#allocation2 + $0x180] sm:$0xff]
      %v392 = vld [vmem:[#allocation2 + $0x188] sm:$0xff]
      %v393 = vld [vmem:[#allocation2 + $0x198] sm:$0xff]
      %v394 = vld [vmem:[#allocation2 + $0x1a0] sm:$0xff]
      %v395 = vld [vmem:[%s1] sm:$0xff]
      %v396 = vld [vmem:[%s1 + $0x8] sm:$0xff]
      %v397 = vld [vmem:[%s1 + $0x10] sm:$0xff]
      %v398 = vld [vmem:[%s1 + $0x18] sm:$0xff]
      %v399 = vld [vmem:[%s1 + $0x20] sm:$0xff]
      %v400 = vld [vmem:[%s1 + $0x28] sm:$0xff]
      %v401 = vld [vmem:[%s1 + $0x30] sm:$0xff]
      %v402 = vld [vmem:[%s1 + $0x38] sm:$0xff]
      %v403 = vld [vmem:[%s1 + $0x40] sm:$0xff]
      %v404 = vld [vmem:[%s1 + $0x48] sm:$0xff]
      %v405 = vld [vmem:[%s1 + $0x50] sm:$0xff]
      %v406 = vld [vmem:[%s1 + $0x58] sm:$0xff]
      %v407 = vld [vmem:[%s1 + $0x60] sm:$0xff]
      %v408 = vld [vmem:[%s1 + $0x68] sm:$0xff]
      %v409 = vld [vmem:[%s1 + $0x70] sm:$0xff]
      %v410 = vld [vmem:[%s1 + $0x78] sm:$0xff]
      %v411 = vld [vmem:[#allocation2 + $0x1] sm:$0xff]
      %v412 = vld [vmem:[#allocation2 + $0x9] sm:$0xff]
      %v413 = vld [vmem:[#allocation2 + $0x19] sm:$0xff]
      %v414 = vld [vmem:[#allocation2 + $0x21] sm:$0xff]
      %v415 = vld [vmem:[#allocation2 + $0x31] sm:$0xff]
      %v416 = vld [vmem:[#allocation2 + $0x39] sm:$0xff]
      %v417 = vld [vmem:[#allocation2 + $0x49] sm:$0xff]
      %v418 = vld [vmem:[#allocation2 + $0x51] sm:$0xff]
      %v419 = vld [vmem:[#allocation2 + $0x61] sm:$0xff]
      %v420 = vld [vmem:[#allocation2 + $0x69] sm:$0xff]
      %v421 = vld [vmem:[#allocation2 + $0x79] sm:$0xff]
      %v422 = vld [vmem:[#allocation2 + $0x81] sm:$0xff]
      %v423 = vld [vmem:[#allocation2 + $0x91] sm:$0xff]
      %v424 = vld [vmem:[#allocation2 + $0x99] sm:$0xff]
      %v425 = vld [vmem:[#allocation2 + $0xa9] sm:$0xff]
      %v426 = vld [vmem:[#allocation2 + $0xb1] sm:$0xff]
      %v427 = vld [vmem:[#allocation2 + $0xc1] sm:$0xff]
      %v428 = vld [vmem:[#allocation2 + $0xc9] sm:$0xff]
      %v429 = vld [vmem:[#allocation2 + $0xd9] sm:$0xff]
      %v430 = vld [vmem:[#allocation2 + $0xe1] sm:$0xff]
      %v431 = vld [vmem:[#allocation2 + $0xf1] sm:$0xff]
      %v432 = vld [vmem:[#allocation2 + $0xf9] sm:$0xff]
      %v433 = vld [vmem:[#allocation2 + $0x109] sm:$0xff]
      %v434 = vld [vmem:[#allocation2 + $0x111] sm:$0xff]
      %v435 = vld [vmem:[#allocation2 + $0x121] sm:$0xff]
      %v436 = vld [vmem:[#allocation2 + $0x129] sm:$0xff]
      %v437 = vld [vmem:[#allocation2 + $0x139] sm:$0xff]
      %v438 = vld [vmem:[#allocation2 + $0x141] sm:$0xff]
      %v439 = vld [vmem:[#allocation2 + $0x151] sm:$0xff]
      %v440 = vld [vmem:[#allocation2 + $0x159] sm:$0xff]
      %v441 = vld [vmem:[#allocation2 + $0x169] sm:$0xff]
      %v442 = vld [vmem:[#allocation2 + $0x171] sm:$0xff]
      %v443 = vld [vmem:[#allocation2 + $0x181] sm:$0xff]
      %v444 = vld [vmem:[#allocation2 + $0x189] sm:$0xff]
      %v445 = vld [vmem:[#allocation2 + $0x199] sm:$0xff]
      %v446 = vld [vmem:[#allocation2 + $0x1a1] sm:$0xff]
      %s447 = scalar_lea.vmem %s1, 128
      %v448 = vld [vmem:[%s447] sm:$0xff]
      %v449 = vld [vmem:[%s447 + $0x8] sm:$0xff]
      %v450 = vld [vmem:[%s447 + $0x10] sm:$0xff]
      %v451 = vld [vmem:[%s447 + $0x18] sm:$0xff]
      %v452 = vld [vmem:[%s447 + $0x20] sm:$0xff]
      %v453 = vld [vmem:[%s447 + $0x28] sm:$0xff]
      %v454 = vld [vmem:[%s447 + $0x30] sm:$0xff]
      %v455 = vld [vmem:[%s447 + $0x38] sm:$0xff]
      %v456 = vld [vmem:[%s447 + $0x40] sm:$0xff]
      %v457 = vld [vmem:[%s447 + $0x48] sm:$0xff]
      %v458 = vld [vmem:[%s447 + $0x50] sm:$0xff]
      %v459 = vld [vmem:[%s447 + $0x58] sm:$0xff]
      %v460 = vld [vmem:[%s447 + $0x60] sm:$0xff]
      %v461 = vld [vmem:[%s447 + $0x68] sm:$0xff]
      %v462 = vld [vmem:[%s447 + $0x70] sm:$0xff]
      %v463 = vld [vmem:[%s447 + $0x78] sm:$0xff]
      %464 = vmatpush.msra.mxu0 %v463
      %465 = vmatpush.msra.mxu0 %v462
      %466 = vmatpush.msra.mxu0 %v461
      %467 = vmatpush.msra.mxu0 %v460
      %468 = vmatpush.msra.mxu0 %v459
      %469 = vmatpush.msra.mxu0 %v458
      %470 = vmatpush.msra.mxu0 %v457
      %471 = vmatpush.msra.mxu0 %v456
      %472 = vmatpush.msra.mxu0 %v455
      %473 = vmatpush.msra.mxu0 %v454
      %474 = vmatpush.msra.mxu0 %v453
      %475 = vmatpush.msra.mxu0 %v452
      %476 = vmatpush.msra.mxu0 %v451
      %477 = vmatpush.msra.mxu0 %v450
      %478 = vmatpush.msra.mxu0 %v449
      %479 = vmatpush.msra.mxu0 %v448
      %480 = vmatmul.f32.gmra.mxu0 %v411
      %v481 = vpop.f32.mrf.mxu0
      %v482 = vadd.f32 0.0, %v481
      %483 = vmatmul.f32.gmra.mxu0 %v412
      %v484 = vpop.f32.mrf.mxu0
      %v485 = vadd.f32 0.0, %v484
      %486 = vmatmul.f32.gmra.mxu0 %v413
      %v487 = vpop.f32.mrf.mxu0
      %v488 = vadd.f32 0.0, %v487
      %489 = vmatmul.f32.gmra.mxu0 %v414
      %v490 = vpop.f32.mrf.mxu0
      %v491 = vadd.f32 0.0, %v490
      %492 = vmatmul.f32.gmra.mxu0 %v415
      %v493 = vpop.f32.mrf.mxu0
      %v494 = vadd.f32 0.0, %v493
      %495 = vmatmul.f32.gmra.mxu0 %v416
      %v496 = vpop.f32.mrf.mxu0
      %v497 = vadd.f32 0.0, %v496
      %498 = vmatmul.f32.gmra.mxu0 %v417
      %v499 = vpop.f32.mrf.mxu0
      %v500 = vadd.f32 0.0, %v499
      %501 = vmatmul.f32.gmra.mxu0 %v418
      %v502 = vpop.f32.mrf.mxu0
      %v503 = vadd.f32 0.0, %v502
      %504 = vmatmul.f32.gmra.mxu0 %v419
      %v505 = vpop.f32.mrf.mxu0
      %v506 = vadd.f32 0.0, %v505
      %507 = vmatmul.f32.gmra.mxu0 %v420
      %v508 = vpop.f32.mrf.mxu0
      %v509 = vadd.f32 0.0, %v508
      %510 = vmatmul.f32.gmra.mxu0 %v421
      %v511 = vpop.f32.mrf.mxu0
      %v512 = vadd.f32 0.0, %v511
      %513 = vmatmul.f32.gmra.mxu0 %v422
      %v514 = vpop.f32.mrf.mxu0
      %v515 = vadd.f32 0.0, %v514
      %516 = vmatmul.f32.gmra.mxu0 %v423
      %v517 = vpop.f32.mrf.mxu0
      %v518 = vadd.f32 0.0, %v517
      %519 = vmatmul.f32.gmra.mxu0 %v424
      %v520 = vpop.f32.mrf.mxu0
      %v521 = vadd.f32 0.0, %v520
      %522 = vmatmul.f32.gmra.mxu0 %v425
      %v523 = vpop.f32.mrf.mxu0
      %v524 = vadd.f32 0.0, %v523
      %525 = vmatmul.f32.gmra.mxu0 %v426
      %v526 = vpop.f32.mrf.mxu0
      %v527 = vadd.f32 0.0, %v526
      %528 = vmatmul.f32.gmra.mxu0 %v427
      %v529 = vpop.f32.mrf.mxu0
      %v530 = vadd.f32 0.0, %v529
      %531 = vmatmul.f32.gmra.mxu0 %v428
      %v532 = vpop.f32.mrf.mxu0
      %v533 = vadd.f32 0.0, %v532
      %534 = vmatmul.f32.gmra.mxu0 %v429
      %v535 = vpop.f32.mrf.mxu0
      %v536 = vadd.f32 0.0, %v535
      %537 = vmatmul.f32.gmra.mxu0 %v430
      %v538 = vpop.f32.mrf.mxu0
      %v539 = vadd.f32 0.0, %v538
      %540 = vmatmul.f32.gmra.mxu0 %v431
      %v541 = vpop.f32.mrf.mxu0
      %v542 = vadd.f32 0.0, %v541
      %543 = vmatmul.f32.gmra.mxu0 %v432
      %v544 = vpop.f32.mrf.mxu0
      %v545 = vadd.f32 0.0, %v544
      %546 = vmatmul.f32.gmra.mxu0 %v433
      %v547 = vpop.f32.mrf.mxu0
      %v548 = vadd.f32 0.0, %v547
      %549 = vmatmul.f32.gmra.mxu0 %v434
      %v550 = vpop.f32.mrf.mxu0
      %v551 = vadd.f32 0.0, %v550
      %552 = vmatmul.f32.gmra.mxu0 %v435
      %v553 = vpop.f32.mrf.mxu0
      %v554 = vadd.f32 0.0, %v553
      %555 = vmatmul.f32.gmra.mxu0 %v436
      %v556 = vpop.f32.mrf.mxu0
      %v557 = vadd.f32 0.0, %v556
      %558 = vmatmul.f32.gmra.mxu0 %v437
      %v559 = vpop.f32.mrf.mxu0
      %v560 = vadd.f32 0.0, %v559
      %561 = vmatmul.f32.gmra.mxu0 %v438
      %v562 = vpop.f32.mrf.mxu0
      %v563 = vadd.f32 0.0, %v562
      %564 = vmatmul.f32.gmra.mxu0 %v439
      %v565 = vpop.f32.mrf.mxu0
      %v566 = vadd.f32 0.0, %v565
      %567 = vmatmul.f32.gmra.mxu0 %v440
      %v568 = vpop.f32.mrf.mxu0
      %v569 = vadd.f32 0.0, %v568
      %570 = vmatmul.f32.gmra.mxu0 %v441
      %v571 = vpop.f32.mrf.mxu0
      %v572 = vadd.f32 0.0, %v571
      %573 = vmatmul.f32.gmra.mxu0 %v442
      %v574 = vpop.f32.mrf.mxu0
      %v575 = vadd.f32 0.0, %v574
      %576 = vmatmul.f32.gmra.mxu0 %v443
      %v577 = vpop.f32.mrf.mxu0
      %v578 = vadd.f32 0.0, %v577
      %579 = vmatmul.f32.gmra.mxu0 %v444
      %v580 = vpop.f32.mrf.mxu0
      %v581 = vadd.f32 0.0, %v580
      %582 = vmatmul.f32.gmra.mxu0 %v445
      %v583 = vpop.f32.mrf.mxu0
      %v584 = vadd.f32 0.0, %v583
      %585 = vmatmul.f32.gmra.mxu0 %v446
      %v586 = vpop.f32.mrf.mxu0
      %v587 = vadd.f32 0.0, %v586
      %588 = vdwg.mxu0
      %589 = vmatpush.msra.mxu0 %v410
      %590 = vmatpush.msra.mxu0 %v409
      %591 = vmatpush.msra.mxu0 %v408
      %592 = vmatpush.msra.mxu0 %v407
      %593 = vmatpush.msra.mxu0 %v406
      %594 = vmatpush.msra.mxu0 %v405
      %595 = vmatpush.msra.mxu0 %v404
      %596 = vmatpush.msra.mxu0 %v403
      %597 = vmatpush.msra.mxu0 %v402
      %598 = vmatpush.msra.mxu0 %v401
      %599 = vmatpush.msra.mxu0 %v400
      %600 = vmatpush.msra.mxu0 %v399
      %601 = vmatpush.msra.mxu0 %v398
      %602 = vmatpush.msra.mxu0 %v397
      %603 = vmatpush.msra.mxu0 %v396
      %604 = vmatpush.msra.mxu0 %v395
      %605 = vmatmul.f32.gmra.mxu0 %v359
      %v606 = vpop.f32.mrf.mxu0
      %v607 = vadd.f32 %v482, %v606
      %608 = vmatmul.f32.gmra.mxu0 %v360
      %v609 = vpop.f32.mrf.mxu0
      %v610 = vadd.f32 %v485, %v609
      %611 = vmatmul.f32.gmra.mxu0 %v361
      %v612 = vpop.f32.mrf.mxu0
      %v613 = vadd.f32 %v488, %v612
      %614 = vmatmul.f32.gmra.mxu0 %v362
      %v615 = vpop.f32.mrf.mxu0
      %v616 = vadd.f32 %v491, %v615
      %617 = vmatmul.f32.gmra.mxu0 %v363
      %v618 = vpop.f32.mrf.mxu0
      %v619 = vadd.f32 %v494, %v618
      %620 = vmatmul.f32.gmra.mxu0 %v364
      %v621 = vpop.f32.mrf.mxu0
      %v622 = vadd.f32 %v497, %v621
      %623 = vmatmul.f32.gmra.mxu0 %v365
      %v624 = vpop.f32.mrf.mxu0
      %v625 = vadd.f32 %v500, %v624
      %626 = vmatmul.f32.gmra.mxu0 %v366
      %v627 = vpop.f32.mrf.mxu0
      %v628 = vadd.f32 %v503, %v627
      %629 = vmatmul.f32.gmra.mxu0 %v367
      %v630 = vpop.f32.mrf.mxu0
      %v631 = vadd.f32 %v506, %v630
      %632 = vmatmul.f32.gmra.mxu0 %v368
      %v633 = vpop.f32.mrf.mxu0
      %v634 = vadd.f32 %v509, %v633
      %635 = vmatmul.f32.gmra.mxu0 %v369
      %v636 = vpop.f32.mrf.mxu0
      %v637 = vadd.f32 %v512, %v636
      %638 = vmatmul.f32.gmra.mxu0 %v370
      %v639 = vpop.f32.mrf.mxu0
      %v640 = vadd.f32 %v515, %v639
      %641 = vmatmul.f32.gmra.mxu0 %v371
      %v642 = vpop.f32.mrf.mxu0
      %v643 = vadd.f32 %v518, %v642
      %644 = vmatmul.f32.gmra.mxu0 %v372
      %v645 = vpop.f32.mrf.mxu0
      %v646 = vadd.f32 %v521, %v645
      %647 = vmatmul.f32.gmra.mxu0 %v373
      %v648 = vpop.f32.mrf.mxu0
      %v649 = vadd.f32 %v524, %v648
      %650 = vmatmul.f32.gmra.mxu0 %v374
      %v651 = vpop.f32.mrf.mxu0
      %v652 = vadd.f32 %v527, %v651
      %653 = vmatmul.f32.gmra.mxu0 %v375
      %v654 = vpop.f32.mrf.mxu0
      %v655 = vadd.f32 %v530, %v654
      %656 = vmatmul.f32.gmra.mxu0 %v376
      %v657 = vpop.f32.mrf.mxu0
      %v658 = vadd.f32 %v533, %v657
      %659 = vmatmul.f32.gmra.mxu0 %v377
      %v660 = vpop.f32.mrf.mxu0
      %v661 = vadd.f32 %v536, %v660
      %662 = vmatmul.f32.gmra.mxu0 %v378
      %v663 = vpop.f32.mrf.mxu0
      %v664 = vadd.f32 %v539, %v663
      %665 = vmatmul.f32.gmra.mxu0 %v379
      %v666 = vpop.f32.mrf.mxu0
      %v667 = vadd.f32 %v542, %v666
      %668 = vmatmul.f32.gmra.mxu0 %v380
      %v669 = vpop.f32.mrf.mxu0
      %v670 = vadd.f32 %v545, %v669
      %671 = vmatmul.f32.gmra.mxu0 %v381
      %v672 = vpop.f32.mrf.mxu0
      %v673 = vadd.f32 %v548, %v672
      %674 = vmatmul.f32.gmra.mxu0 %v382
      %v675 = vpop.f32.mrf.mxu0
      %v676 = vadd.f32 %v551, %v675
      %677 = vmatmul.f32.gmra.mxu0 %v383
      %v678 = vpop.f32.mrf.mxu0
      %v679 = vadd.f32 %v554, %v678
      %680 = vmatmul.f32.gmra.mxu0 %v384
      %v681 = vpop.f32.mrf.mxu0
      %v682 = vadd.f32 %v557, %v681
      %683 = vmatmul.f32.gmra.mxu0 %v385
      %v684 = vpop.f32.mrf.mxu0
      %v685 = vadd.f32 %v560, %v684
      %686 = vmatmul.f32.gmra.mxu0 %v386
      %v687 = vpop.f32.mrf.mxu0
      %v688 = vadd.f32 %v563, %v687
      %689 = vmatmul.f32.gmra.mxu0 %v387
      %v690 = vpop.f32.mrf.mxu0
      %v691 = vadd.f32 %v566, %v690
      %692 = vmatmul.f32.gmra.mxu0 %v388
      %v693 = vpop.f32.mrf.mxu0
      %v694 = vadd.f32 %v569, %v693
      %695 = vmatmul.f32.gmra.mxu0 %v389
      %v696 = vpop.f32.mrf.mxu0
      %v697 = vadd.f32 %v572, %v696
      %698 = vmatmul.f32.gmra.mxu0 %v390
      %v699 = vpop.f32.mrf.mxu0
      %v700 = vadd.f32 %v575, %v699
      %701 = vmatmul.f32.gmra.mxu0 %v391
      %v702 = vpop.f32.mrf.mxu0
      %v703 = vadd.f32 %v578, %v702
      %704 = vmatmul.f32.gmra.mxu0 %v392
      %v705 = vpop.f32.mrf.mxu0
      %v706 = vadd.f32 %v581, %v705
      %707 = vmatmul.f32.gmra.mxu0 %v393
      %v708 = vpop.f32.mrf.mxu0
      %v709 = vadd.f32 %v584, %v708
      %710 = vmatmul.f32.gmra.mxu0 %v394
      %v711 = vpop.f32.mrf.mxu0
      %v712 = vadd.f32 %v587, %v711
      %713 = vdwg.mxu0
      %v714 = vld [vmem:[#allocation2 + $0x2] sm:$0xff]
      %v715 = vld [vmem:[#allocation2 + $0xa] sm:$0xff]
      %v716 = vld [vmem:[#allocation2 + $0x1a] sm:$0xff]
      %v717 = vld [vmem:[#allocation2 + $0x22] sm:$0xff]
      %v718 = vld [vmem:[#allocation2 + $0x32] sm:$0xff]
      %v719 = vld [vmem:[#allocation2 + $0x3a] sm:$0xff]
      %v720 = vld [vmem:[#allocation2 + $0x4a] sm:$0xff]
      %v721 = vld [vmem:[#allocation2 + $0x52] sm:$0xff]
      %v722 = vld [vmem:[#allocation2 + $0x62] sm:$0xff]
      %v723 = vld [vmem:[#allocation2 + $0x6a] sm:$0xff]
      %v724 = vld [vmem:[#allocation2 + $0x7a] sm:$0xff]
      %v725 = vld [vmem:[#allocation2 + $0x82] sm:$0xff]
      %v726 = vld [vmem:[#allocation2 + $0x92] sm:$0xff]
      %v727 = vld [vmem:[#allocation2 + $0x9a] sm:$0xff]
      %v728 = vld [vmem:[#allocation2 + $0xaa] sm:$0xff]
      %v729 = vld [vmem:[#allocation2 + $0xb2] sm:$0xff]
      %v730 = vld [vmem:[#allocation2 + $0xc2] sm:$0xff]
      %v731 = vld [vmem:[#allocation2 + $0xca] sm:$0xff]
      %v732 = vld [vmem:[#allocation2 + $0xda] sm:$0xff]
      %v733 = vld [vmem:[#allocation2 + $0xe2] sm:$0xff]
      %v734 = vld [vmem:[#allocation2 + $0xf2] sm:$0xff]
      %v735 = vld [vmem:[#allocation2 + $0xfa] sm:$0xff]
      %v736 = vld [vmem:[#allocation2 + $0x10a] sm:$0xff]
      %v737 = vld [vmem:[#allocation2 + $0x112] sm:$0xff]
      %v738 = vld [vmem:[#allocation2 + $0x122] sm:$0xff]
      %v739 = vld [vmem:[#allocation2 + $0x12a] sm:$0xff]
      %v740 = vld [vmem:[#allocation2 + $0x13a] sm:$0xff]
      %v741 = vld [vmem:[#allocation2 + $0x142] sm:$0xff]
      %v742 = vld [vmem:[#allocation2 + $0x152] sm:$0xff]
      %v743 = vld [vmem:[#allocation2 + $0x15a] sm:$0xff]
      %v744 = vld [vmem:[#allocation2 + $0x16a] sm:$0xff]
      %v745 = vld [vmem:[#allocation2 + $0x172] sm:$0xff]
      %v746 = vld [vmem:[#allocation2 + $0x182] sm:$0xff]
      %v747 = vld [vmem:[#allocation2 + $0x18a] sm:$0xff]
      %v748 = vld [vmem:[#allocation2 + $0x19a] sm:$0xff]
      %v749 = vld [vmem:[#allocation2 + $0x1a2] sm:$0xff]
      %s750 = scalar_lea.vmem %s1, 256
      %v751 = vld [vmem:[%s750] sm:$0xff]
      %v752 = vld [vmem:[%s750 + $0x8] sm:$0xff]
      %v753 = vld [vmem:[%s750 + $0x10] sm:$0xff]
      %v754 = vld [vmem:[%s750 + $0x18] sm:$0xff]
      %v755 = vld [vmem:[%s750 + $0x20] sm:$0xff]
      %v756 = vld [vmem:[%s750 + $0x28] sm:$0xff]
      %v757 = vld [vmem:[%s750 + $0x30] sm:$0xff]
      %v758 = vld [vmem:[%s750 + $0x38] sm:$0xff]
      %v759 = vld [vmem:[%s750 + $0x40] sm:$0xff]
      %v760 = vld [vmem:[%s750 + $0x48] sm:$0xff]
      %v761 = vld [vmem:[%s750 + $0x50] sm:$0xff]
      %v762 = vld [vmem:[%s750 + $0x58] sm:$0xff]
      %v763 = vld [vmem:[%s750 + $0x60] sm:$0xff]
      %v764 = vld [vmem:[%s750 + $0x68] sm:$0xff]
      %v765 = vld [vmem:[%s750 + $0x70] sm:$0xff]
      %v766 = vld [vmem:[%s750 + $0x78] sm:$0xff]
      %767 = vmatpush.msra.mxu0 %v766
      %768 = vmatpush.msra.mxu0 %v765
      %769 = vmatpush.msra.mxu0 %v764
      %770 = vmatpush.msra.mxu0 %v763
      %771 = vmatpush.msra.mxu0 %v762
      %772 = vmatpush.msra.mxu0 %v761
      %773 = vmatpush.msra.mxu0 %v760
      %774 = vmatpush.msra.mxu0 %v759
      %775 = vmatpush.msra.mxu0 %v758
      %776 = vmatpush.msra.mxu0 %v757
      %777 = vmatpush.msra.mxu0 %v756
      %778 = vmatpush.msra.mxu0 %v755
      %779 = vmatpush.msra.mxu0 %v754
      %780 = vmatpush.msra.mxu0 %v753
      %781 = vmatpush.msra.mxu0 %v752
      %782 = vmatpush.msra.mxu0 %v751
      %783 = vmatmul.f32.gmra.mxu0 %v714
      %v784 = vpop.f32.mrf.mxu0
      %v785 = vadd.f32 0.0, %v784
      %786 = vmatmul.f32.gmra.mxu0 %v715
      %v787 = vpop.f32.mrf.mxu0
      %v788 = vadd.f32 0.0, %v787
      %789 = vmatmul.f32.gmra.mxu0 %v716
      %v790 = vpop.f32.mrf.mxu0
      %v791 = vadd.f32 0.0, %v790
      %792 = vmatmul.f32.gmra.mxu0 %v717
      %v793 = vpop.f32.mrf.mxu0
      %v794 = vadd.f32 0.0, %v793
      %795 = vmatmul.f32.gmra.mxu0 %v718
      %v796 = vpop.f32.mrf.mxu0
      %v797 = vadd.f32 0.0, %v796
      %798 = vmatmul.f32.gmra.mxu0 %v719
      %v799 = vpop.f32.mrf.mxu0
      %v800 = vadd.f32 0.0, %v799
      %801 = vmatmul.f32.gmra.mxu0 %v720
      %v802 = vpop.f32.mrf.mxu0
      %v803 = vadd.f32 0.0, %v802
      %804 = vmatmul.f32.gmra.mxu0 %v721
      %v805 = vpop.f32.mrf.mxu0
      %v806 = vadd.f32 0.0, %v805
      %807 = vmatmul.f32.gmra.mxu0 %v722
      %v808 = vpop.f32.mrf.mxu0
      %v809 = vadd.f32 0.0, %v808
      %810 = vmatmul.f32.gmra.mxu0 %v723
      %v811 = vpop.f32.mrf.mxu0
      %v812 = vadd.f32 0.0, %v811
      %813 = vmatmul.f32.gmra.mxu0 %v724
      %v814 = vpop.f32.mrf.mxu0
      %v815 = vadd.f32 0.0, %v814
      %816 = vmatmul.f32.gmra.mxu0 %v725
      %v817 = vpop.f32.mrf.mxu0
      %v818 = vadd.f32 0.0, %v817
      %819 = vmatmul.f32.gmra.mxu0 %v726
      %v820 = vpop.f32.mrf.mxu0
      %v821 = vadd.f32 0.0, %v820
      %822 = vmatmul.f32.gmra.mxu0 %v727
      %v823 = vpop.f32.mrf.mxu0
      %v824 = vadd.f32 0.0, %v823
      %825 = vmatmul.f32.gmra.mxu0 %v728
      %v826 = vpop.f32.mrf.mxu0
      %v827 = vadd.f32 0.0, %v826
      %828 = vmatmul.f32.gmra.mxu0 %v729
      %v829 = vpop.f32.mrf.mxu0
      %v830 = vadd.f32 0.0, %v829
      %831 = vmatmul.f32.gmra.mxu0 %v730
      %v832 = vpop.f32.mrf.mxu0
      %v833 = vadd.f32 0.0, %v832
      %834 = vmatmul.f32.gmra.mxu0 %v731
      %v835 = vpop.f32.mrf.mxu0
      %v836 = vadd.f32 0.0, %v835
      %837 = vmatmul.f32.gmra.mxu0 %v732
      %v838 = vpop.f32.mrf.mxu0
      %v839 = vadd.f32 0.0, %v838
      %840 = vmatmul.f32.gmra.mxu0 %v733
      %v841 = vpop.f32.mrf.mxu0
      %v842 = vadd.f32 0.0, %v841
      %843 = vmatmul.f32.gmra.mxu0 %v734
      %v844 = vpop.f32.mrf.mxu0
      %v845 = vadd.f32 0.0, %v844
      %846 = vmatmul.f32.gmra.mxu0 %v735
      %v847 = vpop.f32.mrf.mxu0
      %v848 = vadd.f32 0.0, %v847
      %849 = vmatmul.f32.gmra.mxu0 %v736
      %v850 = vpop.f32.mrf.mxu0
      %v851 = vadd.f32 0.0, %v850
      %852 = vmatmul.f32.gmra.mxu0 %v737
      %v853 = vpop.f32.mrf.mxu0
      %v854 = vadd.f32 0.0, %v853
      %855 = vmatmul.f32.gmra.mxu0 %v738
      %v856 = vpop.f32.mrf.mxu0
      %v857 = vadd.f32 0.0, %v856
      %858 = vmatmul.f32.gmra.mxu0 %v739
      %v859 = vpop.f32.mrf.mxu0
      %v860 = vadd.f32 0.0, %v859
      %861 = vmatmul.f32.gmra.mxu0 %v740
      %v862 = vpop.f32.mrf.mxu0
      %v863 = vadd.f32 0.0, %v862
      %864 = vmatmul.f32.gmra.mxu0 %v741
      %v865 = vpop.f32.mrf.mxu0
      %v866 = vadd.f32 0.0, %v865
      %867 = vmatmul.f32.gmra.mxu0 %v742
      %v868 = vpop.f32.mrf.mxu0
      %v869 = vadd.f32 0.0, %v868
      %870 = vmatmul.f32.gmra.mxu0 %v743
      %v871 = vpop.f32.mrf.mxu0
      %v872 = vadd.f32 0.0, %v871
      %873 = vmatmul.f32.gmra.mxu0 %v744
      %v874 = vpop.f32.mrf.mxu0
      %v875 = vadd.f32 0.0, %v874
      %876 = vmatmul.f32.gmra.mxu0 %v745
      %v877 = vpop.f32.mrf.mxu0
      %v878 = vadd.f32 0.0, %v877
      %879 = vmatmul.f32.gmra.mxu0 %v746
      %v880 = vpop.f32.mrf.mxu0
      %v881 = vadd.f32 0.0, %v880
      %882 = vmatmul.f32.gmra.mxu0 %v747
      %v883 = vpop.f32.mrf.mxu0
      %v884 = vadd.f32 0.0, %v883
      %885 = vmatmul.f32.gmra.mxu0 %v748
      %v886 = vpop.f32.mrf.mxu0
      %v887 = vadd.f32 0.0, %v886
      %888 = vmatmul.f32.gmra.mxu0 %v749
      %v889 = vpop.f32.mrf.mxu0
      %v890 = vadd.f32 0.0, %v889
      %891 = vdwg.mxu0
      %v892 = vadd.f32 %v607, %v785
      %v893 = vadd.f32 %v610, %v788
      %v894 = vadd.f32 %v613, %v791
      %v895 = vadd.f32 %v616, %v794
      %v896 = vadd.f32 %v619, %v797
      %v897 = vadd.f32 %v622, %v800
      %v898 = vadd.f32 %v625, %v803
      %v899 = vadd.f32 %v628, %v806
      %v900 = vadd.f32 %v631, %v809
      %v901 = vadd.f32 %v634, %v812
      %v902 = vadd.f32 %v637, %v815
      %v903 = vadd.f32 %v640, %v818
      %v904 = vadd.f32 %v643, %v821
      %v905 = vadd.f32 %v646, %v824
      %v906 = vadd.f32 %v649, %v827
      %v907 = vadd.f32 %v652, %v830
      %v908 = vadd.f32 %v655, %v833
      %v909 = vadd.f32 %v658, %v836
      %v910 = vadd.f32 %v661, %v839
      %v911 = vadd.f32 %v664, %v842
      %v912 = vadd.f32 %v667, %v845
      %v913 = vadd.f32 %v670, %v848
      %v914 = vadd.f32 %v673, %v851
      %v915 = vadd.f32 %v676, %v854
      %v916 = vadd.f32 %v679, %v857
      %v917 = vadd.f32 %v682, %v860
      %v918 = vadd.f32 %v685, %v863
      %v919 = vadd.f32 %v688, %v866
      %v920 = vadd.f32 %v691, %v869
      %v921 = vadd.f32 %v694, %v872
      %v922 = vadd.f32 %v697, %v875
      %v923 = vadd.f32 %v700, %v878
      %v924 = vadd.f32 %v703, %v881
      %v925 = vadd.f32 %v706, %v884
      %v926 = vadd.f32 %v709, %v887
      %v927 = vadd.f32 %v712, %v890
      %s928 = scalar_lea.vmem [#allocation2], 24
      %v929 = vld [vmem:[%s928] sm:$0xff]
      %v930 = vld [vmem:[%s928 + $0x8] sm:$0xff]
      %v931 = vld [vmem:[%s928 + $0x18] sm:$0xff]
      %v932 = vld [vmem:[%s928 + $0x20] sm:$0xff]
      %v933 = vld [vmem:[%s928 + $0x30] sm:$0xff]
      %v934 = vld [vmem:[%s928 + $0x38] sm:$0xff]
      %v935 = vld [vmem:[%s928 + $0x48] sm:$0xff]
      %v936 = vld [vmem:[%s928 + $0x50] sm:$0xff]
      %v937 = vld [vmem:[%s928 + $0x60] sm:$0xff]
      %v938 = vld [vmem:[%s928 + $0x68] sm:$0xff]
      %v939 = vld [vmem:[%s928 + $0x78] sm:$0xff]
      %v940 = vld [vmem:[%s928 + $0x80] sm:$0xff]
      %v941 = vld [vmem:[%s928 + $0x90] sm:$0xff]
      %v942 = vld [vmem:[%s928 + $0x98] sm:$0xff]
      %v943 = vld [vmem:[%s928 + $0xa8] sm:$0xff]
      %v944 = vld [vmem:[%s928 + $0xb0] sm:$0xff]
      %v945 = vld [vmem:[%s928 + $0xc0] sm:$0xff]
      %v946 = vld [vmem:[%s928 + $0xc8] sm:$0xff]
      %v947 = vld [vmem:[%s928 + $0xd8] sm:$0xff]
      %v948 = vld [vmem:[%s928 + $0xe0] sm:$0xff]
      %v949 = vld [vmem:[%s928 + $0xf0] sm:$0xff]
      %v950 = vld [vmem:[%s928 + $0xf8] sm:$0xff]
      %v951 = vld [vmem:[%s928 + $0x108] sm:$0xff]
      %v952 = vld [vmem:[%s928 + $0x110] sm:$0xff]
      %v953 = vld [vmem:[%s928 + $0x120] sm:$0xff]
      %v954 = vld [vmem:[%s928 + $0x128] sm:$0xff]
      %v955 = vld [vmem:[%s928 + $0x138] sm:$0xff]
      %v956 = vld [vmem:[%s928 + $0x140] sm:$0xff]
      %v957 = vld [vmem:[%s928 + $0x150] sm:$0xff]
      %v958 = vld [vmem:[%s928 + $0x158] sm:$0xff]
      %v959 = vld [vmem:[%s928 + $0x168] sm:$0xff]
      %v960 = vld [vmem:[%s928 + $0x170] sm:$0xff]
      %v961 = vld [vmem:[%s928 + $0x180] sm:$0xff]
      %v962 = vld [vmem:[%s928 + $0x188] sm:$0xff]
      %v963 = vld [vmem:[%s928 + $0x198] sm:$0xff]
      %v964 = vld [vmem:[%s928 + $0x1a0] sm:$0xff]
      %s965 = scalar_lea.vmem %s1, 384
      %v966 = vld [vmem:[%s965] sm:$0xff]
      %v967 = vld [vmem:[%s965 + $0x8] sm:$0xff]
      %v968 = vld [vmem:[%s965 + $0x10] sm:$0xff]
      %v969 = vld [vmem:[%s965 + $0x18] sm:$0xff]
      %v970 = vld [vmem:[%s965 + $0x20] sm:$0xff]
      %v971 = vld [vmem:[%s965 + $0x28] sm:$0xff]
      %v972 = vld [vmem:[%s965 + $0x30] sm:$0xff]
      %v973 = vld [vmem:[%s965 + $0x38] sm:$0xff]
      %v974 = vld [vmem:[%s965 + $0x40] sm:$0xff]
      %v975 = vld [vmem:[%s965 + $0x48] sm:$0xff]
      %v976 = vld [vmem:[%s965 + $0x50] sm:$0xff]
      %v977 = vld [vmem:[%s965 + $0x58] sm:$0xff]
      %v978 = vld [vmem:[%s965 + $0x60] sm:$0xff]
      %v979 = vld [vmem:[%s965 + $0x68] sm:$0xff]
      %v980 = vld [vmem:[%s965 + $0x70] sm:$0xff]
      %v981 = vld [vmem:[%s965 + $0x78] sm:$0xff]
      %982 = vmatpush.msra.mxu0 %v981
      %983 = vmatpush.msra.mxu0 %v980
      %984 = vmatpush.msra.mxu0 %v979
      %985 = vmatpush.msra.mxu0 %v978
      %986 = vmatpush.msra.mxu0 %v977
      %987 = vmatpush.msra.mxu0 %v976
      %988 = vmatpush.msra.mxu0 %v975
      %989 = vmatpush.msra.mxu0 %v974
      %990 = vmatpush.msra.mxu0 %v973
      %991 = vmatpush.msra.mxu0 %v972
      %992 = vmatpush.msra.mxu0 %v971
      %993 = vmatpush.msra.mxu0 %v970
      %994 = vmatpush.msra.mxu0 %v969
      %995 = vmatpush.msra.mxu0 %v968
      %996 = vmatpush.msra.mxu0 %v967
      %997 = vmatpush.msra.mxu0 %v966
      %998 = vmatmul.f32.gmra.mxu0 %v929
      %v999 = vpop.f32.mrf.mxu0
      %v1000 = vadd.f32 0.0, %v999
      %1001 = vmatmul.f32.gmra.mxu0 %v930
      %v1002 = vpop.f32.mrf.mxu0
      %v1003 = vadd.f32 0.0, %v1002
      %1004 = vmatmul.f32.gmra.mxu0 %v931
      %v1005 = vpop.f32.mrf.mxu0
      %v1006 = vadd.f32 0.0, %v1005
      %1007 = vmatmul.f32.gmra.mxu0 %v932
      %v1008 = vpop.f32.mrf.mxu0
      %v1009 = vadd.f32 0.0, %v1008
      %1010 = vmatmul.f32.gmra.mxu0 %v933
      %v1011 = vpop.f32.mrf.mxu0
      %v1012 = vadd.f32 0.0, %v1011
      %1013 = vmatmul.f32.gmra.mxu0 %v934
      %v1014 = vpop.f32.mrf.mxu0
      %v1015 = vadd.f32 0.0, %v1014
      %1016 = vmatmul.f32.gmra.mxu0 %v935
      %v1017 = vpop.f32.mrf.mxu0
      %v1018 = vadd.f32 0.0, %v1017
      %1019 = vmatmul.f32.gmra.mxu0 %v936
      %v1020 = vpop.f32.mrf.mxu0
      %v1021 = vadd.f32 0.0, %v1020
      %1022 = vmatmul.f32.gmra.mxu0 %v937
      %v1023 = vpop.f32.mrf.mxu0
      %v1024 = vadd.f32 0.0, %v1023
      %1025 = vmatmul.f32.gmra.mxu0 %v938
      %v1026 = vpop.f32.mrf.mxu0
      %v1027 = vadd.f32 0.0, %v1026
      %1028 = vmatmul.f32.gmra.mxu0 %v939
      %v1029 = vpop.f32.mrf.mxu0
      %v1030 = vadd.f32 0.0, %v1029
      %1031 = vmatmul.f32.gmra.mxu0 %v940
      %v1032 = vpop.f32.mrf.mxu0
      %v1033 = vadd.f32 0.0, %v1032
      %1034 = vmatmul.f32.gmra.mxu0 %v941
      %v1035 = vpop.f32.mrf.mxu0
      %v1036 = vadd.f32 0.0, %v1035
      %1037 = vmatmul.f32.gmra.mxu0 %v942
      %v1038 = vpop.f32.mrf.mxu0
      %v1039 = vadd.f32 0.0, %v1038
      %1040 = vmatmul.f32.gmra.mxu0 %v943
      %v1041 = vpop.f32.mrf.mxu0
      %v1042 = vadd.f32 0.0, %v1041
      %1043 = vmatmul.f32.gmra.mxu0 %v944
      %v1044 = vpop.f32.mrf.mxu0
      %v1045 = vadd.f32 0.0, %v1044
      %1046 = vmatmul.f32.gmra.mxu0 %v945
      %v1047 = vpop.f32.mrf.mxu0
      %v1048 = vadd.f32 0.0, %v1047
      %1049 = vmatmul.f32.gmra.mxu0 %v946
      %v1050 = vpop.f32.mrf.mxu0
      %v1051 = vadd.f32 0.0, %v1050
      %1052 = vmatmul.f32.gmra.mxu0 %v947
      %v1053 = vpop.f32.mrf.mxu0
      %v1054 = vadd.f32 0.0, %v1053
      %1055 = vmatmul.f32.gmra.mxu0 %v948
      %v1056 = vpop.f32.mrf.mxu0
      %v1057 = vadd.f32 0.0, %v1056
      %1058 = vmatmul.f32.gmra.mxu0 %v949
      %v1059 = vpop.f32.mrf.mxu0
      %v1060 = vadd.f32 0.0, %v1059
      %1061 = vmatmul.f32.gmra.mxu0 %v950
      %v1062 = vpop.f32.mrf.mxu0
      %v1063 = vadd.f32 0.0, %v1062
      %1064 = vmatmul.f32.gmra.mxu0 %v951
      %v1065 = vpop.f32.mrf.mxu0
      %v1066 = vadd.f32 0.0, %v1065
      %1067 = vmatmul.f32.gmra.mxu0 %v952
      %v1068 = vpop.f32.mrf.mxu0
      %v1069 = vadd.f32 0.0, %v1068
      %1070 = vmatmul.f32.gmra.mxu0 %v953
      %v1071 = vpop.f32.mrf.mxu0
      %v1072 = vadd.f32 0.0, %v1071
      %1073 = vmatmul.f32.gmra.mxu0 %v954
      %v1074 = vpop.f32.mrf.mxu0
      %v1075 = vadd.f32 0.0, %v1074
      %1076 = vmatmul.f32.gmra.mxu0 %v955
      %v1077 = vpop.f32.mrf.mxu0
      %v1078 = vadd.f32 0.0, %v1077
      %1079 = vmatmul.f32.gmra.mxu0 %v956
      %v1080 = vpop.f32.mrf.mxu0
      %v1081 = vadd.f32 0.0, %v1080
      %1082 = vmatmul.f32.gmra.mxu0 %v957
      %v1083 = vpop.f32.mrf.mxu0
      %v1084 = vadd.f32 0.0, %v1083
      %1085 = vmatmul.f32.gmra.mxu0 %v958
      %v1086 = vpop.f32.mrf.mxu0
      %v1087 = vadd.f32 0.0, %v1086
      %1088 = vmatmul.f32.gmra.mxu0 %v959
      %v1089 = vpop.f32.mrf.mxu0
      %v1090 = vadd.f32 0.0, %v1089
      %1091 = vmatmul.f32.gmra.mxu0 %v960
      %v1092 = vpop.f32.mrf.mxu0
      %v1093 = vadd.f32 0.0, %v1092
      %1094 = vmatmul.f32.gmra.mxu0 %v961
      %v1095 = vpop.f32.mrf.mxu0
      %v1096 = vadd.f32 0.0, %v1095
      %1097 = vmatmul.f32.gmra.mxu0 %v962
      %v1098 = vpop.f32.mrf.mxu0
      %v1099 = vadd.f32 0.0, %v1098
      %1100 = vmatmul.f32.gmra.mxu0 %v963
      %v1101 = vpop.f32.mrf.mxu0
      %v1102 = vadd.f32 0.0, %v1101
      %1103 = vmatmul.f32.gmra.mxu0 %v964
      %v1104 = vpop.f32.mrf.mxu0
      %v1105 = vadd.f32 0.0, %v1104
      %1106 = vdwg.mxu0
      %v1107 = vadd.f32 %v892, %v1000
      %v1108 = vadd.f32 %v893, %v1003
      %v1109 = vadd.f32 %v894, %v1006
      %v1110 = vadd.f32 %v895, %v1009
      %v1111 = vadd.f32 %v896, %v1012
      %v1112 = vadd.f32 %v897, %v1015
      %v1113 = vadd.f32 %v898, %v1018
      %v1114 = vadd.f32 %v899, %v1021
      %v1115 = vadd.f32 %v900, %v1024
      %v1116 = vadd.f32 %v901, %v1027
      %v1117 = vadd.f32 %v902, %v1030
      %v1118 = vadd.f32 %v903, %v1033
      %v1119 = vadd.f32 %v904, %v1036
      %v1120 = vadd.f32 %v905, %v1039
      %v1121 = vadd.f32 %v906, %v1042
      %v1122 = vadd.f32 %v907, %v1045
      %v1123 = vadd.f32 %v908, %v1048
      %v1124 = vadd.f32 %v909, %v1051
      %v1125 = vadd.f32 %v910, %v1054
      %v1126 = vadd.f32 %v911, %v1057
      %v1127 = vadd.f32 %v912, %v1060
      %v1128 = vadd.f32 %v913, %v1063
      %v1129 = vadd.f32 %v914, %v1066
      %v1130 = vadd.f32 %v915, %v1069
      %v1131 = vadd.f32 %v916, %v1072
      %v1132 = vadd.f32 %v917, %v1075
      %v1133 = vadd.f32 %v918, %v1078
      %v1134 = vadd.f32 %v919, %v1081
      %v1135 = vadd.f32 %v920, %v1084
      %v1136 = vadd.f32 %v921, %v1087
      %v1137 = vadd.f32 %v922, %v1090
      %v1138 = vadd.f32 %v923, %v1093
      %v1139 = vadd.f32 %v924, %v1096
      %v1140 = vadd.f32 %v925, %v1099
      %v1141 = vadd.f32 %v926, %v1102
      %v1142 = vadd.f32 %v927, %v1105
      %v1143 = vld [vmem:[%s928 + $0x1] sm:$0xff]
      %v1144 = vld [vmem:[%s928 + $0x9] sm:$0xff]
      %v1145 = vld [vmem:[%s928 + $0x19] sm:$0xff]
      %v1146 = vld [vmem:[%s928 + $0x21] sm:$0xff]
      %v1147 = vld [vmem:[%s928 + $0x31] sm:$0xff]
      %v1148 = vld [vmem:[%s928 + $0x39] sm:$0xff]
      %v1149 = vld [vmem:[%s928 + $0x49] sm:$0xff]
      %v1150 = vld [vmem:[%s928 + $0x51] sm:$0xff]
      %v1151 = vld [vmem:[%s928 + $0x61] sm:$0xff]
      %v1152 = vld [vmem:[%s928 + $0x69] sm:$0xff]
      %v1153 = vld [vmem:[%s928 + $0x79] sm:$0xff]
      %v1154 = vld [vmem:[%s928 + $0x81] sm:$0xff]
      %v1155 = vld [vmem:[%s928 + $0x91] sm:$0xff]
      %v1156 = vld [vmem:[%s928 + $0x99] sm:$0xff]
      %v1157 = vld [vmem:[%s928 + $0xa9] sm:$0xff]
      %v1158 = vld [vmem:[%s928 + $0xb1] sm:$0xff]
      %v1159 = vld [vmem:[%s928 + $0xc1] sm:$0xff]
      %v1160 = vld [vmem:[%s928 + $0xc9] sm:$0xff]
      %v1161 = vld [vmem:[%s928 + $0xd9] sm:$0xff]
      %v1162 = vld [vmem:[%s928 + $0xe1] sm:$0xff]
      %v1163 = vld [vmem:[%s928 + $0xf1] sm:$0xff]
      %v1164 = vld [vmem:[%s928 + $0xf9] sm:$0xff]
      %v1165 = vld [vmem:[%s928 + $0x109] sm:$0xff]
      %v1166 = vld [vmem:[%s928 + $0x111] sm:$0xff]
      %v1167 = vld [vmem:[%s928 + $0x121] sm:$0xff]
      %v1168 = vld [vmem:[%s928 + $0x129] sm:$0xff]
      %v1169 = vld [vmem:[%s928 + $0x139] sm:$0xff]
      %v1170 = vld [vmem:[%s928 + $0x141] sm:$0xff]
      %v1171 = vld [vmem:[%s928 + $0x151] sm:$0xff]
      %v1172 = vld [vmem:[%s928 + $0x159] sm:$0xff]
      %v1173 = vld [vmem:[%s928 + $0x169] sm:$0xff]
      %v1174 = vld [vmem:[%s928 + $0x171] sm:$0xff]
      %v1175 = vld [vmem:[%s928 + $0x181] sm:$0xff]
      %v1176 = vld [vmem:[%s928 + $0x189] sm:$0xff]
      %v1177 = vld [vmem:[%s928 + $0x199] sm:$0xff]
      %v1178 = vld [vmem:[%s928 + $0x1a1] sm:$0xff]
      %s1179 = scalar_lea.vmem %s1, 512
      %v1180 = vld [vmem:[%s1179] sm:$0xff]
      %v1181 = vld [vmem:[%s1179 + $0x8] sm:$0xff]
      %v1182 = vld [vmem:[%s1179 + $0x10] sm:$0xff]
      %v1183 = vld [vmem:[%s1179 + $0x18] sm:$0xff]
      %v1184 = vld [vmem:[%s1179 + $0x20] sm:$0xff]
      %v1185 = vld [vmem:[%s1179 + $0x28] sm:$0xff]
      %v1186 = vld [vmem:[%s1179 + $0x30] sm:$0xff]
      %v1187 = vld [vmem:[%s1179 + $0x38] sm:$0xff]
      %v1188 = vld [vmem:[%s1179 + $0x40] sm:$0xff]
      %v1189 = vld [vmem:[%s1179 + $0x48] sm:$0xff]
      %v1190 = vld [vmem:[%s1179 + $0x50] sm:$0xff]
      %v1191 = vld [vmem:[%s1179 + $0x58] sm:$0xff]
      %v1192 = vld [vmem:[%s1179 + $0x60] sm:$0xff]
      %v1193 = vld [vmem:[%s1179 + $0x68] sm:$0xff]
      %v1194 = vld [vmem:[%s1179 + $0x70] sm:$0xff]
      %v1195 = vld [vmem:[%s1179 + $0x78] sm:$0xff]
      %1196 = vmatpush.msra.mxu0 %v1195
      %1197 = vmatpush.msra.mxu0 %v1194
      %1198 = vmatpush.msra.mxu0 %v1193
      %1199 = vmatpush.msra.mxu0 %v1192
      %1200 = vmatpush.msra.mxu0 %v1191
      %1201 = vmatpush.msra.mxu0 %v1190
      %1202 = vmatpush.msra.mxu0 %v1189
      %1203 = vmatpush.msra.mxu0 %v1188
      %1204 = vmatpush.msra.mxu0 %v1187
      %1205 = vmatpush.msra.mxu0 %v1186
      %1206 = vmatpush.msra.mxu0 %v1185
      %1207 = vmatpush.msra.mxu0 %v1184
      %1208 = vmatpush.msra.mxu0 %v1183
      %1209 = vmatpush.msra.mxu0 %v1182
      %1210 = vmatpush.msra.mxu0 %v1181
      %1211 = vmatpush.msra.mxu0 %v1180
      %1212 = vmatmul.f32.gmra.mxu0 %v1143
      %v1213 = vpop.f32.mrf.mxu0
      %v1214 = vadd.f32 0.0, %v1213
      %1215 = vmatmul.f32.gmra.mxu0 %v1144
      %v1216 = vpop.f32.mrf.mxu0
      %v1217 = vadd.f32 0.0, %v1216
      %1218 = vmatmul.f32.gmra.mxu0 %v1145
      %v1219 = vpop.f32.mrf.mxu0
      %v1220 = vadd.f32 0.0, %v1219
      %1221 = vmatmul.f32.gmra.mxu0 %v1146
      %v1222 = vpop.f32.mrf.mxu0
      %v1223 = vadd.f32 0.0, %v1222
      %1224 = vmatmul.f32.gmra.mxu0 %v1147
      %v1225 = vpop.f32.mrf.mxu0
      %v1226 = vadd.f32 0.0, %v1225
      %1227 = vmatmul.f32.gmra.mxu0 %v1148
      %v1228 = vpop.f32.mrf.mxu0
      %v1229 = vadd.f32 0.0, %v1228
      %1230 = vmatmul.f32.gmra.mxu0 %v1149
      %v1231 = vpop.f32.mrf.mxu0
      %v1232 = vadd.f32 0.0, %v1231
      %1233 = vmatmul.f32.gmra.mxu0 %v1150
      %v1234 = vpop.f32.mrf.mxu0
      %v1235 = vadd.f32 0.0, %v1234
      %1236 = vmatmul.f32.gmra.mxu0 %v1151
      %v1237 = vpop.f32.mrf.mxu0
      %v1238 = vadd.f32 0.0, %v1237
      %1239 = vmatmul.f32.gmra.mxu0 %v1152
      %v1240 = vpop.f32.mrf.mxu0
      %v1241 = vadd.f32 0.0, %v1240
      %1242 = vmatmul.f32.gmra.mxu0 %v1153
      %v1243 = vpop.f32.mrf.mxu0
      %v1244 = vadd.f32 0.0, %v1243
      %1245 = vmatmul.f32.gmra.mxu0 %v1154
      %v1246 = vpop.f32.mrf.mxu0
      %v1247 = vadd.f32 0.0, %v1246
      %1248 = vmatmul.f32.gmra.mxu0 %v1155
      %v1249 = vpop.f32.mrf.mxu0
      %v1250 = vadd.f32 0.0, %v1249
      %1251 = vmatmul.f32.gmra.mxu0 %v1156
      %v1252 = vpop.f32.mrf.mxu0
      %v1253 = vadd.f32 0.0, %v1252
      %1254 = vmatmul.f32.gmra.mxu0 %v1157
      %v1255 = vpop.f32.mrf.mxu0
      %v1256 = vadd.f32 0.0, %v1255
      %1257 = vmatmul.f32.gmra.mxu0 %v1158
      %v1258 = vpop.f32.mrf.mxu0
      %v1259 = vadd.f32 0.0, %v1258
      %1260 = vmatmul.f32.gmra.mxu0 %v1159
      %v1261 = vpop.f32.mrf.mxu0
      %v1262 = vadd.f32 0.0, %v1261
      %1263 = vmatmul.f32.gmra.mxu0 %v1160
      %v1264 = vpop.f32.mrf.mxu0
      %v1265 = vadd.f32 0.0, %v1264
      %1266 = vmatmul.f32.gmra.mxu0 %v1161
      %v1267 = vpop.f32.mrf.mxu0
      %v1268 = vadd.f32 0.0, %v1267
      %1269 = vmatmul.f32.gmra.mxu0 %v1162
      %v1270 = vpop.f32.mrf.mxu0
      %v1271 = vadd.f32 0.0, %v1270
      %1272 = vmatmul.f32.gmra.mxu0 %v1163
      %v1273 = vpop.f32.mrf.mxu0
      %v1274 = vadd.f32 0.0, %v1273
      %1275 = vmatmul.f32.gmra.mxu0 %v1164
      %v1276 = vpop.f32.mrf.mxu0
      %v1277 = vadd.f32 0.0, %v1276
      %1278 = vmatmul.f32.gmra.mxu0 %v1165
      %v1279 = vpop.f32.mrf.mxu0
      %v1280 = vadd.f32 0.0, %v1279
      %1281 = vmatmul.f32.gmra.mxu0 %v1166
      %v1282 = vpop.f32.mrf.mxu0
      %v1283 = vadd.f32 0.0, %v1282
      %1284 = vmatmul.f32.gmra.mxu0 %v1167
      %v1285 = vpop.f32.mrf.mxu0
      %v1286 = vadd.f32 0.0, %v1285
      %1287 = vmatmul.f32.gmra.mxu0 %v1168
      %v1288 = vpop.f32.mrf.mxu0
      %v1289 = vadd.f32 0.0, %v1288
      %1290 = vmatmul.f32.gmra.mxu0 %v1169
      %v1291 = vpop.f32.mrf.mxu0
      %v1292 = vadd.f32 0.0, %v1291
      %1293 = vmatmul.f32.gmra.mxu0 %v1170
      %v1294 = vpop.f32.mrf.mxu0
      %v1295 = vadd.f32 0.0, %v1294
      %1296 = vmatmul.f32.gmra.mxu0 %v1171
      %v1297 = vpop.f32.mrf.mxu0
      %v1298 = vadd.f32 0.0, %v1297
      %1299 = vmatmul.f32.gmra.mxu0 %v1172
      %v1300 = vpop.f32.mrf.mxu0
      %v1301 = vadd.f32 0.0, %v1300
      %1302 = vmatmul.f32.gmra.mxu0 %v1173
      %v1303 = vpop.f32.mrf.mxu0
      %v1304 = vadd.f32 0.0, %v1303
      %1305 = vmatmul.f32.gmra.mxu0 %v1174
      %v1306 = vpop.f32.mrf.mxu0
      %v1307 = vadd.f32 0.0, %v1306
      %1308 = vmatmul.f32.gmra.mxu0 %v1175
      %v1309 = vpop.f32.mrf.mxu0
      %v1310 = vadd.f32 0.0, %v1309
      %1311 = vmatmul.f32.gmra.mxu0 %v1176
      %v1312 = vpop.f32.mrf.mxu0
      %v1313 = vadd.f32 0.0, %v1312
      %1314 = vmatmul.f32.gmra.mxu0 %v1177
      %v1315 = vpop.f32.mrf.mxu0
      %v1316 = vadd.f32 0.0, %v1315
      %1317 = vmatmul.f32.gmra.mxu0 %v1178
      %v1318 = vpop.f32.mrf.mxu0
      %v1319 = vadd.f32 0.0, %v1318
      %1320 = vdwg.mxu0
      %v1321 = vadd.f32 %v1107, %v1214
      %v1322 = vadd.f32 %v1108, %v1217
      %v1323 = vadd.f32 %v1109, %v1220
      %v1324 = vadd.f32 %v1110, %v1223
      %v1325 = vadd.f32 %v1111, %v1226
      %v1326 = vadd.f32 %v1112, %v1229
      %v1327 = vadd.f32 %v1113, %v1232
      %v1328 = vadd.f32 %v1114, %v1235
      %v1329 = vadd.f32 %v1115, %v1238
      %v1330 = vadd.f32 %v1116, %v1241
      %v1331 = vadd.f32 %v1117, %v1244
      %v1332 = vadd.f32 %v1118, %v1247
      %v1333 = vadd.f32 %v1119, %v1250
      %v1334 = vadd.f32 %v1120, %v1253
      %v1335 = vadd.f32 %v1121, %v1256
      %v1336 = vadd.f32 %v1122, %v1259
      %v1337 = vadd.f32 %v1123, %v1262
      %v1338 = vadd.f32 %v1124, %v1265
      %v1339 = vadd.f32 %v1125, %v1268
      %v1340 = vadd.f32 %v1126, %v1271
      %v1341 = vadd.f32 %v1127, %v1274
      %v1342 = vadd.f32 %v1128, %v1277
      %v1343 = vadd.f32 %v1129, %v1280
      %v1344 = vadd.f32 %v1130, %v1283
      %v1345 = vadd.f32 %v1131, %v1286
      %v1346 = vadd.f32 %v1132, %v1289
      %v1347 = vadd.f32 %v1133, %v1292
      %v1348 = vadd.f32 %v1134, %v1295
      %v1349 = vadd.f32 %v1135, %v1298
      %v1350 = vadd.f32 %v1136, %v1301
      %v1351 = vadd.f32 %v1137, %v1304
      %v1352 = vadd.f32 %v1138, %v1307
      %v1353 = vadd.f32 %v1139, %v1310
      %v1354 = vadd.f32 %v1140, %v1313
      %v1355 = vadd.f32 %v1141, %v1316
      %v1356 = vadd.f32 %v1142, %v1319
      %v1357 = vld [vmem:[%s928 + $0x2] sm:$0xff]
      %v1358 = vld [vmem:[%s928 + $0xa] sm:$0xff]
      %v1359 = vld [vmem:[%s928 + $0x1a] sm:$0xff]
      %v1360 = vld [vmem:[%s928 + $0x22] sm:$0xff]
      %v1361 = vld [vmem:[%s928 + $0x32] sm:$0xff]
      %v1362 = vld [vmem:[%s928 + $0x3a] sm:$0xff]
      %v1363 = vld [vmem:[%s928 + $0x4a] sm:$0xff]
      %v1364 = vld [vmem:[%s928 + $0x52] sm:$0xff]
      %v1365 = vld [vmem:[%s928 + $0x62] sm:$0xff]
      %v1366 = vld [vmem:[%s928 + $0x6a] sm:$0xff]
      %v1367 = vld [vmem:[%s928 + $0x7a] sm:$0xff]
      %v1368 = vld [vmem:[%s928 + $0x82] sm:$0xff]
      %v1369 = vld [vmem:[%s928 + $0x92] sm:$0xff]
      %v1370 = vld [vmem:[%s928 + $0x9a] sm:$0xff]
      %v1371 = vld [vmem:[%s928 + $0xaa] sm:$0xff]
      %v1372 = vld [vmem:[%s928 + $0xb2] sm:$0xff]
      %v1373 = vld [vmem:[%s928 + $0xc2] sm:$0xff]
      %v1374 = vld [vmem:[%s928 + $0xca] sm:$0xff]
      %v1375 = vld [vmem:[%s928 + $0xda] sm:$0xff]
      %v1376 = vld [vmem:[%s928 + $0xe2] sm:$0xff]
      %v1377 = vld [vmem:[%s928 + $0xf2] sm:$0xff]
      %v1378 = vld [vmem:[%s928 + $0xfa] sm:$0xff]
      %v1379 = vld [vmem:[%s928 + $0x10a] sm:$0xff]
      %v1380 = vld [vmem:[%s928 + $0x112] sm:$0xff]
      %v1381 = vld [vmem:[%s928 + $0x122] sm:$0xff]
      %v1382 = vld [vmem:[%s928 + $0x12a] sm:$0xff]
      %v1383 = vld [vmem:[%s928 + $0x13a] sm:$0xff]
      %v1384 = vld [vmem:[%s928 + $0x142] sm:$0xff]
      %v1385 = vld [vmem:[%s928 + $0x152] sm:$0xff]
      %v1386 = vld [vmem:[%s928 + $0x15a] sm:$0xff]
      %v1387 = vld [vmem:[%s928 + $0x16a] sm:$0xff]
      %v1388 = vld [vmem:[%s928 + $0x172] sm:$0xff]
      %v1389 = vld [vmem:[%s928 + $0x182] sm:$0xff]
      %v1390 = vld [vmem:[%s928 + $0x18a] sm:$0xff]
      %v1391 = vld [vmem:[%s928 + $0x19a] sm:$0xff]
      %v1392 = vld [vmem:[%s928 + $0x1a2] sm:$0xff]
      %s1393 = scalar_lea.vmem %s1, 640
      %v1394 = vld [vmem:[%s1393] sm:$0xff]
      %v1395 = vld [vmem:[%s1393 + $0x8] sm:$0xff]
      %v1396 = vld [vmem:[%s1393 + $0x10] sm:$0xff]
      %v1397 = vld [vmem:[%s1393 + $0x18] sm:$0xff]
      %v1398 = vld [vmem:[%s1393 + $0x20] sm:$0xff]
      %v1399 = vld [vmem:[%s1393 + $0x28] sm:$0xff]
      %v1400 = vld [vmem:[%s1393 + $0x30] sm:$0xff]
      %v1401 = vld [vmem:[%s1393 + $0x38] sm:$0xff]
      %v1402 = vld [vmem:[%s1393 + $0x40] sm:$0xff]
      %v1403 = vld [vmem:[%s1393 + $0x48] sm:$0xff]
      %v1404 = vld [vmem:[%s1393 + $0x50] sm:$0xff]
      %v1405 = vld [vmem:[%s1393 + $0x58] sm:$0xff]
      %v1406 = vld [vmem:[%s1393 + $0x60] sm:$0xff]
      %v1407 = vld [vmem:[%s1393 + $0x68] sm:$0xff]
      %v1408 = vld [vmem:[%s1393 + $0x70] sm:$0xff]
      %v1409 = vld [vmem:[%s1393 + $0x78] sm:$0xff]
      %1410 = vmatpush.msra.mxu0 %v1409
      %1411 = vmatpush.msra.mxu0 %v1408
      %1412 = vmatpush.msra.mxu0 %v1407
      %1413 = vmatpush.msra.mxu0 %v1406
      %1414 = vmatpush.msra.mxu0 %v1405
      %1415 = vmatpush.msra.mxu0 %v1404
      %1416 = vmatpush.msra.mxu0 %v1403
      %1417 = vmatpush.msra.mxu0 %v1402
      %1418 = vmatpush.msra.mxu0 %v1401
      %1419 = vmatpush.msra.mxu0 %v1400
      %1420 = vmatpush.msra.mxu0 %v1399
      %1421 = vmatpush.msra.mxu0 %v1398
      %1422 = vmatpush.msra.mxu0 %v1397
      %1423 = vmatpush.msra.mxu0 %v1396
      %1424 = vmatpush.msra.mxu0 %v1395
      %1425 = vmatpush.msra.mxu0 %v1394
      %1426 = vmatmul.f32.gmra.mxu0 %v1357
      %v1427 = vpop.f32.mrf.mxu0
      %v1428 = vadd.f32 0.0, %v1427
      %1429 = vmatmul.f32.gmra.mxu0 %v1358
      %v1430 = vpop.f32.mrf.mxu0
      %v1431 = vadd.f32 0.0, %v1430
      %1432 = vmatmul.f32.gmra.mxu0 %v1359
      %v1433 = vpop.f32.mrf.mxu0
      %v1434 = vadd.f32 0.0, %v1433
      %1435 = vmatmul.f32.gmra.mxu0 %v1360
      %v1436 = vpop.f32.mrf.mxu0
      %v1437 = vadd.f32 0.0, %v1436
      %1438 = vmatmul.f32.gmra.mxu0 %v1361
      %v1439 = vpop.f32.mrf.mxu0
      %v1440 = vadd.f32 0.0, %v1439
      %1441 = vmatmul.f32.gmra.mxu0 %v1362
      %v1442 = vpop.f32.mrf.mxu0
      %v1443 = vadd.f32 0.0, %v1442
      %1444 = vmatmul.f32.gmra.mxu0 %v1363
      %v1445 = vpop.f32.mrf.mxu0
      %v1446 = vadd.f32 0.0, %v1445
      %1447 = vmatmul.f32.gmra.mxu0 %v1364
      %v1448 = vpop.f32.mrf.mxu0
      %v1449 = vadd.f32 0.0, %v1448
      %1450 = vmatmul.f32.gmra.mxu0 %v1365
      %v1451 = vpop.f32.mrf.mxu0
      %v1452 = vadd.f32 0.0, %v1451
      %1453 = vmatmul.f32.gmra.mxu0 %v1366
      %v1454 = vpop.f32.mrf.mxu0
      %v1455 = vadd.f32 0.0, %v1454
      %1456 = vmatmul.f32.gmra.mxu0 %v1367
      %v1457 = vpop.f32.mrf.mxu0
      %v1458 = vadd.f32 0.0, %v1457
      %1459 = vmatmul.f32.gmra.mxu0 %v1368
      %v1460 = vpop.f32.mrf.mxu0
      %v1461 = vadd.f32 0.0, %v1460
      %1462 = vmatmul.f32.gmra.mxu0 %v1369
      %v1463 = vpop.f32.mrf.mxu0
      %v1464 = vadd.f32 0.0, %v1463
      %1465 = vmatmul.f32.gmra.mxu0 %v1370
      %v1466 = vpop.f32.mrf.mxu0
      %v1467 = vadd.f32 0.0, %v1466
      %1468 = vmatmul.f32.gmra.mxu0 %v1371
      %v1469 = vpop.f32.mrf.mxu0
      %v1470 = vadd.f32 0.0, %v1469
      %1471 = vmatmul.f32.gmra.mxu0 %v1372
      %v1472 = vpop.f32.mrf.mxu0
      %v1473 = vadd.f32 0.0, %v1472
      %1474 = vmatmul.f32.gmra.mxu0 %v1373
      %v1475 = vpop.f32.mrf.mxu0
      %v1476 = vadd.f32 0.0, %v1475
      %1477 = vmatmul.f32.gmra.mxu0 %v1374
      %v1478 = vpop.f32.mrf.mxu0
      %v1479 = vadd.f32 0.0, %v1478
      %1480 = vmatmul.f32.gmra.mxu0 %v1375
      %v1481 = vpop.f32.mrf.mxu0
      %v1482 = vadd.f32 0.0, %v1481
      %1483 = vmatmul.f32.gmra.mxu0 %v1376
      %v1484 = vpop.f32.mrf.mxu0
      %v1485 = vadd.f32 0.0, %v1484
      %1486 = vmatmul.f32.gmra.mxu0 %v1377
      %v1487 = vpop.f32.mrf.mxu0
      %v1488 = vadd.f32 0.0, %v1487
      %1489 = vmatmul.f32.gmra.mxu0 %v1378
      %v1490 = vpop.f32.mrf.mxu0
      %v1491 = vadd.f32 0.0, %v1490
      %1492 = vmatmul.f32.gmra.mxu0 %v1379
      %v1493 = vpop.f32.mrf.mxu0
      %v1494 = vadd.f32 0.0, %v1493
      %1495 = vmatmul.f32.gmra.mxu0 %v1380
      %v1496 = vpop.f32.mrf.mxu0
      %v1497 = vadd.f32 0.0, %v1496
      %1498 = vmatmul.f32.gmra.mxu0 %v1381
      %v1499 = vpop.f32.mrf.mxu0
      %v1500 = vadd.f32 0.0, %v1499
      %1501 = vmatmul.f32.gmra.mxu0 %v1382
      %v1502 = vpop.f32.mrf.mxu0
      %v1503 = vadd.f32 0.0, %v1502
      %1504 = vmatmul.f32.gmra.mxu0 %v1383
      %v1505 = vpop.f32.mrf.mxu0
      %v1506 = vadd.f32 0.0, %v1505
      %1507 = vmatmul.f32.gmra.mxu0 %v1384
      %v1508 = vpop.f32.mrf.mxu0
      %v1509 = vadd.f32 0.0, %v1508
      %1510 = vmatmul.f32.gmra.mxu0 %v1385
      %v1511 = vpop.f32.mrf.mxu0
      %v1512 = vadd.f32 0.0, %v1511
      %1513 = vmatmul.f32.gmra.mxu0 %v1386
      %v1514 = vpop.f32.mrf.mxu0
      %v1515 = vadd.f32 0.0, %v1514
      %1516 = vmatmul.f32.gmra.mxu0 %v1387
      %v1517 = vpop.f32.mrf.mxu0
      %v1518 = vadd.f32 0.0, %v1517
      %1519 = vmatmul.f32.gmra.mxu0 %v1388
      %v1520 = vpop.f32.mrf.mxu0
      %v1521 = vadd.f32 0.0, %v1520
      %1522 = vmatmul.f32.gmra.mxu0 %v1389
      %v1523 = vpop.f32.mrf.mxu0
      %v1524 = vadd.f32 0.0, %v1523
      %1525 = vmatmul.f32.gmra.mxu0 %v1390
      %v1526 = vpop.f32.mrf.mxu0
      %v1527 = vadd.f32 0.0, %v1526
      %1528 = vmatmul.f32.gmra.mxu0 %v1391
      %v1529 = vpop.f32.mrf.mxu0
      %v1530 = vadd.f32 0.0, %v1529
      %1531 = vmatmul.f32.gmra.mxu0 %v1392
      %v1532 = vpop.f32.mrf.mxu0
      %v1533 = vadd.f32 0.0, %v1532
      %1534 = vdwg.mxu0
      %v1535 = vadd.f32 %v1321, %v1428
      %v1536 = vadd.f32 %v1322, %v1431
      %v1537 = vadd.f32 %v1323, %v1434
      %v1538 = vadd.f32 %v1324, %v1437
      %v1539 = vadd.f32 %v1325, %v1440
      %v1540 = vadd.f32 %v1326, %v1443
      %v1541 = vadd.f32 %v1327, %v1446
      %v1542 = vadd.f32 %v1328, %v1449
      %v1543 = vadd.f32 %v1329, %v1452
      %v1544 = vadd.f32 %v1330, %v1455
      %v1545 = vadd.f32 %v1331, %v1458
      %v1546 = vadd.f32 %v1332, %v1461
      %v1547 = vadd.f32 %v1333, %v1464
      %v1548 = vadd.f32 %v1334, %v1467
      %v1549 = vadd.f32 %v1335, %v1470
      %v1550 = vadd.f32 %v1336, %v1473
      %v1551 = vadd.f32 %v1337, %v1476
      %v1552 = vadd.f32 %v1338, %v1479
      %v1553 = vadd.f32 %v1339, %v1482
      %v1554 = vadd.f32 %v1340, %v1485
      %v1555 = vadd.f32 %v1341, %v1488
      %v1556 = vadd.f32 %v1342, %v1491
      %v1557 = vadd.f32 %v1343, %v1494
      %v1558 = vadd.f32 %v1344, %v1497
      %v1559 = vadd.f32 %v1345, %v1500
      %v1560 = vadd.f32 %v1346, %v1503
      %v1561 = vadd.f32 %v1347, %v1506
      %v1562 = vadd.f32 %v1348, %v1509
      %v1563 = vadd.f32 %v1349, %v1512
      %v1564 = vadd.f32 %v1350, %v1515
      %v1565 = vadd.f32 %v1351, %v1518
      %v1566 = vadd.f32 %v1352, %v1521
      %v1567 = vadd.f32 %v1353, %v1524
      %v1568 = vadd.f32 %v1354, %v1527
      %v1569 = vadd.f32 %v1355, %v1530
      %v1570 = vadd.f32 %v1356, %v1533
      %s1571 = scalar_lea.vmem [#allocation2], 48
      %v1572 = vld [vmem:[%s1571] sm:$0xff]
      %v1573 = vld [vmem:[%s1571 + $0x8] sm:$0xff]
      %v1574 = vld [vmem:[%s1571 + $0x18] sm:$0xff]
      %v1575 = vld [vmem:[%s1571 + $0x20] sm:$0xff]
      %v1576 = vld [vmem:[%s1571 + $0x30] sm:$0xff]
      %v1577 = vld [vmem:[%s1571 + $0x38] sm:$0xff]
      %v1578 = vld [vmem:[%s1571 + $0x48] sm:$0xff]
      %v1579 = vld [vmem:[%s1571 + $0x50] sm:$0xff]
      %v1580 = vld [vmem:[%s1571 + $0x60] sm:$0xff]
      %v1581 = vld [vmem:[%s1571 + $0x68] sm:$0xff]
      %v1582 = vld [vmem:[%s1571 + $0x78] sm:$0xff]
      %v1583 = vld [vmem:[%s1571 + $0x80] sm:$0xff]
      %v1584 = vld [vmem:[%s1571 + $0x90] sm:$0xff]
      %v1585 = vld [vmem:[%s1571 + $0x98] sm:$0xff]
      %v1586 = vld [vmem:[%s1571 + $0xa8] sm:$0xff]
      %v1587 = vld [vmem:[%s1571 + $0xb0] sm:$0xff]
      %v1588 = vld [vmem:[%s1571 + $0xc0] sm:$0xff]
      %v1589 = vld [vmem:[%s1571 + $0xc8] sm:$0xff]
      %v1590 = vld [vmem:[%s1571 + $0xd8] sm:$0xff]
      %v1591 = vld [vmem:[%s1571 + $0xe0] sm:$0xff]
      %v1592 = vld [vmem:[%s1571 + $0xf0] sm:$0xff]
      %v1593 = vld [vmem:[%s1571 + $0xf8] sm:$0xff]
      %v1594 = vld [vmem:[%s1571 + $0x108] sm:$0xff]
      %v1595 = vld [vmem:[%s1571 + $0x110] sm:$0xff]
      %v1596 = vld [vmem:[%s1571 + $0x120] sm:$0xff]
      %v1597 = vld [vmem:[%s1571 + $0x128] sm:$0xff]
      %v1598 = vld [vmem:[%s1571 + $0x138] sm:$0xff]
      %v1599 = vld [vmem:[%s1571 + $0x140] sm:$0xff]
      %v1600 = vld [vmem:[%s1571 + $0x150] sm:$0xff]
      %v1601 = vld [vmem:[%s1571 + $0x158] sm:$0xff]
      %v1602 = vld [vmem:[%s1571 + $0x168] sm:$0xff]
      %v1603 = vld [vmem:[%s1571 + $0x170] sm:$0xff]
      %v1604 = vld [vmem:[%s1571 + $0x180] sm:$0xff]
      %v1605 = vld [vmem:[%s1571 + $0x188] sm:$0xff]
      %v1606 = vld [vmem:[%s1571 + $0x198] sm:$0xff]
      %v1607 = vld [vmem:[%s1571 + $0x1a0] sm:$0xff]
      %s1608 = scalar_lea.vmem %s1, 768
      %v1609 = vld [vmem:[%s1608] sm:$0xff]
      %v1610 = vld [vmem:[%s1608 + $0x8] sm:$0xff]
      %v1611 = vld [vmem:[%s1608 + $0x10] sm:$0xff]
      %v1612 = vld [vmem:[%s1608 + $0x18] sm:$0xff]
      %v1613 = vld [vmem:[%s1608 + $0x20] sm:$0xff]
      %v1614 = vld [vmem:[%s1608 + $0x28] sm:$0xff]
      %v1615 = vld [vmem:[%s1608 + $0x30] sm:$0xff]
      %v1616 = vld [vmem:[%s1608 + $0x38] sm:$0xff]
      %v1617 = vld [vmem:[%s1608 + $0x40] sm:$0xff]
      %v1618 = vld [vmem:[%s1608 + $0x48] sm:$0xff]
      %v1619 = vld [vmem:[%s1608 + $0x50] sm:$0xff]
      %v1620 = vld [vmem:[%s1608 + $0x58] sm:$0xff]
      %v1621 = vld [vmem:[%s1608 + $0x60] sm:$0xff]
      %v1622 = vld [vmem:[%s1608 + $0x68] sm:$0xff]
      %v1623 = vld [vmem:[%s1608 + $0x70] sm:$0xff]
      %v1624 = vld [vmem:[%s1608 + $0x78] sm:$0xff]
      %1625 = vmatpush.msra.mxu0 %v1624
      %1626 = vmatpush.msra.mxu0 %v1623
      %1627 = vmatpush.msra.mxu0 %v1622
      %1628 = vmatpush.msra.mxu0 %v1621
      %1629 = vmatpush.msra.mxu0 %v1620
      %1630 = vmatpush.msra.mxu0 %v1619
      %1631 = vmatpush.msra.mxu0 %v1618
      %1632 = vmatpush.msra.mxu0 %v1617
      %1633 = vmatpush.msra.mxu0 %v1616
      %1634 = vmatpush.msra.mxu0 %v1615
      %1635 = vmatpush.msra.mxu0 %v1614
      %1636 = vmatpush.msra.mxu0 %v1613
      %1637 = vmatpush.msra.mxu0 %v1612
      %1638 = vmatpush.msra.mxu0 %v1611
      %1639 = vmatpush.msra.mxu0 %v1610
      %1640 = vmatpush.msra.mxu0 %v1609
      %1641 = vmatmul.f32.gmra.mxu0 %v1572
      %v1642 = vpop.f32.mrf.mxu0
      %v1643 = vadd.f32 0.0, %v1642
      %1644 = vmatmul.f32.gmra.mxu0 %v1573
      %v1645 = vpop.f32.mrf.mxu0
      %v1646 = vadd.f32 0.0, %v1645
      %1647 = vmatmul.f32.gmra.mxu0 %v1574
      %v1648 = vpop.f32.mrf.mxu0
      %v1649 = vadd.f32 0.0, %v1648
      %1650 = vmatmul.f32.gmra.mxu0 %v1575
      %v1651 = vpop.f32.mrf.mxu0
      %v1652 = vadd.f32 0.0, %v1651
      %1653 = vmatmul.f32.gmra.mxu0 %v1576
      %v1654 = vpop.f32.mrf.mxu0
      %v1655 = vadd.f32 0.0, %v1654
      %1656 = vmatmul.f32.gmra.mxu0 %v1577
      %v1657 = vpop.f32.mrf.mxu0
      %v1658 = vadd.f32 0.0, %v1657
      %1659 = vmatmul.f32.gmra.mxu0 %v1578
      %v1660 = vpop.f32.mrf.mxu0
      %v1661 = vadd.f32 0.0, %v1660
      %1662 = vmatmul.f32.gmra.mxu0 %v1579
      %v1663 = vpop.f32.mrf.mxu0
      %v1664 = vadd.f32 0.0, %v1663
      %1665 = vmatmul.f32.gmra.mxu0 %v1580
      %v1666 = vpop.f32.mrf.mxu0
      %v1667 = vadd.f32 0.0, %v1666
      %1668 = vmatmul.f32.gmra.mxu0 %v1581
      %v1669 = vpop.f32.mrf.mxu0
      %v1670 = vadd.f32 0.0, %v1669
      %1671 = vmatmul.f32.gmra.mxu0 %v1582
      %v1672 = vpop.f32.mrf.mxu0
      %v1673 = vadd.f32 0.0, %v1672
      %1674 = vmatmul.f32.gmra.mxu0 %v1583
      %v1675 = vpop.f32.mrf.mxu0
      %v1676 = vadd.f32 0.0, %v1675
      %1677 = vmatmul.f32.gmra.mxu0 %v1584
      %v1678 = vpop.f32.mrf.mxu0
      %v1679 = vadd.f32 0.0, %v1678
      %1680 = vmatmul.f32.gmra.mxu0 %v1585
      %v1681 = vpop.f32.mrf.mxu0
      %v1682 = vadd.f32 0.0, %v1681
      %1683 = vmatmul.f32.gmra.mxu0 %v1586
      %v1684 = vpop.f32.mrf.mxu0
      %v1685 = vadd.f32 0.0, %v1684
      %1686 = vmatmul.f32.gmra.mxu0 %v1587
      %v1687 = vpop.f32.mrf.mxu0
      %v1688 = vadd.f32 0.0, %v1687
      %1689 = vmatmul.f32.gmra.mxu0 %v1588
      %v1690 = vpop.f32.mrf.mxu0
      %v1691 = vadd.f32 0.0, %v1690
      %1692 = vmatmul.f32.gmra.mxu0 %v1589
      %v1693 = vpop.f32.mrf.mxu0
      %v1694 = vadd.f32 0.0, %v1693
      %1695 = vmatmul.f32.gmra.mxu0 %v1590
      %v1696 = vpop.f32.mrf.mxu0
      %v1697 = vadd.f32 0.0, %v1696
      %1698 = vmatmul.f32.gmra.mxu0 %v1591
      %v1699 = vpop.f32.mrf.mxu0
      %v1700 = vadd.f32 0.0, %v1699
      %1701 = vmatmul.f32.gmra.mxu0 %v1592
      %v1702 = vpop.f32.mrf.mxu0
      %v1703 = vadd.f32 0.0, %v1702
      %1704 = vmatmul.f32.gmra.mxu0 %v1593
      %v1705 = vpop.f32.mrf.mxu0
      %v1706 = vadd.f32 0.0, %v1705
      %1707 = vmatmul.f32.gmra.mxu0 %v1594
      %v1708 = vpop.f32.mrf.mxu0
      %v1709 = vadd.f32 0.0, %v1708
      %1710 = vmatmul.f32.gmra.mxu0 %v1595
      %v1711 = vpop.f32.mrf.mxu0
      %v1712 = vadd.f32 0.0, %v1711
      %1713 = vmatmul.f32.gmra.mxu0 %v1596
      %v1714 = vpop.f32.mrf.mxu0
      %v1715 = vadd.f32 0.0, %v1714
      %1716 = vmatmul.f32.gmra.mxu0 %v1597
      %v1717 = vpop.f32.mrf.mxu0
      %v1718 = vadd.f32 0.0, %v1717
      %1719 = vmatmul.f32.gmra.mxu0 %v1598
      %v1720 = vpop.f32.mrf.mxu0
      %v1721 = vadd.f32 0.0, %v1720
      %1722 = vmatmul.f32.gmra.mxu0 %v1599
      %v1723 = vpop.f32.mrf.mxu0
      %v1724 = vadd.f32 0.0, %v1723
      %1725 = vmatmul.f32.gmra.mxu0 %v1600
      %v1726 = vpop.f32.mrf.mxu0
      %v1727 = vadd.f32 0.0, %v1726
      %1728 = vmatmul.f32.gmra.mxu0 %v1601
      %v1729 = vpop.f32.mrf.mxu0
      %v1730 = vadd.f32 0.0, %v1729
      %1731 = vmatmul.f32.gmra.mxu0 %v1602
      %v1732 = vpop.f32.mrf.mxu0
      %v1733 = vadd.f32 0.0, %v1732
      %1734 = vmatmul.f32.gmra.mxu0 %v1603
      %v1735 = vpop.f32.mrf.mxu0
      %v1736 = vadd.f32 0.0, %v1735
      %1737 = vmatmul.f32.gmra.mxu0 %v1604
      %v1738 = vpop.f32.mrf.mxu0
      %v1739 = vadd.f32 0.0, %v1738
      %1740 = vmatmul.f32.gmra.mxu0 %v1605
      %v1741 = vpop.f32.mrf.mxu0
      %v1742 = vadd.f32 0.0, %v1741
      %1743 = vmatmul.f32.gmra.mxu0 %v1606
      %v1744 = vpop.f32.mrf.mxu0
      %v1745 = vadd.f32 0.0, %v1744
      %1746 = vmatmul.f32.gmra.mxu0 %v1607
      %v1747 = vpop.f32.mrf.mxu0
      %v1748 = vadd.f32 0.0, %v1747
      %1749 = vdwg.mxu0
      %v1750 = vadd.f32 %v1535, %v1643
      %v1751 = vadd.f32 %v1536, %v1646
      %v1752 = vadd.f32 %v1537, %v1649
      %v1753 = vadd.f32 %v1538, %v1652
      %v1754 = vadd.f32 %v1539, %v1655
      %v1755 = vadd.f32 %v1540, %v1658
      %v1756 = vadd.f32 %v1541, %v1661
      %v1757 = vadd.f32 %v1542, %v1664
      %v1758 = vadd.f32 %v1543, %v1667
      %v1759 = vadd.f32 %v1544, %v1670
      %v1760 = vadd.f32 %v1545, %v1673
      %v1761 = vadd.f32 %v1546, %v1676
      %v1762 = vadd.f32 %v1547, %v1679
      %v1763 = vadd.f32 %v1548, %v1682
      %v1764 = vadd.f32 %v1549, %v1685
      %v1765 = vadd.f32 %v1550, %v1688
      %v1766 = vadd.f32 %v1551, %v1691
      %v1767 = vadd.f32 %v1552, %v1694
      %v1768 = vadd.f32 %v1553, %v1697
      %v1769 = vadd.f32 %v1554, %v1700
      %v1770 = vadd.f32 %v1555, %v1703
      %v1771 = vadd.f32 %v1556, %v1706
      %v1772 = vadd.f32 %v1557, %v1709
      %v1773 = vadd.f32 %v1558, %v1712
      %v1774 = vadd.f32 %v1559, %v1715
      %v1775 = vadd.f32 %v1560, %v1718
      %v1776 = vadd.f32 %v1561, %v1721
      %v1777 = vadd.f32 %v1562, %v1724
      %v1778 = vadd.f32 %v1563, %v1727
      %v1779 = vadd.f32 %v1564, %v1730
      %v1780 = vadd.f32 %v1565, %v1733
      %v1781 = vadd.f32 %v1566, %v1736
      %v1782 = vadd.f32 %v1567, %v1739
      %v1783 = vadd.f32 %v1568, %v1742
      %v1784 = vadd.f32 %v1569, %v1745
      %v1785 = vadd.f32 %v1570, %v1748
      %v1786 = vld [vmem:[%s1571 + $0x1] sm:$0xff]
      %v1787 = vld [vmem:[%s1571 + $0x9] sm:$0xff]
      %v1788 = vld [vmem:[%s1571 + $0x19] sm:$0xff]
      %v1789 = vld [vmem:[%s1571 + $0x21] sm:$0xff]
      %v1790 = vld [vmem:[%s1571 + $0x31] sm:$0xff]
      %v1791 = vld [vmem:[%s1571 + $0x39] sm:$0xff]
      %v1792 = vld [vmem:[%s1571 + $0x49] sm:$0xff]
      %v1793 = vld [vmem:[%s1571 + $0x51] sm:$0xff]
      %v1794 = vld [vmem:[%s1571 + $0x61] sm:$0xff]
      %v1795 = vld [vmem:[%s1571 + $0x69] sm:$0xff]
      %v1796 = vld [vmem:[%s1571 + $0x79] sm:$0xff]
      %v1797 = vld [vmem:[%s1571 + $0x81] sm:$0xff]
      %v1798 = vld [vmem:[%s1571 + $0x91] sm:$0xff]
      %v1799 = vld [vmem:[%s1571 + $0x99] sm:$0xff]
      %v1800 = vld [vmem:[%s1571 + $0xa9] sm:$0xff]
      %v1801 = vld [vmem:[%s1571 + $0xb1] sm:$0xff]
      %v1802 = vld [vmem:[%s1571 + $0xc1] sm:$0xff]
      %v1803 = vld [vmem:[%s1571 + $0xc9] sm:$0xff]
      %v1804 = vld [vmem:[%s1571 + $0xd9] sm:$0xff]
      %v1805 = vld [vmem:[%s1571 + $0xe1] sm:$0xff]
      %v1806 = vld [vmem:[%s1571 + $0xf1] sm:$0xff]
      %v1807 = vld [vmem:[%s1571 + $0xf9] sm:$0xff]
      %v1808 = vld [vmem:[%s1571 + $0x109] sm:$0xff]
      %v1809 = vld [vmem:[%s1571 + $0x111] sm:$0xff]
      %v1810 = vld [vmem:[%s1571 + $0x121] sm:$0xff]
      %v1811 = vld [vmem:[%s1571 + $0x129] sm:$0xff]
      %v1812 = vld [vmem:[%s1571 + $0x139] sm:$0xff]
      %v1813 = vld [vmem:[%s1571 + $0x141] sm:$0xff]
      %v1814 = vld [vmem:[%s1571 + $0x151] sm:$0xff]
      %v1815 = vld [vmem:[%s1571 + $0x159] sm:$0xff]
      %v1816 = vld [vmem:[%s1571 + $0x169] sm:$0xff]
      %v1817 = vld [vmem:[%s1571 + $0x171] sm:$0xff]
      %v1818 = vld [vmem:[%s1571 + $0x181] sm:$0xff]
      %v1819 = vld [vmem:[%s1571 + $0x189] sm:$0xff]
      %v1820 = vld [vmem:[%s1571 + $0x199] sm:$0xff]
      %v1821 = vld [vmem:[%s1571 + $0x1a1] sm:$0xff]
      %s1822 = scalar_lea.vmem %s1, 896
      %v1823 = vld [vmem:[%s1822] sm:$0xff]
      %v1824 = vld [vmem:[%s1822 + $0x8] sm:$0xff]
      %v1825 = vld [vmem:[%s1822 + $0x10] sm:$0xff]
      %v1826 = vld [vmem:[%s1822 + $0x18] sm:$0xff]
      %v1827 = vld [vmem:[%s1822 + $0x20] sm:$0xff]
      %v1828 = vld [vmem:[%s1822 + $0x28] sm:$0xff]
      %v1829 = vld [vmem:[%s1822 + $0x30] sm:$0xff]
      %v1830 = vld [vmem:[%s1822 + $0x38] sm:$0xff]
      %v1831 = vld [vmem:[%s1822 + $0x40] sm:$0xff]
      %v1832 = vld [vmem:[%s1822 + $0x48] sm:$0xff]
      %v1833 = vld [vmem:[%s1822 + $0x50] sm:$0xff]
      %v1834 = vld [vmem:[%s1822 + $0x58] sm:$0xff]
      %v1835 = vld [vmem:[%s1822 + $0x60] sm:$0xff]
      %v1836 = vld [vmem:[%s1822 + $0x68] sm:$0xff]
      %v1837 = vld [vmem:[%s1822 + $0x70] sm:$0xff]
      %v1838 = vld [vmem:[%s1822 + $0x78] sm:$0xff]
      %1839 = vmatpush.msra.mxu0 %v1838
      %1840 = vmatpush.msra.mxu0 %v1837
      %1841 = vmatpush.msra.mxu0 %v1836
      %1842 = vmatpush.msra.mxu0 %v1835
      %1843 = vmatpush.msra.mxu0 %v1834
      %1844 = vmatpush.msra.mxu0 %v1833
      %1845 = vmatpush.msra.mxu0 %v1832
      %1846 = vmatpush.msra.mxu0 %v1831
      %1847 = vmatpush.msra.mxu0 %v1830
      %1848 = vmatpush.msra.mxu0 %v1829
      %1849 = vmatpush.msra.mxu0 %v1828
      %1850 = vmatpush.msra.mxu0 %v1827
      %1851 = vmatpush.msra.mxu0 %v1826
      %1852 = vmatpush.msra.mxu0 %v1825
      %1853 = vmatpush.msra.mxu0 %v1824
      %1854 = vmatpush.msra.mxu0 %v1823
      %1855 = vmatmul.f32.gmra.mxu0 %v1786
      %v1856 = vpop.f32.mrf.mxu0
      %v1857 = vadd.f32 0.0, %v1856
      %1858 = vmatmul.f32.gmra.mxu0 %v1787
      %v1859 = vpop.f32.mrf.mxu0
      %v1860 = vadd.f32 0.0, %v1859
      %1861 = vmatmul.f32.gmra.mxu0 %v1788
      %v1862 = vpop.f32.mrf.mxu0
      %v1863 = vadd.f32 0.0, %v1862
      %1864 = vmatmul.f32.gmra.mxu0 %v1789
      %v1865 = vpop.f32.mrf.mxu0
      %v1866 = vadd.f32 0.0, %v1865
      %1867 = vmatmul.f32.gmra.mxu0 %v1790
      %v1868 = vpop.f32.mrf.mxu0
      %v1869 = vadd.f32 0.0, %v1868
      %1870 = vmatmul.f32.gmra.mxu0 %v1791
      %v1871 = vpop.f32.mrf.mxu0
      %v1872 = vadd.f32 0.0, %v1871
      %1873 = vmatmul.f32.gmra.mxu0 %v1792
      %v1874 = vpop.f32.mrf.mxu0
      %v1875 = vadd.f32 0.0, %v1874
      %1876 = vmatmul.f32.gmra.mxu0 %v1793
      %v1877 = vpop.f32.mrf.mxu0
      %v1878 = vadd.f32 0.0, %v1877
      %1879 = vmatmul.f32.gmra.mxu0 %v1794
      %v1880 = vpop.f32.mrf.mxu0
      %v1881 = vadd.f32 0.0, %v1880
      %1882 = vmatmul.f32.gmra.mxu0 %v1795
      %v1883 = vpop.f32.mrf.mxu0
      %v1884 = vadd.f32 0.0, %v1883
      %1885 = vmatmul.f32.gmra.mxu0 %v1796
      %v1886 = vpop.f32.mrf.mxu0
      %v1887 = vadd.f32 0.0, %v1886
      %1888 = vmatmul.f32.gmra.mxu0 %v1797
      %v1889 = vpop.f32.mrf.mxu0
      %v1890 = vadd.f32 0.0, %v1889
      %1891 = vmatmul.f32.gmra.mxu0 %v1798
      %v1892 = vpop.f32.mrf.mxu0
      %v1893 = vadd.f32 0.0, %v1892
      %1894 = vmatmul.f32.gmra.mxu0 %v1799
      %v1895 = vpop.f32.mrf.mxu0
      %v1896 = vadd.f32 0.0, %v1895
      %1897 = vmatmul.f32.gmra.mxu0 %v1800
      %v1898 = vpop.f32.mrf.mxu0
      %v1899 = vadd.f32 0.0, %v1898
      %1900 = vmatmul.f32.gmra.mxu0 %v1801
      %v1901 = vpop.f32.mrf.mxu0
      %v1902 = vadd.f32 0.0, %v1901
      %1903 = vmatmul.f32.gmra.mxu0 %v1802
      %v1904 = vpop.f32.mrf.mxu0
      %v1905 = vadd.f32 0.0, %v1904
      %1906 = vmatmul.f32.gmra.mxu0 %v1803
      %v1907 = vpop.f32.mrf.mxu0
      %v1908 = vadd.f32 0.0, %v1907
      %1909 = vmatmul.f32.gmra.mxu0 %v1804
      %v1910 = vpop.f32.mrf.mxu0
      %v1911 = vadd.f32 0.0, %v1910
      %1912 = vmatmul.f32.gmra.mxu0 %v1805
      %v1913 = vpop.f32.mrf.mxu0
      %v1914 = vadd.f32 0.0, %v1913
      %1915 = vmatmul.f32.gmra.mxu0 %v1806
      %v1916 = vpop.f32.mrf.mxu0
      %v1917 = vadd.f32 0.0, %v1916
      %1918 = vmatmul.f32.gmra.mxu0 %v1807
      %v1919 = vpop.f32.mrf.mxu0
      %v1920 = vadd.f32 0.0, %v1919
      %1921 = vmatmul.f32.gmra.mxu0 %v1808
      %v1922 = vpop.f32.mrf.mxu0
      %v1923 = vadd.f32 0.0, %v1922
      %1924 = vmatmul.f32.gmra.mxu0 %v1809
      %v1925 = vpop.f32.mrf.mxu0
      %v1926 = vadd.f32 0.0, %v1925
      %1927 = vmatmul.f32.gmra.mxu0 %v1810
      %v1928 = vpop.f32.mrf.mxu0
      %v1929 = vadd.f32 0.0, %v1928
      %1930 = vmatmul.f32.gmra.mxu0 %v1811
      %v1931 = vpop.f32.mrf.mxu0
      %v1932 = vadd.f32 0.0, %v1931
      %1933 = vmatmul.f32.gmra.mxu0 %v1812
      %v1934 = vpop.f32.mrf.mxu0
      %v1935 = vadd.f32 0.0, %v1934
      %1936 = vmatmul.f32.gmra.mxu0 %v1813
      %v1937 = vpop.f32.mrf.mxu0
      %v1938 = vadd.f32 0.0, %v1937
      %1939 = vmatmul.f32.gmra.mxu0 %v1814
      %v1940 = vpop.f32.mrf.mxu0
      %v1941 = vadd.f32 0.0, %v1940
      %1942 = vmatmul.f32.gmra.mxu0 %v1815
      %v1943 = vpop.f32.mrf.mxu0
      %v1944 = vadd.f32 0.0, %v1943
      %1945 = vmatmul.f32.gmra.mxu0 %v1816
      %v1946 = vpop.f32.mrf.mxu0
      %v1947 = vadd.f32 0.0, %v1946
      %1948 = vmatmul.f32.gmra.mxu0 %v1817
      %v1949 = vpop.f32.mrf.mxu0
      %v1950 = vadd.f32 0.0, %v1949
      %1951 = vmatmul.f32.gmra.mxu0 %v1818
      %v1952 = vpop.f32.mrf.mxu0
      %v1953 = vadd.f32 0.0, %v1952
      %1954 = vmatmul.f32.gmra.mxu0 %v1819
      %v1955 = vpop.f32.mrf.mxu0
      %v1956 = vadd.f32 0.0, %v1955
      %1957 = vmatmul.f32.gmra.mxu0 %v1820
      %v1958 = vpop.f32.mrf.mxu0
      %v1959 = vadd.f32 0.0, %v1958
      %1960 = vmatmul.f32.gmra.mxu0 %v1821
      %v1961 = vpop.f32.mrf.mxu0
      %v1962 = vadd.f32 0.0, %v1961
      %1963 = vdwg.mxu0
      %v1964 = vadd.f32 %v1750, %v1857
      %v1965 = vadd.f32 %v1751, %v1860
      %v1966 = vadd.f32 %v1752, %v1863
      %v1967 = vadd.f32 %v1753, %v1866
      %v1968 = vadd.f32 %v1754, %v1869
      %v1969 = vadd.f32 %v1755, %v1872
      %v1970 = vadd.f32 %v1756, %v1875
      %v1971 = vadd.f32 %v1757, %v1878
      %v1972 = vadd.f32 %v1758, %v1881
      %v1973 = vadd.f32 %v1759, %v1884
      %v1974 = vadd.f32 %v1760, %v1887
      %v1975 = vadd.f32 %v1761, %v1890
      %v1976 = vadd.f32 %v1762, %v1893
      %v1977 = vadd.f32 %v1763, %v1896
      %v1978 = vadd.f32 %v1764, %v1899
      %v1979 = vadd.f32 %v1765, %v1902
      %v1980 = vadd.f32 %v1766, %v1905
      %v1981 = vadd.f32 %v1767, %v1908
      %v1982 = vadd.f32 %v1768, %v1911
      %v1983 = vadd.f32 %v1769, %v1914
      %v1984 = vadd.f32 %v1770, %v1917
      %v1985 = vadd.f32 %v1771, %v1920
      %v1986 = vadd.f32 %v1772, %v1923
      %v1987 = vadd.f32 %v1773, %v1926
      %v1988 = vadd.f32 %v1774, %v1929
      %v1989 = vadd.f32 %v1775, %v1932
      %v1990 = vadd.f32 %v1776, %v1935
      %v1991 = vadd.f32 %v1777, %v1938
      %v1992 = vadd.f32 %v1778, %v1941
      %v1993 = vadd.f32 %v1779, %v1944
      %v1994 = vadd.f32 %v1780, %v1947
      %v1995 = vadd.f32 %v1781, %v1950
      %v1996 = vadd.f32 %v1782, %v1953
      %v1997 = vadd.f32 %v1783, %v1956
      %v1998 = vadd.f32 %v1784, %v1959
      %v1999 = vadd.f32 %v1785, %v1962
      %v2000 = vld [vmem:[%s1571 + $0x2] sm:$0xff]
      %v2001 = vld [vmem:[%s1571 + $0xa] sm:$0xff]
      %v2002 = vld [vmem:[%s1571 + $0x1a] sm:$0xff]
      %v2003 = vld [vmem:[%s1571 + $0x22] sm:$0xff]
      %v2004 = vld [vmem:[%s1571 + $0x32] sm:$0xff]
      %v2005 = vld [vmem:[%s1571 + $0x3a] sm:$0xff]
      %v2006 = vld [vmem:[%s1571 + $0x4a] sm:$0xff]
      %v2007 = vld [vmem:[%s1571 + $0x52] sm:$0xff]
      %v2008 = vld [vmem:[%s1571 + $0x62] sm:$0xff]
      %v2009 = vld [vmem:[%s1571 + $0x6a] sm:$0xff]
      %v2010 = vld [vmem:[%s1571 + $0x7a] sm:$0xff]
      %v2011 = vld [vmem:[%s1571 + $0x82] sm:$0xff]
      %v2012 = vld [vmem:[%s1571 + $0x92] sm:$0xff]
      %v2013 = vld [vmem:[%s1571 + $0x9a] sm:$0xff]
      %v2014 = vld [vmem:[%s1571 + $0xaa] sm:$0xff]
      %v2015 = vld [vmem:[%s1571 + $0xb2] sm:$0xff]
      %v2016 = vld [vmem:[%s1571 + $0xc2] sm:$0xff]
      %v2017 = vld [vmem:[%s1571 + $0xca] sm:$0xff]
      %v2018 = vld [vmem:[%s1571 + $0xda] sm:$0xff]
      %v2019 = vld [vmem:[%s1571 + $0xe2] sm:$0xff]
      %v2020 = vld [vmem:[%s1571 + $0xf2] sm:$0xff]
      %v2021 = vld [vmem:[%s1571 + $0xfa] sm:$0xff]
      %v2022 = vld [vmem:[%s1571 + $0x10a] sm:$0xff]
      %v2023 = vld [vmem:[%s1571 + $0x112] sm:$0xff]
      %v2024 = vld [vmem:[%s1571 + $0x122] sm:$0xff]
      %v2025 = vld [vmem:[%s1571 + $0x12a] sm:$0xff]
      %v2026 = vld [vmem:[%s1571 + $0x13a] sm:$0xff]
      %v2027 = vld [vmem:[%s1571 + $0x142] sm:$0xff]
      %v2028 = vld [vmem:[%s1571 + $0x152] sm:$0xff]
      %v2029 = vld [vmem:[%s1571 + $0x15a] sm:$0xff]
      %v2030 = vld [vmem:[%s1571 + $0x16a] sm:$0xff]
      %v2031 = vld [vmem:[%s1571 + $0x172] sm:$0xff]
      %v2032 = vld [vmem:[%s1571 + $0x182] sm:$0xff]
      %v2033 = vld [vmem:[%s1571 + $0x18a] sm:$0xff]
      %v2034 = vld [vmem:[%s1571 + $0x19a] sm:$0xff]
      %v2035 = vld [vmem:[%s1571 + $0x1a2] sm:$0xff]
      %s2036 = scalar_lea.vmem %s1, 1024
      %v2037 = vld [vmem:[%s2036] sm:$0xff]
      %v2038 = vld [vmem:[%s2036 + $0x8] sm:$0xff]
      %v2039 = vld [vmem:[%s2036 + $0x10] sm:$0xff]
      %v2040 = vld [vmem:[%s2036 + $0x18] sm:$0xff]
      %v2041 = vld [vmem:[%s2036 + $0x20] sm:$0xff]
      %v2042 = vld [vmem:[%s2036 + $0x28] sm:$0xff]
      %v2043 = vld [vmem:[%s2036 + $0x30] sm:$0xff]
      %v2044 = vld [vmem:[%s2036 + $0x38] sm:$0xff]
      %v2045 = vld [vmem:[%s2036 + $0x40] sm:$0xff]
      %v2046 = vld [vmem:[%s2036 + $0x48] sm:$0xff]
      %v2047 = vld [vmem:[%s2036 + $0x50] sm:$0xff]
      %v2048 = vld [vmem:[%s2036 + $0x58] sm:$0xff]
      %v2049 = vld [vmem:[%s2036 + $0x60] sm:$0xff]
      %v2050 = vld [vmem:[%s2036 + $0x68] sm:$0xff]
      %v2051 = vld [vmem:[%s2036 + $0x70] sm:$0xff]
      %v2052 = vld [vmem:[%s2036 + $0x78] sm:$0xff]
      %2053 = vmatpush.msra.mxu0 %v2052
      %2054 = vmatpush.msra.mxu0 %v2051
      %2055 = vmatpush.msra.mxu0 %v2050
      %2056 = vmatpush.msra.mxu0 %v2049
      %2057 = vmatpush.msra.mxu0 %v2048
      %2058 = vmatpush.msra.mxu0 %v2047
      %2059 = vmatpush.msra.mxu0 %v2046
      %2060 = vmatpush.msra.mxu0 %v2045
      %2061 = vmatpush.msra.mxu0 %v2044
      %2062 = vmatpush.msra.mxu0 %v2043
      %2063 = vmatpush.msra.mxu0 %v2042
      %2064 = vmatpush.msra.mxu0 %v2041
      %2065 = vmatpush.msra.mxu0 %v2040
      %2066 = vmatpush.msra.mxu0 %v2039
      %2067 = vmatpush.msra.mxu0 %v2038
      %2068 = vmatpush.msra.mxu0 %v2037
      %2069 = vmatmul.f32.gmra.mxu0 %v2000
      %v2070 = vpop.f32.mrf.mxu0
      %v2071 = vadd.f32 0.0, %v2070
      %2072 = vmatmul.f32.gmra.mxu0 %v2001
      %v2073 = vpop.f32.mrf.mxu0
      %v2074 = vadd.f32 0.0, %v2073
      %2075 = vmatmul.f32.gmra.mxu0 %v2002
      %v2076 = vpop.f32.mrf.mxu0
      %v2077 = vadd.f32 0.0, %v2076
      %2078 = vmatmul.f32.gmra.mxu0 %v2003
      %v2079 = vpop.f32.mrf.mxu0
      %v2080 = vadd.f32 0.0, %v2079
      %2081 = vmatmul.f32.gmra.mxu0 %v2004
      %v2082 = vpop.f32.mrf.mxu0
      %v2083 = vadd.f32 0.0, %v2082
      %2084 = vmatmul.f32.gmra.mxu0 %v2005
      %v2085 = vpop.f32.mrf.mxu0
      %v2086 = vadd.f32 0.0, %v2085
      %2087 = vmatmul.f32.gmra.mxu0 %v2006
      %v2088 = vpop.f32.mrf.mxu0
      %v2089 = vadd.f32 0.0, %v2088
      %2090 = vmatmul.f32.gmra.mxu0 %v2007
      %v2091 = vpop.f32.mrf.mxu0
      %v2092 = vadd.f32 0.0, %v2091
      %2093 = vmatmul.f32.gmra.mxu0 %v2008
      %v2094 = vpop.f32.mrf.mxu0
      %v2095 = vadd.f32 0.0, %v2094
      %2096 = vmatmul.f32.gmra.mxu0 %v2009
      %v2097 = vpop.f32.mrf.mxu0
      %v2098 = vadd.f32 0.0, %v2097
      %2099 = vmatmul.f32.gmra.mxu0 %v2010
      %v2100 = vpop.f32.mrf.mxu0
      %v2101 = vadd.f32 0.0, %v2100
      %2102 = vmatmul.f32.gmra.mxu0 %v2011
      %v2103 = vpop.f32.mrf.mxu0
      %v2104 = vadd.f32 0.0, %v2103
      %2105 = vmatmul.f32.gmra.mxu0 %v2012
      %v2106 = vpop.f32.mrf.mxu0
      %v2107 = vadd.f32 0.0, %v2106
      %2108 = vmatmul.f32.gmra.mxu0 %v2013
      %v2109 = vpop.f32.mrf.mxu0
      %v2110 = vadd.f32 0.0, %v2109
      %2111 = vmatmul.f32.gmra.mxu0 %v2014
      %v2112 = vpop.f32.mrf.mxu0
      %v2113 = vadd.f32 0.0, %v2112
      %2114 = vmatmul.f32.gmra.mxu0 %v2015
      %v2115 = vpop.f32.mrf.mxu0
      %v2116 = vadd.f32 0.0, %v2115
      %2117 = vmatmul.f32.gmra.mxu0 %v2016
      %v2118 = vpop.f32.mrf.mxu0
      %v2119 = vadd.f32 0.0, %v2118
      %2120 = vmatmul.f32.gmra.mxu0 %v2017
      %v2121 = vpop.f32.mrf.mxu0
      %v2122 = vadd.f32 0.0, %v2121
      %2123 = vmatmul.f32.gmra.mxu0 %v2018
      %v2124 = vpop.f32.mrf.mxu0
      %v2125 = vadd.f32 0.0, %v2124
      %2126 = vmatmul.f32.gmra.mxu0 %v2019
      %v2127 = vpop.f32.mrf.mxu0
      %v2128 = vadd.f32 0.0, %v2127
      %2129 = vmatmul.f32.gmra.mxu0 %v2020
      %v2130 = vpop.f32.mrf.mxu0
      %v2131 = vadd.f32 0.0, %v2130
      %2132 = vmatmul.f32.gmra.mxu0 %v2021
      %v2133 = vpop.f32.mrf.mxu0
      %v2134 = vadd.f32 0.0, %v2133
      %2135 = vmatmul.f32.gmra.mxu0 %v2022
      %v2136 = vpop.f32.mrf.mxu0
      %v2137 = vadd.f32 0.0, %v2136
      %2138 = vmatmul.f32.gmra.mxu0 %v2023
      %v2139 = vpop.f32.mrf.mxu0
      %v2140 = vadd.f32 0.0, %v2139
      %2141 = vmatmul.f32.gmra.mxu0 %v2024
      %v2142 = vpop.f32.mrf.mxu0
      %v2143 = vadd.f32 0.0, %v2142
      %2144 = vmatmul.f32.gmra.mxu0 %v2025
      %v2145 = vpop.f32.mrf.mxu0
      %v2146 = vadd.f32 0.0, %v2145
      %2147 = vmatmul.f32.gmra.mxu0 %v2026
      %v2148 = vpop.f32.mrf.mxu0
      %v2149 = vadd.f32 0.0, %v2148
      %2150 = vmatmul.f32.gmra.mxu0 %v2027
      %v2151 = vpop.f32.mrf.mxu0
      %v2152 = vadd.f32 0.0, %v2151
      %2153 = vmatmul.f32.gmra.mxu0 %v2028
      %v2154 = vpop.f32.mrf.mxu0
      %v2155 = vadd.f32 0.0, %v2154
      %2156 = vmatmul.f32.gmra.mxu0 %v2029
      %v2157 = vpop.f32.mrf.mxu0
      %v2158 = vadd.f32 0.0, %v2157
      %2159 = vmatmul.f32.gmra.mxu0 %v2030
      %v2160 = vpop.f32.mrf.mxu0
      %v2161 = vadd.f32 0.0, %v2160
      %2162 = vmatmul.f32.gmra.mxu0 %v2031
      %v2163 = vpop.f32.mrf.mxu0
      %v2164 = vadd.f32 0.0, %v2163
      %2165 = vmatmul.f32.gmra.mxu0 %v2032
      %v2166 = vpop.f32.mrf.mxu0
      %v2167 = vadd.f32 0.0, %v2166
      %2168 = vmatmul.f32.gmra.mxu0 %v2033
      %v2169 = vpop.f32.mrf.mxu0
      %v2170 = vadd.f32 0.0, %v2169
      %2171 = vmatmul.f32.gmra.mxu0 %v2034
      %v2172 = vpop.f32.mrf.mxu0
      %v2173 = vadd.f32 0.0, %v2172
      %2174 = vmatmul.f32.gmra.mxu0 %v2035
      %v2175 = vpop.f32.mrf.mxu0
      %v2176 = vadd.f32 0.0, %v2175
      %2177 = vdwg.mxu0
      %v2178 = vadd.f32 %v1964, %v2071
      %v2179 = vadd.f32 %v1965, %v2074
      %v2180 = vadd.f32 %v1966, %v2077
      %v2181 = vadd.f32 %v1967, %v2080
      %v2182 = vadd.f32 %v1968, %v2083
      %v2183 = vadd.f32 %v1969, %v2086
      %v2184 = vadd.f32 %v1970, %v2089
      %v2185 = vadd.f32 %v1971, %v2092
      %v2186 = vadd.f32 %v1972, %v2095
      %v2187 = vadd.f32 %v1973, %v2098
      %v2188 = vadd.f32 %v1974, %v2101
      %v2189 = vadd.f32 %v1975, %v2104
      %v2190 = vadd.f32 %v1976, %v2107
      %v2191 = vadd.f32 %v1977, %v2110
      %v2192 = vadd.f32 %v1978, %v2113
      %v2193 = vadd.f32 %v1979, %v2116
      %v2194 = vadd.f32 %v1980, %v2119
      %v2195 = vadd.f32 %v1981, %v2122
      %v2196 = vadd.f32 %v1982, %v2125
      %v2197 = vadd.f32 %v1983, %v2128
      %v2198 = vadd.f32 %v1984, %v2131
      %v2199 = vadd.f32 %v1985, %v2134
      %v2200 = vadd.f32 %v1986, %v2137
      %v2201 = vadd.f32 %v1987, %v2140
      %v2202 = vadd.f32 %v1988, %v2143
      %v2203 = vadd.f32 %v1989, %v2146
      %v2204 = vadd.f32 %v1990, %v2149
      %v2205 = vadd.f32 %v1991, %v2152
      %v2206 = vadd.f32 %v1992, %v2155
      %v2207 = vadd.f32 %v1993, %v2158
      %v2208 = vadd.f32 %v1994, %v2161
      %v2209 = vadd.f32 %v1995, %v2164
      %v2210 = vadd.f32 %v1996, %v2167
      %v2211 = vadd.f32 %v1997, %v2170
      %v2212 = vadd.f32 %v1998, %v2173
      %v2213 = vadd.f32 %v1999, %v2176
      %v2214 = vld [vmem:[%s2] sm:$0x1]
      %v2216 = vperm.slane %v2214, 0
      %v2218 = vadd.f32 %v2178, %v2216
      %v2219 = vadd.f32 %v2179, %v2216
      %v2220 = vadd.f32 %v2180, %v2216
      %v2221 = vadd.f32 %v2181, %v2216
      %v2222 = vadd.f32 %v2182, %v2216
      %v2223 = vadd.f32 %v2183, %v2216
      %v2224 = vadd.f32 %v2184, %v2216
      %v2225 = vadd.f32 %v2185, %v2216
      %v2226 = vadd.f32 %v2186, %v2216
      %v2227 = vadd.f32 %v2187, %v2216
      %v2228 = vadd.f32 %v2188, %v2216
      %v2229 = vadd.f32 %v2189, %v2216
      %v2230 = vadd.f32 %v2190, %v2216
      %v2231 = vadd.f32 %v2191, %v2216
      %v2232 = vadd.f32 %v2192, %v2216
      %v2233 = vadd.f32 %v2193, %v2216
      %v2234 = vadd.f32 %v2194, %v2216
      %v2235 = vadd.f32 %v2195, %v2216
      %v2236 = vadd.f32 %v2196, %v2216
      %v2237 = vadd.f32 %v2197, %v2216
      %v2238 = vadd.f32 %v2198, %v2216
      %v2239 = vadd.f32 %v2199, %v2216
      %v2240 = vadd.f32 %v2200, %v2216
      %v2241 = vadd.f32 %v2201, %v2216
      %v2242 = vadd.f32 %v2202, %v2216
      %v2243 = vadd.f32 %v2203, %v2216
      %v2244 = vadd.f32 %v2204, %v2216
      %v2245 = vadd.f32 %v2205, %v2216
      %v2246 = vadd.f32 %v2206, %v2216
      %v2247 = vadd.f32 %v2207, %v2216
      %v2248 = vadd.f32 %v2208, %v2216
      %v2249 = vadd.f32 %v2209, %v2216
      %v2250 = vadd.f32 %v2210, %v2216
      %v2251 = vadd.f32 %v2211, %v2216
      %v2252 = vadd.f32 %v2212, %v2216
      %v2253 = vadd.f32 %v2213, %v2216
      %v2254 = vmax.f32 %v2218, 0.0
      %v2255 = vmax.f32 %v2219, 0.0
      %v2256 = vmax.f32 %v2220, 0.0
      %v2257 = vmax.f32 %v2221, 0.0
      %v2258 = vmax.f32 %v2222, 0.0
      %v2259 = vmax.f32 %v2223, 0.0
      %v2260 = vmax.f32 %v2224, 0.0
      %v2261 = vmax.f32 %v2225, 0.0
      %v2262 = vmax.f32 %v2226, 0.0
      %v2263 = vmax.f32 %v2227, 0.0
      %v2264 = vmax.f32 %v2228, 0.0
      %v2265 = vmax.f32 %v2229, 0.0
      %v2266 = vmax.f32 %v2230, 0.0
      %v2267 = vmax.f32 %v2231, 0.0
      %v2268 = vmax.f32 %v2232, 0.0
      %v2269 = vmax.f32 %v2233, 0.0
      %v2270 = vmax.f32 %v2234, 0.0
      %v2271 = vmax.f32 %v2235, 0.0
      %v2272 = vmax.f32 %v2236, 0.0
      %v2273 = vmax.f32 %v2237, 0.0
      %v2274 = vmax.f32 %v2238, 0.0
      %v2275 = vmax.f32 %v2239, 0.0
      %v2276 = vmax.f32 %v2240, 0.0
      %v2277 = vmax.f32 %v2241, 0.0
      %v2278 = vmax.f32 %v2242, 0.0
      %v2279 = vmax.f32 %v2243, 0.0
      %v2280 = vmax.f32 %v2244, 0.0
      %v2281 = vmax.f32 %v2245, 0.0
      %v2282 = vmax.f32 %v2246, 0.0
      %v2283 = vmax.f32 %v2247, 0.0
      %v2284 = vmax.f32 %v2248, 0.0
      %v2285 = vmax.f32 %v2249, 0.0
      %v2286 = vmax.f32 %v2250, 0.0
      %v2287 = vmax.f32 %v2251, 0.0
      %v2288 = vmax.f32 %v2252, 0.0
      %v2289 = vmax.f32 %v2253, 0.0
      %2290 = vst [vmem:[#allocation3 + $0x1] sm:$0xff] %v2254
      %2291 = vst [vmem:[#allocation3 + $0x9] sm:$0xff] %v2255
      %2292 = vst [vmem:[#allocation3 + $0x19] sm:$0xff] %v2256
      %2293 = vst [vmem:[#allocation3 + $0x21] sm:$0xff] %v2257
      %2294 = vst [vmem:[#allocation3 + $0x31] sm:$0xff] %v2258
      %2295 = vst [vmem:[#allocation3 + $0x39] sm:$0xff] %v2259
      %2296 = vst [vmem:[#allocation3 + $0x49] sm:$0xff] %v2260
      %2297 = vst [vmem:[#allocation3 + $0x51] sm:$0xff] %v2261
      %2298 = vst [vmem:[#allocation3 + $0x61] sm:$0xff] %v2262
      %2299 = vst [vmem:[#allocation3 + $0x69] sm:$0xff] %v2263
      %2300 = vst [vmem:[#allocation3 + $0x79] sm:$0xff] %v2264
      %2301 = vst [vmem:[#allocation3 + $0x81] sm:$0xff] %v2265
      %2302 = vst [vmem:[#allocation3 + $0x91] sm:$0xff] %v2266
      %2303 = vst [vmem:[#allocation3 + $0x99] sm:$0xff] %v2267
      %2304 = vst [vmem:[#allocation3 + $0xa9] sm:$0xff] %v2268
      %2305 = vst [vmem:[#allocation3 + $0xb1] sm:$0xff] %v2269
      %2306 = vst [vmem:[#allocation3 + $0xc1] sm:$0xff] %v2270
      %2307 = vst [vmem:[#allocation3 + $0xc9] sm:$0xff] %v2271
      %2308 = vst [vmem:[#allocation3 + $0xd9] sm:$0xff] %v2272
      %2309 = vst [vmem:[#allocation3 + $0xe1] sm:$0xff] %v2273
      %2310 = vst [vmem:[#allocation3 + $0xf1] sm:$0xff] %v2274
      %2311 = vst [vmem:[#allocation3 + $0xf9] sm:$0xff] %v2275
      %2312 = vst [vmem:[#allocation3 + $0x109] sm:$0xff] %v2276
      %2313 = vst [vmem:[#allocation3 + $0x111] sm:$0xff] %v2277
      %2314 = vst [vmem:[#allocation3 + $0x121] sm:$0xff] %v2278
      %2315 = vst [vmem:[#allocation3 + $0x129] sm:$0xff] %v2279
      %2316 = vst [vmem:[#allocation3 + $0x139] sm:$0xff] %v2280
      %2317 = vst [vmem:[#allocation3 + $0x141] sm:$0xff] %v2281
      %2318 = vst [vmem:[#allocation3 + $0x151] sm:$0xff] %v2282
      %2319 = vst [vmem:[#allocation3 + $0x159] sm:$0xff] %v2283
      %2320 = vst [vmem:[#allocation3 + $0x169] sm:$0xff] %v2284
      %2321 = vst [vmem:[#allocation3 + $0x171] sm:$0xff] %v2285
      %2322 = vst [vmem:[#allocation3 + $0x181] sm:$0xff] %v2286
      %2323 = vst [vmem:[#allocation3 + $0x189] sm:$0xff] %v2287
      %2324 = vst [vmem:[#allocation3 + $0x199] sm:$0xff] %v2288
      %2325 = vst [vmem:[#allocation3 + $0x1a1] sm:$0xff] %v2289
      %2326 = vst [vmem:[#allocation3] sm:$0x1] 0.0
      %2327 = vst [vmem:[#allocation3 + $0x18] sm:$0x1] 0.0
      %2328 = vst [vmem:[#allocation3 + $0x30] sm:$0x1] 0.0
      %2329 = vst [vmem:[#allocation3 + $0x48] sm:$0x1] 0.0
      %2330 = vst [vmem:[#allocation3 + $0x60] sm:$0x1] 0.0
      %2331 = vst [vmem:[#allocation3 + $0x78] sm:$0x1] 0.0
      %2332 = vst [vmem:[#allocation3 + $0x90] sm:$0x1] 0.0
      %2333 = vst [vmem:[#allocation3 + $0xa8] sm:$0x1] 0.0
      %2334 = vst [vmem:[#allocation3 + $0xc0] sm:$0x1] 0.0
      %2335 = vst [vmem:[#allocation3 + $0xd8] sm:$0x1] 0.0
      %2336 = vst [vmem:[#allocation3 + $0xf0] sm:$0x1] 0.0
      %2337 = vst [vmem:[#allocation3 + $0x108] sm:$0x1] 0.0
      %2338 = vst [vmem:[#allocation3 + $0x120] sm:$0x1] 0.0
      %2339 = vst [vmem:[#allocation3 + $0x138] sm:$0x1] 0.0
      %2340 = vst [vmem:[#allocation3 + $0x150] sm:$0x1] 0.0
      %2341 = vst [vmem:[#allocation3 + $0x168] sm:$0x1] 0.0
      %2342 = vst [vmem:[#allocation3 + $0x180] sm:$0x1] 0.0
      %2343 = vst [vmem:[#allocation3 + $0x198] sm:$0x1] 0.0
      %2344 = vst [vmem:[#allocation3 + $0x11] sm:$0x1] 0.0
      %2345 = vst [vmem:[#allocation3 + $0x29] sm:$0x1] 0.0
      %2346 = vst [vmem:[#allocation3 + $0x41] sm:$0x1] 0.0
      %2347 = vst [vmem:[#allocation3 + $0x59] sm:$0x1] 0.0
      %2348 = vst [vmem:[#allocation3 + $0x71] sm:$0x1] 0.0
      %2349 = vst [vmem:[#allocation3 + $0x89] sm:$0x1] 0.0
      %2350 = vst [vmem:[#allocation3 + $0xa1] sm:$0x1] 0.0
      %2351 = vst [vmem:[#allocation3 + $0xb9] sm:$0x1] 0.0
      %2352 = vst [vmem:[#allocation3 + $0xd1] sm:$0x1] 0.0
      %2353 = vst [vmem:[#allocation3 + $0xe9] sm:$0x1] 0.0
      %2354 = vst [vmem:[#allocation3 + $0x101] sm:$0x1] 0.0
      %2355 = vst [vmem:[#allocation3 + $0x119] sm:$0x1] 0.0
      %2356 = vst [vmem:[#allocation3 + $0x131] sm:$0x1] 0.0
      %2357 = vst [vmem:[#allocation3 + $0x149] sm:$0x1] 0.0
      %2358 = vst [vmem:[#allocation3 + $0x161] sm:$0x1] 0.0
      %2359 = vst [vmem:[#allocation3 + $0x179] sm:$0x1] 0.0
      %2360 = vst [vmem:[#allocation3 + $0x191] sm:$0x1] 0.0
      %2361 = vst [vmem:[#allocation3 + $0x1a9] sm:$0x1] 0.0
      %p2362 = scmp.eq.s32.totalorder %s21, 0
      // Predicated region
      $region59: #{_lambda_.1} parent=35 // pred_check
        %p2363 = pneg %p2362
      $region60: #{_lambda_.1} parent=35 // pred_check_branch
        %2365 = sbr.rel (%p2363) target = $region62
      $region61: #{_lambda_.1} parent=35 // pred_region
        %2366 = vst [vmem:[#allocation3] sm:$0xff] 0.0
        %2367 = vst [vmem:[#allocation3 + $0x8] sm:$0xff] 0.0
        %2368 = vst [vmem:[#allocation3 + $0x10] sm:$0x3] 0.0
        %s2369 = scalar_lea.vmem [#allocation3], 408
        %2370 = vst [vmem:[%s2369] sm:$0xff] 0.0
        %2371 = vst [vmem:[%s2369 + $0x8] sm:$0xff] 0.0
        %2372 = vst [vmem:[%s2369 + $0x10] sm:$0x3] 0.0
      $region62: #{_lambda_.1} parent=35 // pred_fallthru
        _
      %v2373 = vld [vmem:[#allocation3] sm:$0xff]
      %v2374 = vld [vmem:[#allocation3 + $0x8] sm:$0xff]
      %v2375 = vld [vmem:[#allocation3 + $0x18] sm:$0xff]
      %v2376 = vld [vmem:[#allocation3 + $0x20] sm:$0xff]
      %v2377 = vld [vmem:[#allocation3 + $0x30] sm:$0xff]
      %v2378 = vld [vmem:[#allocation3 + $0x38] sm:$0xff]
      %v2379 = vld [vmem:[#allocation3 + $0x48] sm:$0xff]
      %v2380 = vld [vmem:[#allocation3 + $0x50] sm:$0xff]
      %v2381 = vld [vmem:[#allocation3 + $0x60] sm:$0xff]
      %v2382 = vld [vmem:[#allocation3 + $0x68] sm:$0xff]
      %v2383 = vld [vmem:[#allocation3 + $0x78] sm:$0xff]
      %v2384 = vld [vmem:[#allocation3 + $0x80] sm:$0xff]
      %v2385 = vld [vmem:[#allocation3 + $0x90] sm:$0xff]
      %v2386 = vld [vmem:[#allocation3 + $0x98] sm:$0xff]
      %v2387 = vld [vmem:[#allocation3 + $0xa8] sm:$0xff]
      %v2388 = vld [vmem:[#allocation3 + $0xb0] sm:$0xff]
      %v2389 = vld [vmem:[#allocation3 + $0xc0] sm:$0xff]
      %v2390 = vld [vmem:[#allocation3 + $0xc8] sm:$0xff]
      %v2391 = vld [vmem:[#allocation3 + $0xd8] sm:$0xff]
      %v2392 = vld [vmem:[#allocation3 + $0xe0] sm:$0xff]
      %v2393 = vld [vmem:[#allocation3 + $0xf0] sm:$0xff]
      %v2394 = vld [vmem:[#allocation3 + $0xf8] sm:$0xff]
      %v2395 = vld [vmem:[#allocation3 + $0x108] sm:$0xff]
      %v2396 = vld [vmem:[#allocation3 + $0x110] sm:$0xff]
      %v2397 = vld [vmem:[#allocation3 + $0x120] sm:$0xff]
      %v2398 = vld [vmem:[#allocation3 + $0x128] sm:$0xff]
      %v2399 = vld [vmem:[#allocation3 + $0x138] sm:$0xff]
      %v2400 = vld [vmem:[#allocation3 + $0x140] sm:$0xff]
      %v2401 = vld [vmem:[#allocation3 + $0x150] sm:$0xff]
      %v2402 = vld [vmem:[#allocation3 + $0x158] sm:$0xff]
      %v2403 = vld [vmem:[#allocation3 + $0x168] sm:$0xff]
      %v2404 = vld [vmem:[#allocation3 + $0x170] sm:$0xff]
      %v2405 = vld [vmem:[%s3] sm:$0xff]
      %v2406 = vld [vmem:[%s3 + $0x8] sm:$0xff]
      %v2407 = vld [vmem:[%s3 + $0x10] sm:$0xff]
      %v2408 = vld [vmem:[%s3 + $0x18] sm:$0xff]
      %v2409 = vld [vmem:[%s3 + $0x20] sm:$0xff]
      %v2410 = vld [vmem:[%s3 + $0x28] sm:$0xff]
      %v2411 = vld [vmem:[%s3 + $0x30] sm:$0xff]
      %v2412 = vld [vmem:[%s3 + $0x38] sm:$0xff]
      %v2413 = vld [vmem:[%s3 + $0x40] sm:$0xff]
      %v2414 = vld [vmem:[%s3 + $0x48] sm:$0xff]
      %v2415 = vld [vmem:[%s3 + $0x50] sm:$0xff]
      %v2416 = vld [vmem:[%s3 + $0x58] sm:$0xff]
      %v2417 = vld [vmem:[%s3 + $0x60] sm:$0xff]
      %v2418 = vld [vmem:[%s3 + $0x68] sm:$0xff]
      %v2419 = vld [vmem:[%s3 + $0x70] sm:$0xff]
      %v2420 = vld [vmem:[%s3 + $0x78] sm:$0xff]
      %v2421 = vld [vmem:[#allocation3 + $0x1] sm:$0xff]
      %v2422 = vld [vmem:[#allocation3 + $0x9] sm:$0xff]
      %v2423 = vld [vmem:[#allocation3 + $0x19] sm:$0xff]
      %v2424 = vld [vmem:[#allocation3 + $0x21] sm:$0xff]
      %v2425 = vld [vmem:[#allocation3 + $0x31] sm:$0xff]
      %v2426 = vld [vmem:[#allocation3 + $0x39] sm:$0xff]
      %v2427 = vld [vmem:[#allocation3 + $0x49] sm:$0xff]
      %v2428 = vld [vmem:[#allocation3 + $0x51] sm:$0xff]
      %v2429 = vld [vmem:[#allocation3 + $0x61] sm:$0xff]
      %v2430 = vld [vmem:[#allocation3 + $0x69] sm:$0xff]
      %v2431 = vld [vmem:[#allocation3 + $0x79] sm:$0xff]
      %v2432 = vld [vmem:[#allocation3 + $0x81] sm:$0xff]
      %v2433 = vld [vmem:[#allocation3 + $0x91] sm:$0xff]
      %v2434 = vld [vmem:[#allocation3 + $0x99] sm:$0xff]
      %v2435 = vld [vmem:[#allocation3 + $0xa9] sm:$0xff]
      %v2436 = vld [vmem:[#allocation3 + $0xb1] sm:$0xff]
      %v2437 = vld [vmem:[#allocation3 + $0xc1] sm:$0xff]
      %v2438 = vld [vmem:[#allocation3 + $0xc9] sm:$0xff]
      %v2439 = vld [vmem:[#allocation3 + $0xd9] sm:$0xff]
      %v2440 = vld [vmem:[#allocation3 + $0xe1] sm:$0xff]
      %v2441 = vld [vmem:[#allocation3 + $0xf1] sm:$0xff]
      %v2442 = vld [vmem:[#allocation3 + $0xf9] sm:$0xff]
      %v2443 = vld [vmem:[#allocation3 + $0x109] sm:$0xff]
      %v2444 = vld [vmem:[#allocation3 + $0x111] sm:$0xff]
      %v2445 = vld [vmem:[#allocation3 + $0x121] sm:$0xff]
      %v2446 = vld [vmem:[#allocation3 + $0x129] sm:$0xff]
      %v2447 = vld [vmem:[#allocation3 + $0x139] sm:$0xff]
      %v2448 = vld [vmem:[#allocation3 + $0x141] sm:$0xff]
      %v2449 = vld [vmem:[#allocation3 + $0x151] sm:$0xff]
      %v2450 = vld [vmem:[#allocation3 + $0x159] sm:$0xff]
      %v2451 = vld [vmem:[#allocation3 + $0x169] sm:$0xff]
      %v2452 = vld [vmem:[#allocation3 + $0x171] sm:$0xff]
      %s2453 = scalar_lea.vmem %s3, 128
      %v2454 = vld [vmem:[%s2453] sm:$0xff]
      %v2455 = vld [vmem:[%s2453 + $0x8] sm:$0xff]
      %v2456 = vld [vmem:[%s2453 + $0x10] sm:$0xff]
      %v2457 = vld [vmem:[%s2453 + $0x18] sm:$0xff]
      %v2458 = vld [vmem:[%s2453 + $0x20] sm:$0xff]
      %v2459 = vld [vmem:[%s2453 + $0x28] sm:$0xff]
      %v2460 = vld [vmem:[%s2453 + $0x30] sm:$0xff]
      %v2461 = vld [vmem:[%s2453 + $0x38] sm:$0xff]
      %v2462 = vld [vmem:[%s2453 + $0x40] sm:$0xff]
      %v2463 = vld [vmem:[%s2453 + $0x48] sm:$0xff]
      %v2464 = vld [vmem:[%s2453 + $0x50] sm:$0xff]
      %v2465 = vld [vmem:[%s2453 + $0x58] sm:$0xff]
      %v2466 = vld [vmem:[%s2453 + $0x60] sm:$0xff]
      %v2467 = vld [vmem:[%s2453 + $0x68] sm:$0xff]
      %v2468 = vld [vmem:[%s2453 + $0x70] sm:$0xff]
      %v2469 = vld [vmem:[%s2453 + $0x78] sm:$0xff]
      %2470 = vmatpush.msra.mxu0 %v2469
      %2471 = vmatpush.msra.mxu0 %v2468
      %2472 = vmatpush.msra.mxu0 %v2467
      %2473 = vmatpush.msra.mxu0 %v2466
      %2474 = vmatpush.msra.mxu0 %v2465
      %2475 = vmatpush.msra.mxu0 %v2464
      %2476 = vmatpush.msra.mxu0 %v2463
      %2477 = vmatpush.msra.mxu0 %v2462
      %2478 = vmatpush.msra.mxu0 %v2461
      %2479 = vmatpush.msra.mxu0 %v2460
      %2480 = vmatpush.msra.mxu0 %v2459
      %2481 = vmatpush.msra.mxu0 %v2458
      %2482 = vmatpush.msra.mxu0 %v2457
      %2483 = vmatpush.msra.mxu0 %v2456
      %2484 = vmatpush.msra.mxu0 %v2455
      %2485 = vmatpush.msra.mxu0 %v2454
      %2486 = vmatmul.f32.gmra.mxu0 %v2421
      %v2487 = vpop.f32.mrf.mxu0
      %v2488 = vadd.f32 0.0, %v2487
      %2489 = vmatmul.f32.gmra.mxu0 %v2422
      %v2490 = vpop.f32.mrf.mxu0
      %v2491 = vadd.f32 0.0, %v2490
      %2492 = vmatmul.f32.gmra.mxu0 %v2423
      %v2493 = vpop.f32.mrf.mxu0
      %v2494 = vadd.f32 0.0, %v2493
      %2495 = vmatmul.f32.gmra.mxu0 %v2424
      %v2496 = vpop.f32.mrf.mxu0
      %v2497 = vadd.f32 0.0, %v2496
      %2498 = vmatmul.f32.gmra.mxu0 %v2425
      %v2499 = vpop.f32.mrf.mxu0
      %v2500 = vadd.f32 0.0, %v2499
      %2501 = vmatmul.f32.gmra.mxu0 %v2426
      %v2502 = vpop.f32.mrf.mxu0
      %v2503 = vadd.f32 0.0, %v2502
      %2504 = vmatmul.f32.gmra.mxu0 %v2427
      %v2505 = vpop.f32.mrf.mxu0
      %v2506 = vadd.f32 0.0, %v2505
      %2507 = vmatmul.f32.gmra.mxu0 %v2428
      %v2508 = vpop.f32.mrf.mxu0
      %v2509 = vadd.f32 0.0, %v2508
      %2510 = vmatmul.f32.gmra.mxu0 %v2429
      %v2511 = vpop.f32.mrf.mxu0
      %v2512 = vadd.f32 0.0, %v2511
      %2513 = vmatmul.f32.gmra.mxu0 %v2430
      %v2514 = vpop.f32.mrf.mxu0
      %v2515 = vadd.f32 0.0, %v2514
      %2516 = vmatmul.f32.gmra.mxu0 %v2431
      %v2517 = vpop.f32.mrf.mxu0
      %v2518 = vadd.f32 0.0, %v2517
      %2519 = vmatmul.f32.gmra.mxu0 %v2432
      %v2520 = vpop.f32.mrf.mxu0
      %v2521 = vadd.f32 0.0, %v2520
      %2522 = vmatmul.f32.gmra.mxu0 %v2433
      %v2523 = vpop.f32.mrf.mxu0
      %v2524 = vadd.f32 0.0, %v2523
      %2525 = vmatmul.f32.gmra.mxu0 %v2434
      %v2526 = vpop.f32.mrf.mxu0
      %v2527 = vadd.f32 0.0, %v2526
      %2528 = vmatmul.f32.gmra.mxu0 %v2435
      %v2529 = vpop.f32.mrf.mxu0
      %v2530 = vadd.f32 0.0, %v2529
      %2531 = vmatmul.f32.gmra.mxu0 %v2436
      %v2532 = vpop.f32.mrf.mxu0
      %v2533 = vadd.f32 0.0, %v2532
      %2534 = vmatmul.f32.gmra.mxu0 %v2437
      %v2535 = vpop.f32.mrf.mxu0
      %v2536 = vadd.f32 0.0, %v2535
      %2537 = vmatmul.f32.gmra.mxu0 %v2438
      %v2538 = vpop.f32.mrf.mxu0
      %v2539 = vadd.f32 0.0, %v2538
      %2540 = vmatmul.f32.gmra.mxu0 %v2439
      %v2541 = vpop.f32.mrf.mxu0
      %v2542 = vadd.f32 0.0, %v2541
      %2543 = vmatmul.f32.gmra.mxu0 %v2440
      %v2544 = vpop.f32.mrf.mxu0
      %v2545 = vadd.f32 0.0, %v2544
      %2546 = vmatmul.f32.gmra.mxu0 %v2441
      %v2547 = vpop.f32.mrf.mxu0
      %v2548 = vadd.f32 0.0, %v2547
      %2549 = vmatmul.f32.gmra.mxu0 %v2442
      %v2550 = vpop.f32.mrf.mxu0
      %v2551 = vadd.f32 0.0, %v2550
      %2552 = vmatmul.f32.gmra.mxu0 %v2443
      %v2553 = vpop.f32.mrf.mxu0
      %v2554 = vadd.f32 0.0, %v2553
      %2555 = vmatmul.f32.gmra.mxu0 %v2444
      %v2556 = vpop.f32.mrf.mxu0
      %v2557 = vadd.f32 0.0, %v2556
      %2558 = vmatmul.f32.gmra.mxu0 %v2445
      %v2559 = vpop.f32.mrf.mxu0
      %v2560 = vadd.f32 0.0, %v2559
      %2561 = vmatmul.f32.gmra.mxu0 %v2446
      %v2562 = vpop.f32.mrf.mxu0
      %v2563 = vadd.f32 0.0, %v2562
      %2564 = vmatmul.f32.gmra.mxu0 %v2447
      %v2565 = vpop.f32.mrf.mxu0
      %v2566 = vadd.f32 0.0, %v2565
      %2567 = vmatmul.f32.gmra.mxu0 %v2448
      %v2568 = vpop.f32.mrf.mxu0
      %v2569 = vadd.f32 0.0, %v2568
      %2570 = vmatmul.f32.gmra.mxu0 %v2449
      %v2571 = vpop.f32.mrf.mxu0
      %v2572 = vadd.f32 0.0, %v2571
      %2573 = vmatmul.f32.gmra.mxu0 %v2450
      %v2574 = vpop.f32.mrf.mxu0
      %v2575 = vadd.f32 0.0, %v2574
      %2576 = vmatmul.f32.gmra.mxu0 %v2451
      %v2577 = vpop.f32.mrf.mxu0
      %v2578 = vadd.f32 0.0, %v2577
      %2579 = vmatmul.f32.gmra.mxu0 %v2452
      %v2580 = vpop.f32.mrf.mxu0
      %v2581 = vadd.f32 0.0, %v2580
      %2582 = vdwg.mxu0
      %2583 = vmatpush.msra.mxu0 %v2420
      %2584 = vmatpush.msra.mxu0 %v2419
      %2585 = vmatpush.msra.mxu0 %v2418
      %2586 = vmatpush.msra.mxu0 %v2417
      %2587 = vmatpush.msra.mxu0 %v2416
      %2588 = vmatpush.msra.mxu0 %v2415
      %2589 = vmatpush.msra.mxu0 %v2414
      %2590 = vmatpush.msra.mxu0 %v2413
      %2591 = vmatpush.msra.mxu0 %v2412
      %2592 = vmatpush.msra.mxu0 %v2411
      %2593 = vmatpush.msra.mxu0 %v2410
      %2594 = vmatpush.msra.mxu0 %v2409
      %2595 = vmatpush.msra.mxu0 %v2408
      %2596 = vmatpush.msra.mxu0 %v2407
      %2597 = vmatpush.msra.mxu0 %v2406
      %2598 = vmatpush.msra.mxu0 %v2405
      %2599 = vmatmul.f32.gmra.mxu0 %v2373
      %v2600 = vpop.f32.mrf.mxu0
      %v2601 = vadd.f32 %v2488, %v2600
      %2602 = vmatmul.f32.gmra.mxu0 %v2374
      %v2603 = vpop.f32.mrf.mxu0
      %v2604 = vadd.f32 %v2491, %v2603
      %2605 = vmatmul.f32.gmra.mxu0 %v2375
      %v2606 = vpop.f32.mrf.mxu0
      %v2607 = vadd.f32 %v2494, %v2606
      %2608 = vmatmul.f32.gmra.mxu0 %v2376
      %v2609 = vpop.f32.mrf.mxu0
      %v2610 = vadd.f32 %v2497, %v2609
      %2611 = vmatmul.f32.gmra.mxu0 %v2377
      %v2612 = vpop.f32.mrf.mxu0
      %v2613 = vadd.f32 %v2500, %v2612
      %2614 = vmatmul.f32.gmra.mxu0 %v2378
      %v2615 = vpop.f32.mrf.mxu0
      %v2616 = vadd.f32 %v2503, %v2615
      %2617 = vmatmul.f32.gmra.mxu0 %v2379
      %v2618 = vpop.f32.mrf.mxu0
      %v2619 = vadd.f32 %v2506, %v2618
      %2620 = vmatmul.f32.gmra.mxu0 %v2380
      %v2621 = vpop.f32.mrf.mxu0
      %v2622 = vadd.f32 %v2509, %v2621
      %2623 = vmatmul.f32.gmra.mxu0 %v2381
      %v2624 = vpop.f32.mrf.mxu0
      %v2625 = vadd.f32 %v2512, %v2624
      %2626 = vmatmul.f32.gmra.mxu0 %v2382
      %v2627 = vpop.f32.mrf.mxu0
      %v2628 = vadd.f32 %v2515, %v2627
      %2629 = vmatmul.f32.gmra.mxu0 %v2383
      %v2630 = vpop.f32.mrf.mxu0
      %v2631 = vadd.f32 %v2518, %v2630
      %2632 = vmatmul.f32.gmra.mxu0 %v2384
      %v2633 = vpop.f32.mrf.mxu0
      %v2634 = vadd.f32 %v2521, %v2633
      %2635 = vmatmul.f32.gmra.mxu0 %v2385
      %v2636 = vpop.f32.mrf.mxu0
      %v2637 = vadd.f32 %v2524, %v2636
      %2638 = vmatmul.f32.gmra.mxu0 %v2386
      %v2639 = vpop.f32.mrf.mxu0
      %v2640 = vadd.f32 %v2527, %v2639
      %2641 = vmatmul.f32.gmra.mxu0 %v2387
      %v2642 = vpop.f32.mrf.mxu0
      %v2643 = vadd.f32 %v2530, %v2642
      %2644 = vmatmul.f32.gmra.mxu0 %v2388
      %v2645 = vpop.f32.mrf.mxu0
      %v2646 = vadd.f32 %v2533, %v2645
      %2647 = vmatmul.f32.gmra.mxu0 %v2389
      %v2648 = vpop.f32.mrf.mxu0
      %v2649 = vadd.f32 %v2536, %v2648
      %2650 = vmatmul.f32.gmra.mxu0 %v2390
      %v2651 = vpop.f32.mrf.mxu0
      %v2652 = vadd.f32 %v2539, %v2651
      %2653 = vmatmul.f32.gmra.mxu0 %v2391
      %v2654 = vpop.f32.mrf.mxu0
      %v2655 = vadd.f32 %v2542, %v2654
      %2656 = vmatmul.f32.gmra.mxu0 %v2392
      %v2657 = vpop.f32.mrf.mxu0
      %v2658 = vadd.f32 %v2545, %v2657
      %2659 = vmatmul.f32.gmra.mxu0 %v2393
      %v2660 = vpop.f32.mrf.mxu0
      %v2661 = vadd.f32 %v2548, %v2660
      %2662 = vmatmul.f32.gmra.mxu0 %v2394
      %v2663 = vpop.f32.mrf.mxu0
      %v2664 = vadd.f32 %v2551, %v2663
      %2665 = vmatmul.f32.gmra.mxu0 %v2395
      %v2666 = vpop.f32.mrf.mxu0
      %v2667 = vadd.f32 %v2554, %v2666
      %2668 = vmatmul.f32.gmra.mxu0 %v2396
      %v2669 = vpop.f32.mrf.mxu0
      %v2670 = vadd.f32 %v2557, %v2669
      %2671 = vmatmul.f32.gmra.mxu0 %v2397
      %v2672 = vpop.f32.mrf.mxu0
      %v2673 = vadd.f32 %v2560, %v2672
      %2674 = vmatmul.f32.gmra.mxu0 %v2398
      %v2675 = vpop.f32.mrf.mxu0
      %v2676 = vadd.f32 %v2563, %v2675
      %2677 = vmatmul.f32.gmra.mxu0 %v2399
      %v2678 = vpop.f32.mrf.mxu0
      %v2679 = vadd.f32 %v2566, %v2678
      %2680 = vmatmul.f32.gmra.mxu0 %v2400
      %v2681 = vpop.f32.mrf.mxu0
      %v2682 = vadd.f32 %v2569, %v2681
      %2683 = vmatmul.f32.gmra.mxu0 %v2401
      %v2684 = vpop.f32.mrf.mxu0
      %v2685 = vadd.f32 %v2572, %v2684
      %2686 = vmatmul.f32.gmra.mxu0 %v2402
      %v2687 = vpop.f32.mrf.mxu0
      %v2688 = vadd.f32 %v2575, %v2687
      %2689 = vmatmul.f32.gmra.mxu0 %v2403
      %v2690 = vpop.f32.mrf.mxu0
      %v2691 = vadd.f32 %v2578, %v2690
      %2692 = vmatmul.f32.gmra.mxu0 %v2404
      %v2693 = vpop.f32.mrf.mxu0
      %v2694 = vadd.f32 %v2581, %v2693
      %2695 = vdwg.mxu0
      %v2696 = vld [vmem:[#allocation3 + $0x2] sm:$0xff]
      %v2697 = vld [vmem:[#allocation3 + $0xa] sm:$0xff]
      %v2698 = vld [vmem:[#allocation3 + $0x1a] sm:$0xff]
      %v2699 = vld [vmem:[#allocation3 + $0x22] sm:$0xff]
      %v2700 = vld [vmem:[#allocation3 + $0x32] sm:$0xff]
      %v2701 = vld [vmem:[#allocation3 + $0x3a] sm:$0xff]
      %v2702 = vld [vmem:[#allocation3 + $0x4a] sm:$0xff]
      %v2703 = vld [vmem:[#allocation3 + $0x52] sm:$0xff]
      %v2704 = vld [vmem:[#allocation3 + $0x62] sm:$0xff]
      %v2705 = vld [vmem:[#allocation3 + $0x6a] sm:$0xff]
      %v2706 = vld [vmem:[#allocation3 + $0x7a] sm:$0xff]
      %v2707 = vld [vmem:[#allocation3 + $0x82] sm:$0xff]
      %v2708 = vld [vmem:[#allocation3 + $0x92] sm:$0xff]
      %v2709 = vld [vmem:[#allocation3 + $0x9a] sm:$0xff]
      %v2710 = vld [vmem:[#allocation3 + $0xaa] sm:$0xff]
      %v2711 = vld [vmem:[#allocation3 + $0xb2] sm:$0xff]
      %v2712 = vld [vmem:[#allocation3 + $0xc2] sm:$0xff]
      %v2713 = vld [vmem:[#allocation3 + $0xca] sm:$0xff]
      %v2714 = vld [vmem:[#allocation3 + $0xda] sm:$0xff]
      %v2715 = vld [vmem:[#allocation3 + $0xe2] sm:$0xff]
      %v2716 = vld [vmem:[#allocation3 + $0xf2] sm:$0xff]
      %v2717 = vld [vmem:[#allocation3 + $0xfa] sm:$0xff]
      %v2718 = vld [vmem:[#allocation3 + $0x10a] sm:$0xff]
      %v2719 = vld [vmem:[#allocation3 + $0x112] sm:$0xff]
      %v2720 = vld [vmem:[#allocation3 + $0x122] sm:$0xff]
      %v2721 = vld [vmem:[#allocation3 + $0x12a] sm:$0xff]
      %v2722 = vld [vmem:[#allocation3 + $0x13a] sm:$0xff]
      %v2723 = vld [vmem:[#allocation3 + $0x142] sm:$0xff]
      %v2724 = vld [vmem:[#allocation3 + $0x152] sm:$0xff]
      %v2725 = vld [vmem:[#allocation3 + $0x15a] sm:$0xff]
      %v2726 = vld [vmem:[#allocation3 + $0x16a] sm:$0xff]
      %v2727 = vld [vmem:[#allocation3 + $0x172] sm:$0xff]
      %s2728 = scalar_lea.vmem %s3, 256
      %v2729 = vld [vmem:[%s2728] sm:$0xff]
      %v2730 = vld [vmem:[%s2728 + $0x8] sm:$0xff]
      %v2731 = vld [vmem:[%s2728 + $0x10] sm:$0xff]
      %v2732 = vld [vmem:[%s2728 + $0x18] sm:$0xff]
      %v2733 = vld [vmem:[%s2728 + $0x20] sm:$0xff]
      %v2734 = vld [vmem:[%s2728 + $0x28] sm:$0xff]
      %v2735 = vld [vmem:[%s2728 + $0x30] sm:$0xff]
      %v2736 = vld [vmem:[%s2728 + $0x38] sm:$0xff]
      %v2737 = vld [vmem:[%s2728 + $0x40] sm:$0xff]
      %v2738 = vld [vmem:[%s2728 + $0x48] sm:$0xff]
      %v2739 = vld [vmem:[%s2728 + $0x50] sm:$0xff]
      %v2740 = vld [vmem:[%s2728 + $0x58] sm:$0xff]
      %v2741 = vld [vmem:[%s2728 + $0x60] sm:$0xff]
      %v2742 = vld [vmem:[%s2728 + $0x68] sm:$0xff]
      %v2743 = vld [vmem:[%s2728 + $0x70] sm:$0xff]
      %v2744 = vld [vmem:[%s2728 + $0x78] sm:$0xff]
      %2745 = vmatpush.msra.mxu0 %v2744
      %2746 = vmatpush.msra.mxu0 %v2743
      %2747 = vmatpush.msra.mxu0 %v2742
      %2748 = vmatpush.msra.mxu0 %v2741
      %2749 = vmatpush.msra.mxu0 %v2740
      %2750 = vmatpush.msra.mxu0 %v2739
      %2751 = vmatpush.msra.mxu0 %v2738
      %2752 = vmatpush.msra.mxu0 %v2737
      %2753 = vmatpush.msra.mxu0 %v2736
      %2754 = vmatpush.msra.mxu0 %v2735
      %2755 = vmatpush.msra.mxu0 %v2734
      %2756 = vmatpush.msra.mxu0 %v2733
      %2757 = vmatpush.msra.mxu0 %v2732
      %2758 = vmatpush.msra.mxu0 %v2731
      %2759 = vmatpush.msra.mxu0 %v2730
      %2760 = vmatpush.msra.mxu0 %v2729
      %2761 = vmatmul.f32.gmra.mxu0 %v2696
      %v2762 = vpop.f32.mrf.mxu0
      %v2763 = vadd.f32 0.0, %v2762
      %2764 = vmatmul.f32.gmra.mxu0 %v2697
      %v2765 = vpop.f32.mrf.mxu0
      %v2766 = vadd.f32 0.0, %v2765
      %2767 = vmatmul.f32.gmra.mxu0 %v2698
      %v2768 = vpop.f32.mrf.mxu0
      %v2769 = vadd.f32 0.0, %v2768
      %2770 = vmatmul.f32.gmra.mxu0 %v2699
      %v2771 = vpop.f32.mrf.mxu0
      %v2772 = vadd.f32 0.0, %v2771
      %2773 = vmatmul.f32.gmra.mxu0 %v2700
      %v2774 = vpop.f32.mrf.mxu0
      %v2775 = vadd.f32 0.0, %v2774
      %2776 = vmatmul.f32.gmra.mxu0 %v2701
      %v2777 = vpop.f32.mrf.mxu0
      %v2778 = vadd.f32 0.0, %v2777
      %2779 = vmatmul.f32.gmra.mxu0 %v2702
      %v2780 = vpop.f32.mrf.mxu0
      %v2781 = vadd.f32 0.0, %v2780
      %2782 = vmatmul.f32.gmra.mxu0 %v2703
      %v2783 = vpop.f32.mrf.mxu0
      %v2784 = vadd.f32 0.0, %v2783
      %2785 = vmatmul.f32.gmra.mxu0 %v2704
      %v2786 = vpop.f32.mrf.mxu0
      %v2787 = vadd.f32 0.0, %v2786
      %2788 = vmatmul.f32.gmra.mxu0 %v2705
      %v2789 = vpop.f32.mrf.mxu0
      %v2790 = vadd.f32 0.0, %v2789
      %2791 = vmatmul.f32.gmra.mxu0 %v2706
      %v2792 = vpop.f32.mrf.mxu0
      %v2793 = vadd.f32 0.0, %v2792
      %2794 = vmatmul.f32.gmra.mxu0 %v2707
      %v2795 = vpop.f32.mrf.mxu0
      %v2796 = vadd.f32 0.0, %v2795
      %2797 = vmatmul.f32.gmra.mxu0 %v2708
      %v2798 = vpop.f32.mrf.mxu0
      %v2799 = vadd.f32 0.0, %v2798
      %2800 = vmatmul.f32.gmra.mxu0 %v2709
      %v2801 = vpop.f32.mrf.mxu0
      %v2802 = vadd.f32 0.0, %v2801
      %2803 = vmatmul.f32.gmra.mxu0 %v2710
      %v2804 = vpop.f32.mrf.mxu0
      %v2805 = vadd.f32 0.0, %v2804
      %2806 = vmatmul.f32.gmra.mxu0 %v2711
      %v2807 = vpop.f32.mrf.mxu0
      %v2808 = vadd.f32 0.0, %v2807
      %2809 = vmatmul.f32.gmra.mxu0 %v2712
      %v2810 = vpop.f32.mrf.mxu0
      %v2811 = vadd.f32 0.0, %v2810
      %2812 = vmatmul.f32.gmra.mxu0 %v2713
      %v2813 = vpop.f32.mrf.mxu0
      %v2814 = vadd.f32 0.0, %v2813
      %2815 = vmatmul.f32.gmra.mxu0 %v2714
      %v2816 = vpop.f32.mrf.mxu0
      %v2817 = vadd.f32 0.0, %v2816
      %2818 = vmatmul.f32.gmra.mxu0 %v2715
      %v2819 = vpop.f32.mrf.mxu0
      %v2820 = vadd.f32 0.0, %v2819
      %2821 = vmatmul.f32.gmra.mxu0 %v2716
      %v2822 = vpop.f32.mrf.mxu0
      %v2823 = vadd.f32 0.0, %v2822
      %2824 = vmatmul.f32.gmra.mxu0 %v2717
      %v2825 = vpop.f32.mrf.mxu0
      %v2826 = vadd.f32 0.0, %v2825
      %2827 = vmatmul.f32.gmra.mxu0 %v2718
      %v2828 = vpop.f32.mrf.mxu0
      %v2829 = vadd.f32 0.0, %v2828
      %2830 = vmatmul.f32.gmra.mxu0 %v2719
      %v2831 = vpop.f32.mrf.mxu0
      %v2832 = vadd.f32 0.0, %v2831
      %2833 = vmatmul.f32.gmra.mxu0 %v2720
      %v2834 = vpop.f32.mrf.mxu0
      %v2835 = vadd.f32 0.0, %v2834
      %2836 = vmatmul.f32.gmra.mxu0 %v2721
      %v2837 = vpop.f32.mrf.mxu0
      %v2838 = vadd.f32 0.0, %v2837
      %2839 = vmatmul.f32.gmra.mxu0 %v2722
      %v2840 = vpop.f32.mrf.mxu0
      %v2841 = vadd.f32 0.0, %v2840
      %2842 = vmatmul.f32.gmra.mxu0 %v2723
      %v2843 = vpop.f32.mrf.mxu0
      %v2844 = vadd.f32 0.0, %v2843
      %2845 = vmatmul.f32.gmra.mxu0 %v2724
      %v2846 = vpop.f32.mrf.mxu0
      %v2847 = vadd.f32 0.0, %v2846
      %2848 = vmatmul.f32.gmra.mxu0 %v2725
      %v2849 = vpop.f32.mrf.mxu0
      %v2850 = vadd.f32 0.0, %v2849
      %2851 = vmatmul.f32.gmra.mxu0 %v2726
      %v2852 = vpop.f32.mrf.mxu0
      %v2853 = vadd.f32 0.0, %v2852
      %2854 = vmatmul.f32.gmra.mxu0 %v2727
      %v2855 = vpop.f32.mrf.mxu0
      %v2856 = vadd.f32 0.0, %v2855
      %2857 = vdwg.mxu0
      %v2858 = vadd.f32 %v2601, %v2763
      %v2859 = vadd.f32 %v2604, %v2766
      %v2860 = vadd.f32 %v2607, %v2769
      %v2861 = vadd.f32 %v2610, %v2772
      %v2862 = vadd.f32 %v2613, %v2775
      %v2863 = vadd.f32 %v2616, %v2778
      %v2864 = vadd.f32 %v2619, %v2781
      %v2865 = vadd.f32 %v2622, %v2784
      %v2866 = vadd.f32 %v2625, %v2787
      %v2867 = vadd.f32 %v2628, %v2790
      %v2868 = vadd.f32 %v2631, %v2793
      %v2869 = vadd.f32 %v2634, %v2796
      %v2870 = vadd.f32 %v2637, %v2799
      %v2871 = vadd.f32 %v2640, %v2802
      %v2872 = vadd.f32 %v2643, %v2805
      %v2873 = vadd.f32 %v2646, %v2808
      %v2874 = vadd.f32 %v2649, %v2811
      %v2875 = vadd.f32 %v2652, %v2814
      %v2876 = vadd.f32 %v2655, %v2817
      %v2877 = vadd.f32 %v2658, %v2820
      %v2878 = vadd.f32 %v2661, %v2823
      %v2879 = vadd.f32 %v2664, %v2826
      %v2880 = vadd.f32 %v2667, %v2829
      %v2881 = vadd.f32 %v2670, %v2832
      %v2882 = vadd.f32 %v2673, %v2835
      %v2883 = vadd.f32 %v2676, %v2838
      %v2884 = vadd.f32 %v2679, %v2841
      %v2885 = vadd.f32 %v2682, %v2844
      %v2886 = vadd.f32 %v2685, %v2847
      %v2887 = vadd.f32 %v2688, %v2850
      %v2888 = vadd.f32 %v2691, %v2853
      %v2889 = vadd.f32 %v2694, %v2856
      %s2890 = scalar_lea.vmem [#allocation3], 24
      %v2891 = vld [vmem:[%s2890] sm:$0xff]
      %v2892 = vld [vmem:[%s2890 + $0x8] sm:$0xff]
      %v2893 = vld [vmem:[%s2890 + $0x18] sm:$0xff]
      %v2894 = vld [vmem:[%s2890 + $0x20] sm:$0xff]
      %v2895 = vld [vmem:[%s2890 + $0x30] sm:$0xff]
      %v2896 = vld [vmem:[%s2890 + $0x38] sm:$0xff]
      %v2897 = vld [vmem:[%s2890 + $0x48] sm:$0xff]
      %v2898 = vld [vmem:[%s2890 + $0x50] sm:$0xff]
      %v2899 = vld [vmem:[%s2890 + $0x60] sm:$0xff]
      %v2900 = vld [vmem:[%s2890 + $0x68] sm:$0xff]
      %v2901 = vld [vmem:[%s2890 + $0x78] sm:$0xff]
      %v2902 = vld [vmem:[%s2890 + $0x80] sm:$0xff]
      %v2903 = vld [vmem:[%s2890 + $0x90] sm:$0xff]
      %v2904 = vld [vmem:[%s2890 + $0x98] sm:$0xff]
      %v2905 = vld [vmem:[%s2890 + $0xa8] sm:$0xff]
      %v2906 = vld [vmem:[%s2890 + $0xb0] sm:$0xff]
      %v2907 = vld [vmem:[%s2890 + $0xc0] sm:$0xff]
      %v2908 = vld [vmem:[%s2890 + $0xc8] sm:$0xff]
      %v2909 = vld [vmem:[%s2890 + $0xd8] sm:$0xff]
      %v2910 = vld [vmem:[%s2890 + $0xe0] sm:$0xff]
      %v2911 = vld [vmem:[%s2890 + $0xf0] sm:$0xff]
      %v2912 = vld [vmem:[%s2890 + $0xf8] sm:$0xff]
      %v2913 = vld [vmem:[%s2890 + $0x108] sm:$0xff]
      %v2914 = vld [vmem:[%s2890 + $0x110] sm:$0xff]
      %v2915 = vld [vmem:[%s2890 + $0x120] sm:$0xff]
      %v2916 = vld [vmem:[%s2890 + $0x128] sm:$0xff]
      %v2917 = vld [vmem:[%s2890 + $0x138] sm:$0xff]
      %v2918 = vld [vmem:[%s2890 + $0x140] sm:$0xff]
      %v2919 = vld [vmem:[%s2890 + $0x150] sm:$0xff]
      %v2920 = vld [vmem:[%s2890 + $0x158] sm:$0xff]
      %v2921 = vld [vmem:[%s2890 + $0x168] sm:$0xff]
      %v2922 = vld [vmem:[%s2890 + $0x170] sm:$0xff]
      %s2923 = scalar_lea.vmem %s3, 384
      %v2924 = vld [vmem:[%s2923] sm:$0xff]
      %v2925 = vld [vmem:[%s2923 + $0x8] sm:$0xff]
      %v2926 = vld [vmem:[%s2923 + $0x10] sm:$0xff]
      %v2927 = vld [vmem:[%s2923 + $0x18] sm:$0xff]
      %v2928 = vld [vmem:[%s2923 + $0x20] sm:$0xff]
      %v2929 = vld [vmem:[%s2923 + $0x28] sm:$0xff]
      %v2930 = vld [vmem:[%s2923 + $0x30] sm:$0xff]
      %v2931 = vld [vmem:[%s2923 + $0x38] sm:$0xff]
      %v2932 = vld [vmem:[%s2923 + $0x40] sm:$0xff]
      %v2933 = vld [vmem:[%s2923 + $0x48] sm:$0xff]
      %v2934 = vld [vmem:[%s2923 + $0x50] sm:$0xff]
      %v2935 = vld [vmem:[%s2923 + $0x58] sm:$0xff]
      %v2936 = vld [vmem:[%s2923 + $0x60] sm:$0xff]
      %v2937 = vld [vmem:[%s2923 + $0x68] sm:$0xff]
      %v2938 = vld [vmem:[%s2923 + $0x70] sm:$0xff]
      %v2939 = vld [vmem:[%s2923 + $0x78] sm:$0xff]
      %2940 = vmatpush.msra.mxu0 %v2939
      %2941 = vmatpush.msra.mxu0 %v2938
      %2942 = vmatpush.msra.mxu0 %v2937
      %2943 = vmatpush.msra.mxu0 %v2936
      %2944 = vmatpush.msra.mxu0 %v2935
      %2945 = vmatpush.msra.mxu0 %v2934
      %2946 = vmatpush.msra.mxu0 %v2933
      %2947 = vmatpush.msra.mxu0 %v2932
      %2948 = vmatpush.msra.mxu0 %v2931
      %2949 = vmatpush.msra.mxu0 %v2930
      %2950 = vmatpush.msra.mxu0 %v2929
      %2951 = vmatpush.msra.mxu0 %v2928
      %2952 = vmatpush.msra.mxu0 %v2927
      %2953 = vmatpush.msra.mxu0 %v2926
      %2954 = vmatpush.msra.mxu0 %v2925
      %2955 = vmatpush.msra.mxu0 %v2924
      %2956 = vmatmul.f32.gmra.mxu0 %v2891
      %v2957 = vpop.f32.mrf.mxu0
      %v2958 = vadd.f32 0.0, %v2957
      %2959 = vmatmul.f32.gmra.mxu0 %v2892
      %v2960 = vpop.f32.mrf.mxu0
      %v2961 = vadd.f32 0.0, %v2960
      %2962 = vmatmul.f32.gmra.mxu0 %v2893
      %v2963 = vpop.f32.mrf.mxu0
      %v2964 = vadd.f32 0.0, %v2963
      %2965 = vmatmul.f32.gmra.mxu0 %v2894
      %v2966 = vpop.f32.mrf.mxu0
      %v2967 = vadd.f32 0.0, %v2966
      %2968 = vmatmul.f32.gmra.mxu0 %v2895
      %v2969 = vpop.f32.mrf.mxu0
      %v2970 = vadd.f32 0.0, %v2969
      %2971 = vmatmul.f32.gmra.mxu0 %v2896
      %v2972 = vpop.f32.mrf.mxu0
      %v2973 = vadd.f32 0.0, %v2972
      %2974 = vmatmul.f32.gmra.mxu0 %v2897
      %v2975 = vpop.f32.mrf.mxu0
      %v2976 = vadd.f32 0.0, %v2975
      %2977 = vmatmul.f32.gmra.mxu0 %v2898
      %v2978 = vpop.f32.mrf.mxu0
      %v2979 = vadd.f32 0.0, %v2978
      %2980 = vmatmul.f32.gmra.mxu0 %v2899
      %v2981 = vpop.f32.mrf.mxu0
      %v2982 = vadd.f32 0.0, %v2981
      %2983 = vmatmul.f32.gmra.mxu0 %v2900
      %v2984 = vpop.f32.mrf.mxu0
      %v2985 = vadd.f32 0.0, %v2984
      %2986 = vmatmul.f32.gmra.mxu0 %v2901
      %v2987 = vpop.f32.mrf.mxu0
      %v2988 = vadd.f32 0.0, %v2987
      %2989 = vmatmul.f32.gmra.mxu0 %v2902
      %v2990 = vpop.f32.mrf.mxu0
      %v2991 = vadd.f32 0.0, %v2990
      %2992 = vmatmul.f32.gmra.mxu0 %v2903
      %v2993 = vpop.f32.mrf.mxu0
      %v2994 = vadd.f32 0.0, %v2993
      %2995 = vmatmul.f32.gmra.mxu0 %v2904
      %v2996 = vpop.f32.mrf.mxu0
      %v2997 = vadd.f32 0.0, %v2996
      %2998 = vmatmul.f32.gmra.mxu0 %v2905
      %v2999 = vpop.f32.mrf.mxu0
      %v3000 = vadd.f32 0.0, %v2999
      %3001 = vmatmul.f32.gmra.mxu0 %v2906
      %v3002 = vpop.f32.mrf.mxu0
      %v3003 = vadd.f32 0.0, %v3002
      %3004 = vmatmul.f32.gmra.mxu0 %v2907
      %v3005 = vpop.f32.mrf.mxu0
      %v3006 = vadd.f32 0.0, %v3005
      %3007 = vmatmul.f32.gmra.mxu0 %v2908
      %v3008 = vpop.f32.mrf.mxu0
      %v3009 = vadd.f32 0.0, %v3008
      %3010 = vmatmul.f32.gmra.mxu0 %v2909
      %v3011 = vpop.f32.mrf.mxu0
      %v3012 = vadd.f32 0.0, %v3011
      %3013 = vmatmul.f32.gmra.mxu0 %v2910
      %v3014 = vpop.f32.mrf.mxu0
      %v3015 = vadd.f32 0.0, %v3014
      %3016 = vmatmul.f32.gmra.mxu0 %v2911
      %v3017 = vpop.f32.mrf.mxu0
      %v3018 = vadd.f32 0.0, %v3017
      %3019 = vmatmul.f32.gmra.mxu0 %v2912
      %v3020 = vpop.f32.mrf.mxu0
      %v3021 = vadd.f32 0.0, %v3020
      %3022 = vmatmul.f32.gmra.mxu0 %v2913
      %v3023 = vpop.f32.mrf.mxu0
      %v3024 = vadd.f32 0.0, %v3023
      %3025 = vmatmul.f32.gmra.mxu0 %v2914
      %v3026 = vpop.f32.mrf.mxu0
      %v3027 = vadd.f32 0.0, %v3026
      %3028 = vmatmul.f32.gmra.mxu0 %v2915
      %v3029 = vpop.f32.mrf.mxu0
      %v3030 = vadd.f32 0.0, %v3029
      %3031 = vmatmul.f32.gmra.mxu0 %v2916
      %v3032 = vpop.f32.mrf.mxu0
      %v3033 = vadd.f32 0.0, %v3032
      %3034 = vmatmul.f32.gmra.mxu0 %v2917
      %v3035 = vpop.f32.mrf.mxu0
      %v3036 = vadd.f32 0.0, %v3035
      %3037 = vmatmul.f32.gmra.mxu0 %v2918
      %v3038 = vpop.f32.mrf.mxu0
      %v3039 = vadd.f32 0.0, %v3038
      %3040 = vmatmul.f32.gmra.mxu0 %v2919
      %v3041 = vpop.f32.mrf.mxu0
      %v3042 = vadd.f32 0.0, %v3041
      %3043 = vmatmul.f32.gmra.mxu0 %v2920
      %v3044 = vpop.f32.mrf.mxu0
      %v3045 = vadd.f32 0.0, %v3044
      %3046 = vmatmul.f32.gmra.mxu0 %v2921
      %v3047 = vpop.f32.mrf.mxu0
      %v3048 = vadd.f32 0.0, %v3047
      %3049 = vmatmul.f32.gmra.mxu0 %v2922
      %v3050 = vpop.f32.mrf.mxu0
      %v3051 = vadd.f32 0.0, %v3050
      %3052 = vdwg.mxu0
      %v3053 = vadd.f32 %v2858, %v2958
      %v3054 = vadd.f32 %v2859, %v2961
      %v3055 = vadd.f32 %v2860, %v2964
      %v3056 = vadd.f32 %v2861, %v2967
      %v3057 = vadd.f32 %v2862, %v2970
      %v3058 = vadd.f32 %v2863, %v2973
      %v3059 = vadd.f32 %v2864, %v2976
      %v3060 = vadd.f32 %v2865, %v2979
      %v3061 = vadd.f32 %v2866, %v2982
      %v3062 = vadd.f32 %v2867, %v2985
      %v3063 = vadd.f32 %v2868, %v2988
      %v3064 = vadd.f32 %v2869, %v2991
      %v3065 = vadd.f32 %v2870, %v2994
      %v3066 = vadd.f32 %v2871, %v2997
      %v3067 = vadd.f32 %v2872, %v3000
      %v3068 = vadd.f32 %v2873, %v3003
      %v3069 = vadd.f32 %v2874, %v3006
      %v3070 = vadd.f32 %v2875, %v3009
      %v3071 = vadd.f32 %v2876, %v3012
      %v3072 = vadd.f32 %v2877, %v3015
      %v3073 = vadd.f32 %v2878, %v3018
      %v3074 = vadd.f32 %v2879, %v3021
      %v3075 = vadd.f32 %v2880, %v3024
      %v3076 = vadd.f32 %v2881, %v3027
      %v3077 = vadd.f32 %v2882, %v3030
      %v3078 = vadd.f32 %v2883, %v3033
      %v3079 = vadd.f32 %v2884, %v3036
      %v3080 = vadd.f32 %v2885, %v3039
      %v3081 = vadd.f32 %v2886, %v3042
      %v3082 = vadd.f32 %v2887, %v3045
      %v3083 = vadd.f32 %v2888, %v3048
      %v3084 = vadd.f32 %v2889, %v3051
      %v3085 = vld [vmem:[%s2890 + $0x1] sm:$0xff]
      %v3086 = vld [vmem:[%s2890 + $0x9] sm:$0xff]
      %v3087 = vld [vmem:[%s2890 + $0x19] sm:$0xff]
      %v3088 = vld [vmem:[%s2890 + $0x21] sm:$0xff]
      %v3089 = vld [vmem:[%s2890 + $0x31] sm:$0xff]
      %v3090 = vld [vmem:[%s2890 + $0x39] sm:$0xff]
      %v3091 = vld [vmem:[%s2890 + $0x49] sm:$0xff]
      %v3092 = vld [vmem:[%s2890 + $0x51] sm:$0xff]
      %v3093 = vld [vmem:[%s2890 + $0x61] sm:$0xff]
      %v3094 = vld [vmem:[%s2890 + $0x69] sm:$0xff]
      %v3095 = vld [vmem:[%s2890 + $0x79] sm:$0xff]
      %v3096 = vld [vmem:[%s2890 + $0x81] sm:$0xff]
      %v3097 = vld [vmem:[%s2890 + $0x91] sm:$0xff]
      %v3098 = vld [vmem:[%s2890 + $0x99] sm:$0xff]
      %v3099 = vld [vmem:[%s2890 + $0xa9] sm:$0xff]
      %v3100 = vld [vmem:[%s2890 + $0xb1] sm:$0xff]
      %v3101 = vld [vmem:[%s2890 + $0xc1] sm:$0xff]
      %v3102 = vld [vmem:[%s2890 + $0xc9] sm:$0xff]
      %v3103 = vld [vmem:[%s2890 + $0xd9] sm:$0xff]
      %v3104 = vld [vmem:[%s2890 + $0xe1] sm:$0xff]
      %v3105 = vld [vmem:[%s2890 + $0xf1] sm:$0xff]
      %v3106 = vld [vmem:[%s2890 + $0xf9] sm:$0xff]
      %v3107 = vld [vmem:[%s2890 + $0x109] sm:$0xff]
      %v3108 = vld [vmem:[%s2890 + $0x111] sm:$0xff]
      %v3109 = vld [vmem:[%s2890 + $0x121] sm:$0xff]
      %v3110 = vld [vmem:[%s2890 + $0x129] sm:$0xff]
      %v3111 = vld [vmem:[%s2890 + $0x139] sm:$0xff]
      %v3112 = vld [vmem:[%s2890 + $0x141] sm:$0xff]
      %v3113 = vld [vmem:[%s2890 + $0x151] sm:$0xff]
      %v3114 = vld [vmem:[%s2890 + $0x159] sm:$0xff]
      %v3115 = vld [vmem:[%s2890 + $0x169] sm:$0xff]
      %v3116 = vld [vmem:[%s2890 + $0x171] sm:$0xff]
      %s3117 = scalar_lea.vmem %s3, 512
      %v3118 = vld [vmem:[%s3117] sm:$0xff]
      %v3119 = vld [vmem:[%s3117 + $0x8] sm:$0xff]
      %v3120 = vld [vmem:[%s3117 + $0x10] sm:$0xff]
      %v3121 = vld [vmem:[%s3117 + $0x18] sm:$0xff]
      %v3122 = vld [vmem:[%s3117 + $0x20] sm:$0xff]
      %v3123 = vld [vmem:[%s3117 + $0x28] sm:$0xff]
      %v3124 = vld [vmem:[%s3117 + $0x30] sm:$0xff]
      %v3125 = vld [vmem:[%s3117 + $0x38] sm:$0xff]
      %v3126 = vld [vmem:[%s3117 + $0x40] sm:$0xff]
      %v3127 = vld [vmem:[%s3117 + $0x48] sm:$0xff]
      %v3128 = vld [vmem:[%s3117 + $0x50] sm:$0xff]
      %v3129 = vld [vmem:[%s3117 + $0x58] sm:$0xff]
      %v3130 = vld [vmem:[%s3117 + $0x60] sm:$0xff]
      %v3131 = vld [vmem:[%s3117 + $0x68] sm:$0xff]
      %v3132 = vld [vmem:[%s3117 + $0x70] sm:$0xff]
      %v3133 = vld [vmem:[%s3117 + $0x78] sm:$0xff]
      %3134 = vmatpush.msra.mxu0 %v3133
      %3135 = vmatpush.msra.mxu0 %v3132
      %3136 = vmatpush.msra.mxu0 %v3131
      %3137 = vmatpush.msra.mxu0 %v3130
      %3138 = vmatpush.msra.mxu0 %v3129
      %3139 = vmatpush.msra.mxu0 %v3128
      %3140 = vmatpush.msra.mxu0 %v3127
      %3141 = vmatpush.msra.mxu0 %v3126
      %3142 = vmatpush.msra.mxu0 %v3125
      %3143 = vmatpush.msra.mxu0 %v3124
      %3144 = vmatpush.msra.mxu0 %v3123
      %3145 = vmatpush.msra.mxu0 %v3122
      %3146 = vmatpush.msra.mxu0 %v3121
      %3147 = vmatpush.msra.mxu0 %v3120
      %3148 = vmatpush.msra.mxu0 %v3119
      %3149 = vmatpush.msra.mxu0 %v3118
      %3150 = vmatmul.f32.gmra.mxu0 %v3085
      %v3151 = vpop.f32.mrf.mxu0
      %v3152 = vadd.f32 0.0, %v3151
      %3153 = vmatmul.f32.gmra.mxu0 %v3086
      %v3154 = vpop.f32.mrf.mxu0
      %v3155 = vadd.f32 0.0, %v3154
      %3156 = vmatmul.f32.gmra.mxu0 %v3087
      %v3157 = vpop.f32.mrf.mxu0
      %v3158 = vadd.f32 0.0, %v3157
      %3159 = vmatmul.f32.gmra.mxu0 %v3088
      %v3160 = vpop.f32.mrf.mxu0
      %v3161 = vadd.f32 0.0, %v3160
      %3162 = vmatmul.f32.gmra.mxu0 %v3089
      %v3163 = vpop.f32.mrf.mxu0
      %v3164 = vadd.f32 0.0, %v3163
      %3165 = vmatmul.f32.gmra.mxu0 %v3090
      %v3166 = vpop.f32.mrf.mxu0
      %v3167 = vadd.f32 0.0, %v3166
      %3168 = vmatmul.f32.gmra.mxu0 %v3091
      %v3169 = vpop.f32.mrf.mxu0
      %v3170 = vadd.f32 0.0, %v3169
      %3171 = vmatmul.f32.gmra.mxu0 %v3092
      %v3172 = vpop.f32.mrf.mxu0
      %v3173 = vadd.f32 0.0, %v3172
      %3174 = vmatmul.f32.gmra.mxu0 %v3093
      %v3175 = vpop.f32.mrf.mxu0
      %v3176 = vadd.f32 0.0, %v3175
      %3177 = vmatmul.f32.gmra.mxu0 %v3094
      %v3178 = vpop.f32.mrf.mxu0
      %v3179 = vadd.f32 0.0, %v3178
      %3180 = vmatmul.f32.gmra.mxu0 %v3095
      %v3181 = vpop.f32.mrf.mxu0
      %v3182 = vadd.f32 0.0, %v3181
      %3183 = vmatmul.f32.gmra.mxu0 %v3096
      %v3184 = vpop.f32.mrf.mxu0
      %v3185 = vadd.f32 0.0, %v3184
      %3186 = vmatmul.f32.gmra.mxu0 %v3097
      %v3187 = vpop.f32.mrf.mxu0
      %v3188 = vadd.f32 0.0, %v3187
      %3189 = vmatmul.f32.gmra.mxu0 %v3098
      %v3190 = vpop.f32.mrf.mxu0
      %v3191 = vadd.f32 0.0, %v3190
      %3192 = vmatmul.f32.gmra.mxu0 %v3099
      %v3193 = vpop.f32.mrf.mxu0
      %v3194 = vadd.f32 0.0, %v3193
      %3195 = vmatmul.f32.gmra.mxu0 %v3100
      %v3196 = vpop.f32.mrf.mxu0
      %v3197 = vadd.f32 0.0, %v3196
      %3198 = vmatmul.f32.gmra.mxu0 %v3101
      %v3199 = vpop.f32.mrf.mxu0
      %v3200 = vadd.f32 0.0, %v3199
      %3201 = vmatmul.f32.gmra.mxu0 %v3102
      %v3202 = vpop.f32.mrf.mxu0
      %v3203 = vadd.f32 0.0, %v3202
      %3204 = vmatmul.f32.gmra.mxu0 %v3103
      %v3205 = vpop.f32.mrf.mxu0
      %v3206 = vadd.f32 0.0, %v3205
      %3207 = vmatmul.f32.gmra.mxu0 %v3104
      %v3208 = vpop.f32.mrf.mxu0
      %v3209 = vadd.f32 0.0, %v3208
      %3210 = vmatmul.f32.gmra.mxu0 %v3105
      %v3211 = vpop.f32.mrf.mxu0
      %v3212 = vadd.f32 0.0, %v3211
      %3213 = vmatmul.f32.gmra.mxu0 %v3106
      %v3214 = vpop.f32.mrf.mxu0
      %v3215 = vadd.f32 0.0, %v3214
      %3216 = vmatmul.f32.gmra.mxu0 %v3107
      %v3217 = vpop.f32.mrf.mxu0
      %v3218 = vadd.f32 0.0, %v3217
      %3219 = vmatmul.f32.gmra.mxu0 %v3108
      %v3220 = vpop.f32.mrf.mxu0
      %v3221 = vadd.f32 0.0, %v3220
      %3222 = vmatmul.f32.gmra.mxu0 %v3109
      %v3223 = vpop.f32.mrf.mxu0
      %v3224 = vadd.f32 0.0, %v3223
      %3225 = vmatmul.f32.gmra.mxu0 %v3110
      %v3226 = vpop.f32.mrf.mxu0
      %v3227 = vadd.f32 0.0, %v3226
      %3228 = vmatmul.f32.gmra.mxu0 %v3111
      %v3229 = vpop.f32.mrf.mxu0
      %v3230 = vadd.f32 0.0, %v3229
      %3231 = vmatmul.f32.gmra.mxu0 %v3112
      %v3232 = vpop.f32.mrf.mxu0
      %v3233 = vadd.f32 0.0, %v3232
      %3234 = vmatmul.f32.gmra.mxu0 %v3113
      %v3235 = vpop.f32.mrf.mxu0
      %v3236 = vadd.f32 0.0, %v3235
      %3237 = vmatmul.f32.gmra.mxu0 %v3114
      %v3238 = vpop.f32.mrf.mxu0
      %v3239 = vadd.f32 0.0, %v3238
      %3240 = vmatmul.f32.gmra.mxu0 %v3115
      %v3241 = vpop.f32.mrf.mxu0
      %v3242 = vadd.f32 0.0, %v3241
      %3243 = vmatmul.f32.gmra.mxu0 %v3116
      %v3244 = vpop.f32.mrf.mxu0
      %v3245 = vadd.f32 0.0, %v3244
      %3246 = vdwg.mxu0
      %v3247 = vadd.f32 %v3053, %v3152
      %v3248 = vadd.f32 %v3054, %v3155
      %v3249 = vadd.f32 %v3055, %v3158
      %v3250 = vadd.f32 %v3056, %v3161
      %v3251 = vadd.f32 %v3057, %v3164
      %v3252 = vadd.f32 %v3058, %v3167
      %v3253 = vadd.f32 %v3059, %v3170
      %v3254 = vadd.f32 %v3060, %v3173
      %v3255 = vadd.f32 %v3061, %v3176
      %v3256 = vadd.f32 %v3062, %v3179
      %v3257 = vadd.f32 %v3063, %v3182
      %v3258 = vadd.f32 %v3064, %v3185
      %v3259 = vadd.f32 %v3065, %v3188
      %v3260 = vadd.f32 %v3066, %v3191
      %v3261 = vadd.f32 %v3067, %v3194
      %v3262 = vadd.f32 %v3068, %v3197
      %v3263 = vadd.f32 %v3069, %v3200
      %v3264 = vadd.f32 %v3070, %v3203
      %v3265 = vadd.f32 %v3071, %v3206
      %v3266 = vadd.f32 %v3072, %v3209
      %v3267 = vadd.f32 %v3073, %v3212
      %v3268 = vadd.f32 %v3074, %v3215
      %v3269 = vadd.f32 %v3075, %v3218
      %v3270 = vadd.f32 %v3076, %v3221
      %v3271 = vadd.f32 %v3077, %v3224
      %v3272 = vadd.f32 %v3078, %v3227
      %v3273 = vadd.f32 %v3079, %v3230
      %v3274 = vadd.f32 %v3080, %v3233
      %v3275 = vadd.f32 %v3081, %v3236
      %v3276 = vadd.f32 %v3082, %v3239
      %v3277 = vadd.f32 %v3083, %v3242
      %v3278 = vadd.f32 %v3084, %v3245
      %v3279 = vld [vmem:[%s2890 + $0x2] sm:$0xff]
      %v3280 = vld [vmem:[%s2890 + $0xa] sm:$0xff]
      %v3281 = vld [vmem:[%s2890 + $0x1a] sm:$0xff]
      %v3282 = vld [vmem:[%s2890 + $0x22] sm:$0xff]
      %v3283 = vld [vmem:[%s2890 + $0x32] sm:$0xff]
      %v3284 = vld [vmem:[%s2890 + $0x3a] sm:$0xff]
      %v3285 = vld [vmem:[%s2890 + $0x4a] sm:$0xff]
      %v3286 = vld [vmem:[%s2890 + $0x52] sm:$0xff]
      %v3287 = vld [vmem:[%s2890 + $0x62] sm:$0xff]
      %v3288 = vld [vmem:[%s2890 + $0x6a] sm:$0xff]
      %v3289 = vld [vmem:[%s2890 + $0x7a] sm:$0xff]
      %v3290 = vld [vmem:[%s2890 + $0x82] sm:$0xff]
      %v3291 = vld [vmem:[%s2890 + $0x92] sm:$0xff]
      %v3292 = vld [vmem:[%s2890 + $0x9a] sm:$0xff]
      %v3293 = vld [vmem:[%s2890 + $0xaa] sm:$0xff]
      %v3294 = vld [vmem:[%s2890 + $0xb2] sm:$0xff]
      %v3295 = vld [vmem:[%s2890 + $0xc2] sm:$0xff]
      %v3296 = vld [vmem:[%s2890 + $0xca] sm:$0xff]
      %v3297 = vld [vmem:[%s2890 + $0xda] sm:$0xff]
      %v3298 = vld [vmem:[%s2890 + $0xe2] sm:$0xff]
      %v3299 = vld [vmem:[%s2890 + $0xf2] sm:$0xff]
      %v3300 = vld [vmem:[%s2890 + $0xfa] sm:$0xff]
      %v3301 = vld [vmem:[%s2890 + $0x10a] sm:$0xff]
      %v3302 = vld [vmem:[%s2890 + $0x112] sm:$0xff]
      %v3303 = vld [vmem:[%s2890 + $0x122] sm:$0xff]
      %v3304 = vld [vmem:[%s2890 + $0x12a] sm:$0xff]
      %v3305 = vld [vmem:[%s2890 + $0x13a] sm:$0xff]
      %v3306 = vld [vmem:[%s2890 + $0x142] sm:$0xff]
      %v3307 = vld [vmem:[%s2890 + $0x152] sm:$0xff]
      %v3308 = vld [vmem:[%s2890 + $0x15a] sm:$0xff]
      %v3309 = vld [vmem:[%s2890 + $0x16a] sm:$0xff]
      %v3310 = vld [vmem:[%s2890 + $0x172] sm:$0xff]
      %s3311 = scalar_lea.vmem %s3, 640
      %v3312 = vld [vmem:[%s3311] sm:$0xff]
      %v3313 = vld [vmem:[%s3311 + $0x8] sm:$0xff]
      %v3314 = vld [vmem:[%s3311 + $0x10] sm:$0xff]
      %v3315 = vld [vmem:[%s3311 + $0x18] sm:$0xff]
      %v3316 = vld [vmem:[%s3311 + $0x20] sm:$0xff]
      %v3317 = vld [vmem:[%s3311 + $0x28] sm:$0xff]
      %v3318 = vld [vmem:[%s3311 + $0x30] sm:$0xff]
      %v3319 = vld [vmem:[%s3311 + $0x38] sm:$0xff]
      %v3320 = vld [vmem:[%s3311 + $0x40] sm:$0xff]
      %v3321 = vld [vmem:[%s3311 + $0x48] sm:$0xff]
      %v3322 = vld [vmem:[%s3311 + $0x50] sm:$0xff]
      %v3323 = vld [vmem:[%s3311 + $0x58] sm:$0xff]
      %v3324 = vld [vmem:[%s3311 + $0x60] sm:$0xff]
      %v3325 = vld [vmem:[%s3311 + $0x68] sm:$0xff]
      %v3326 = vld [vmem:[%s3311 + $0x70] sm:$0xff]
      %v3327 = vld [vmem:[%s3311 + $0x78] sm:$0xff]
      %3328 = vmatpush.msra.mxu0 %v3327
      %3329 = vmatpush.msra.mxu0 %v3326
      %3330 = vmatpush.msra.mxu0 %v3325
      %3331 = vmatpush.msra.mxu0 %v3324
      %3332 = vmatpush.msra.mxu0 %v3323
      %3333 = vmatpush.msra.mxu0 %v3322
      %3334 = vmatpush.msra.mxu0 %v3321
      %3335 = vmatpush.msra.mxu0 %v3320
      %3336 = vmatpush.msra.mxu0 %v3319
      %3337 = vmatpush.msra.mxu0 %v3318
      %3338 = vmatpush.msra.mxu0 %v3317
      %3339 = vmatpush.msra.mxu0 %v3316
      %3340 = vmatpush.msra.mxu0 %v3315
      %3341 = vmatpush.msra.mxu0 %v3314
      %3342 = vmatpush.msra.mxu0 %v3313
      %3343 = vmatpush.msra.mxu0 %v3312
      %3344 = vmatmul.f32.gmra.mxu0 %v3279
      %v3345 = vpop.f32.mrf.mxu0
      %v3346 = vadd.f32 0.0, %v3345
      %3347 = vmatmul.f32.gmra.mxu0 %v3280
      %v3348 = vpop.f32.mrf.mxu0
      %v3349 = vadd.f32 0.0, %v3348
      %3350 = vmatmul.f32.gmra.mxu0 %v3281
      %v3351 = vpop.f32.mrf.mxu0
      %v3352 = vadd.f32 0.0, %v3351
      %3353 = vmatmul.f32.gmra.mxu0 %v3282
      %v3354 = vpop.f32.mrf.mxu0
      %v3355 = vadd.f32 0.0, %v3354
      %3356 = vmatmul.f32.gmra.mxu0 %v3283
      %v3357 = vpop.f32.mrf.mxu0
      %v3358 = vadd.f32 0.0, %v3357
      %3359 = vmatmul.f32.gmra.mxu0 %v3284
      %v3360 = vpop.f32.mrf.mxu0
      %v3361 = vadd.f32 0.0, %v3360
      %3362 = vmatmul.f32.gmra.mxu0 %v3285
      %v3363 = vpop.f32.mrf.mxu0
      %v3364 = vadd.f32 0.0, %v3363
      %3365 = vmatmul.f32.gmra.mxu0 %v3286
      %v3366 = vpop.f32.mrf.mxu0
      %v3367 = vadd.f32 0.0, %v3366
      %3368 = vmatmul.f32.gmra.mxu0 %v3287
      %v3369 = vpop.f32.mrf.mxu0
      %v3370 = vadd.f32 0.0, %v3369
      %3371 = vmatmul.f32.gmra.mxu0 %v3288
      %v3372 = vpop.f32.mrf.mxu0
      %v3373 = vadd.f32 0.0, %v3372
      %3374 = vmatmul.f32.gmra.mxu0 %v3289
      %v3375 = vpop.f32.mrf.mxu0
      %v3376 = vadd.f32 0.0, %v3375
      %3377 = vmatmul.f32.gmra.mxu0 %v3290
      %v3378 = vpop.f32.mrf.mxu0
      %v3379 = vadd.f32 0.0, %v3378
      %3380 = vmatmul.f32.gmra.mxu0 %v3291
      %v3381 = vpop.f32.mrf.mxu0
      %v3382 = vadd.f32 0.0, %v3381
      %3383 = vmatmul.f32.gmra.mxu0 %v3292
      %v3384 = vpop.f32.mrf.mxu0
      %v3385 = vadd.f32 0.0, %v3384
      %3386 = vmatmul.f32.gmra.mxu0 %v3293
      %v3387 = vpop.f32.mrf.mxu0
      %v3388 = vadd.f32 0.0, %v3387
      %3389 = vmatmul.f32.gmra.mxu0 %v3294
      %v3390 = vpop.f32.mrf.mxu0
      %v3391 = vadd.f32 0.0, %v3390
      %3392 = vmatmul.f32.gmra.mxu0 %v3295
      %v3393 = vpop.f32.mrf.mxu0
      %v3394 = vadd.f32 0.0, %v3393
      %3395 = vmatmul.f32.gmra.mxu0 %v3296
      %v3396 = vpop.f32.mrf.mxu0
      %v3397 = vadd.f32 0.0, %v3396
      %3398 = vmatmul.f32.gmra.mxu0 %v3297
      %v3399 = vpop.f32.mrf.mxu0
      %v3400 = vadd.f32 0.0, %v3399
      %3401 = vmatmul.f32.gmra.mxu0 %v3298
      %v3402 = vpop.f32.mrf.mxu0
      %v3403 = vadd.f32 0.0, %v3402
      %3404 = vmatmul.f32.gmra.mxu0 %v3299
      %v3405 = vpop.f32.mrf.mxu0
      %v3406 = vadd.f32 0.0, %v3405
      %3407 = vmatmul.f32.gmra.mxu0 %v3300
      %v3408 = vpop.f32.mrf.mxu0
      %v3409 = vadd.f32 0.0, %v3408
      %3410 = vmatmul.f32.gmra.mxu0 %v3301
      %v3411 = vpop.f32.mrf.mxu0
      %v3412 = vadd.f32 0.0, %v3411
      %3413 = vmatmul.f32.gmra.mxu0 %v3302
      %v3414 = vpop.f32.mrf.mxu0
      %v3415 = vadd.f32 0.0, %v3414
      %3416 = vmatmul.f32.gmra.mxu0 %v3303
      %v3417 = vpop.f32.mrf.mxu0
      %v3418 = vadd.f32 0.0, %v3417
      %3419 = vmatmul.f32.gmra.mxu0 %v3304
      %v3420 = vpop.f32.mrf.mxu0
      %v3421 = vadd.f32 0.0, %v3420
      %3422 = vmatmul.f32.gmra.mxu0 %v3305
      %v3423 = vpop.f32.mrf.mxu0
      %v3424 = vadd.f32 0.0, %v3423
      %3425 = vmatmul.f32.gmra.mxu0 %v3306
      %v3426 = vpop.f32.mrf.mxu0
      %v3427 = vadd.f32 0.0, %v3426
      %3428 = vmatmul.f32.gmra.mxu0 %v3307
      %v3429 = vpop.f32.mrf.mxu0
      %v3430 = vadd.f32 0.0, %v3429
      %3431 = vmatmul.f32.gmra.mxu0 %v3308
      %v3432 = vpop.f32.mrf.mxu0
      %v3433 = vadd.f32 0.0, %v3432
      %3434 = vmatmul.f32.gmra.mxu0 %v3309
      %v3435 = vpop.f32.mrf.mxu0
      %v3436 = vadd.f32 0.0, %v3435
      %3437 = vmatmul.f32.gmra.mxu0 %v3310
      %v3438 = vpop.f32.mrf.mxu0
      %v3439 = vadd.f32 0.0, %v3438
      %3440 = vdwg.mxu0
      %v3441 = vadd.f32 %v3247, %v3346
      %v3442 = vadd.f32 %v3248, %v3349
      %v3443 = vadd.f32 %v3249, %v3352
      %v3444 = vadd.f32 %v3250, %v3355
      %v3445 = vadd.f32 %v3251, %v3358
      %v3446 = vadd.f32 %v3252, %v3361
      %v3447 = vadd.f32 %v3253, %v3364
      %v3448 = vadd.f32 %v3254, %v3367
      %v3449 = vadd.f32 %v3255, %v3370
      %v3450 = vadd.f32 %v3256, %v3373
      %v3451 = vadd.f32 %v3257, %v3376
      %v3452 = vadd.f32 %v3258, %v3379
      %v3453 = vadd.f32 %v3259, %v3382
      %v3454 = vadd.f32 %v3260, %v3385
      %v3455 = vadd.f32 %v3261, %v3388
      %v3456 = vadd.f32 %v3262, %v3391
      %v3457 = vadd.f32 %v3263, %v3394
      %v3458 = vadd.f32 %v3264, %v3397
      %v3459 = vadd.f32 %v3265, %v3400
      %v3460 = vadd.f32 %v3266, %v3403
      %v3461 = vadd.f32 %v3267, %v3406
      %v3462 = vadd.f32 %v3268, %v3409
      %v3463 = vadd.f32 %v3269, %v3412
      %v3464 = vadd.f32 %v3270, %v3415
      %v3465 = vadd.f32 %v3271, %v3418
      %v3466 = vadd.f32 %v3272, %v3421
      %v3467 = vadd.f32 %v3273, %v3424
      %v3468 = vadd.f32 %v3274, %v3427
      %v3469 = vadd.f32 %v3275, %v3430
      %v3470 = vadd.f32 %v3276, %v3433
      %v3471 = vadd.f32 %v3277, %v3436
      %v3472 = vadd.f32 %v3278, %v3439
      %s3473 = scalar_lea.vmem [#allocation3], 48
      %v3474 = vld [vmem:[%s3473] sm:$0xff]
      %v3475 = vld [vmem:[%s3473 + $0x8] sm:$0xff]
      %v3476 = vld [vmem:[%s3473 + $0x18] sm:$0xff]
      %v3477 = vld [vmem:[%s3473 + $0x20] sm:$0xff]
      %v3478 = vld [vmem:[%s3473 + $0x30] sm:$0xff]
      %v3479 = vld [vmem:[%s3473 + $0x38] sm:$0xff]
      %v3480 = vld [vmem:[%s3473 + $0x48] sm:$0xff]
      %v3481 = vld [vmem:[%s3473 + $0x50] sm:$0xff]
      %v3482 = vld [vmem:[%s3473 + $0x60] sm:$0xff]
      %v3483 = vld [vmem:[%s3473 + $0x68] sm:$0xff]
      %v3484 = vld [vmem:[%s3473 + $0x78] sm:$0xff]
      %v3485 = vld [vmem:[%s3473 + $0x80] sm:$0xff]
      %v3486 = vld [vmem:[%s3473 + $0x90] sm:$0xff]
      %v3487 = vld [vmem:[%s3473 + $0x98] sm:$0xff]
      %v3488 = vld [vmem:[%s3473 + $0xa8] sm:$0xff]
      %v3489 = vld [vmem:[%s3473 + $0xb0] sm:$0xff]
      %v3490 = vld [vmem:[%s3473 + $0xc0] sm:$0xff]
      %v3491 = vld [vmem:[%s3473 + $0xc8] sm:$0xff]
      %v3492 = vld [vmem:[%s3473 + $0xd8] sm:$0xff]
      %v3493 = vld [vmem:[%s3473 + $0xe0] sm:$0xff]
      %v3494 = vld [vmem:[%s3473 + $0xf0] sm:$0xff]
      %v3495 = vld [vmem:[%s3473 + $0xf8] sm:$0xff]
      %v3496 = vld [vmem:[%s3473 + $0x108] sm:$0xff]
      %v3497 = vld [vmem:[%s3473 + $0x110] sm:$0xff]
      %v3498 = vld [vmem:[%s3473 + $0x120] sm:$0xff]
      %v3499 = vld [vmem:[%s3473 + $0x128] sm:$0xff]
      %v3500 = vld [vmem:[%s3473 + $0x138] sm:$0xff]
      %v3501 = vld [vmem:[%s3473 + $0x140] sm:$0xff]
      %v3502 = vld [vmem:[%s3473 + $0x150] sm:$0xff]
      %v3503 = vld [vmem:[%s3473 + $0x158] sm:$0xff]
      %v3504 = vld [vmem:[%s3473 + $0x168] sm:$0xff]
      %v3505 = vld [vmem:[%s3473 + $0x170] sm:$0xff]
      %s3506 = scalar_lea.vmem %s3, 768
      %v3507 = vld [vmem:[%s3506] sm:$0xff]
      %v3508 = vld [vmem:[%s3506 + $0x8] sm:$0xff]
      %v3509 = vld [vmem:[%s3506 + $0x10] sm:$0xff]
      %v3510 = vld [vmem:[%s3506 + $0x18] sm:$0xff]
      %v3511 = vld [vmem:[%s3506 + $0x20] sm:$0xff]
      %v3512 = vld [vmem:[%s3506 + $0x28] sm:$0xff]
      %v3513 = vld [vmem:[%s3506 + $0x30] sm:$0xff]
      %v3514 = vld [vmem:[%s3506 + $0x38] sm:$0xff]
      %v3515 = vld [vmem:[%s3506 + $0x40] sm:$0xff]
      %v3516 = vld [vmem:[%s3506 + $0x48] sm:$0xff]
      %v3517 = vld [vmem:[%s3506 + $0x50] sm:$0xff]
      %v3518 = vld [vmem:[%s3506 + $0x58] sm:$0xff]
      %v3519 = vld [vmem:[%s3506 + $0x60] sm:$0xff]
      %v3520 = vld [vmem:[%s3506 + $0x68] sm:$0xff]
      %v3521 = vld [vmem:[%s3506 + $0x70] sm:$0xff]
      %v3522 = vld [vmem:[%s3506 + $0x78] sm:$0xff]
      %3523 = vmatpush.msra.mxu0 %v3522
      %3524 = vmatpush.msra.mxu0 %v3521
      %3525 = vmatpush.msra.mxu0 %v3520
      %3526 = vmatpush.msra.mxu0 %v3519
      %3527 = vmatpush.msra.mxu0 %v3518
      %3528 = vmatpush.msra.mxu0 %v3517
      %3529 = vmatpush.msra.mxu0 %v3516
      %3530 = vmatpush.msra.mxu0 %v3515
      %3531 = vmatpush.msra.mxu0 %v3514
      %3532 = vmatpush.msra.mxu0 %v3513
      %3533 = vmatpush.msra.mxu0 %v3512
      %3534 = vmatpush.msra.mxu0 %v3511
      %3535 = vmatpush.msra.mxu0 %v3510
      %3536 = vmatpush.msra.mxu0 %v3509
      %3537 = vmatpush.msra.mxu0 %v3508
      %3538 = vmatpush.msra.mxu0 %v3507
      %3539 = vmatmul.f32.gmra.mxu0 %v3474
      %v3540 = vpop.f32.mrf.mxu0
      %v3541 = vadd.f32 0.0, %v3540
      %3542 = vmatmul.f32.gmra.mxu0 %v3475
      %v3543 = vpop.f32.mrf.mxu0
      %v3544 = vadd.f32 0.0, %v3543
      %3545 = vmatmul.f32.gmra.mxu0 %v3476
      %v3546 = vpop.f32.mrf.mxu0
      %v3547 = vadd.f32 0.0, %v3546
      %3548 = vmatmul.f32.gmra.mxu0 %v3477
      %v3549 = vpop.f32.mrf.mxu0
      %v3550 = vadd.f32 0.0, %v3549
      %3551 = vmatmul.f32.gmra.mxu0 %v3478
      %v3552 = vpop.f32.mrf.mxu0
      %v3553 = vadd.f32 0.0, %v3552
      %3554 = vmatmul.f32.gmra.mxu0 %v3479
      %v3555 = vpop.f32.mrf.mxu0
      %v3556 = vadd.f32 0.0, %v3555
      %3557 = vmatmul.f32.gmra.mxu0 %v3480
      %v3558 = vpop.f32.mrf.mxu0
      %v3559 = vadd.f32 0.0, %v3558
      %3560 = vmatmul.f32.gmra.mxu0 %v3481
      %v3561 = vpop.f32.mrf.mxu0
      %v3562 = vadd.f32 0.0, %v3561
      %3563 = vmatmul.f32.gmra.mxu0 %v3482
      %v3564 = vpop.f32.mrf.mxu0
      %v3565 = vadd.f32 0.0, %v3564
      %3566 = vmatmul.f32.gmra.mxu0 %v3483
      %v3567 = vpop.f32.mrf.mxu0
      %v3568 = vadd.f32 0.0, %v3567
      %3569 = vmatmul.f32.gmra.mxu0 %v3484
      %v3570 = vpop.f32.mrf.mxu0
      %v3571 = vadd.f32 0.0, %v3570
      %3572 = vmatmul.f32.gmra.mxu0 %v3485
      %v3573 = vpop.f32.mrf.mxu0
      %v3574 = vadd.f32 0.0, %v3573
      %3575 = vmatmul.f32.gmra.mxu0 %v3486
      %v3576 = vpop.f32.mrf.mxu0
      %v3577 = vadd.f32 0.0, %v3576
      %3578 = vmatmul.f32.gmra.mxu0 %v3487
      %v3579 = vpop.f32.mrf.mxu0
      %v3580 = vadd.f32 0.0, %v3579
      %3581 = vmatmul.f32.gmra.mxu0 %v3488
      %v3582 = vpop.f32.mrf.mxu0
      %v3583 = vadd.f32 0.0, %v3582
      %3584 = vmatmul.f32.gmra.mxu0 %v3489
      %v3585 = vpop.f32.mrf.mxu0
      %v3586 = vadd.f32 0.0, %v3585
      %3587 = vmatmul.f32.gmra.mxu0 %v3490
      %v3588 = vpop.f32.mrf.mxu0
      %v3589 = vadd.f32 0.0, %v3588
      %3590 = vmatmul.f32.gmra.mxu0 %v3491
      %v3591 = vpop.f32.mrf.mxu0
      %v3592 = vadd.f32 0.0, %v3591
      %3593 = vmatmul.f32.gmra.mxu0 %v3492
      %v3594 = vpop.f32.mrf.mxu0
      %v3595 = vadd.f32 0.0, %v3594
      %3596 = vmatmul.f32.gmra.mxu0 %v3493
      %v3597 = vpop.f32.mrf.mxu0
      %v3598 = vadd.f32 0.0, %v3597
      %3599 = vmatmul.f32.gmra.mxu0 %v3494
      %v3600 = vpop.f32.mrf.mxu0
      %v3601 = vadd.f32 0.0, %v3600
      %3602 = vmatmul.f32.gmra.mxu0 %v3495
      %v3603 = vpop.f32.mrf.mxu0
      %v3604 = vadd.f32 0.0, %v3603
      %3605 = vmatmul.f32.gmra.mxu0 %v3496
      %v3606 = vpop.f32.mrf.mxu0
      %v3607 = vadd.f32 0.0, %v3606
      %3608 = vmatmul.f32.gmra.mxu0 %v3497
      %v3609 = vpop.f32.mrf.mxu0
      %v3610 = vadd.f32 0.0, %v3609
      %3611 = vmatmul.f32.gmra.mxu0 %v3498
      %v3612 = vpop.f32.mrf.mxu0
      %v3613 = vadd.f32 0.0, %v3612
      %3614 = vmatmul.f32.gmra.mxu0 %v3499
      %v3615 = vpop.f32.mrf.mxu0
      %v3616 = vadd.f32 0.0, %v3615
      %3617 = vmatmul.f32.gmra.mxu0 %v3500
      %v3618 = vpop.f32.mrf.mxu0
      %v3619 = vadd.f32 0.0, %v3618
      %3620 = vmatmul.f32.gmra.mxu0 %v3501
      %v3621 = vpop.f32.mrf.mxu0
      %v3622 = vadd.f32 0.0, %v3621
      %3623 = vmatmul.f32.gmra.mxu0 %v3502
      %v3624 = vpop.f32.mrf.mxu0
      %v3625 = vadd.f32 0.0, %v3624
      %3626 = vmatmul.f32.gmra.mxu0 %v3503
      %v3627 = vpop.f32.mrf.mxu0
      %v3628 = vadd.f32 0.0, %v3627
      %3629 = vmatmul.f32.gmra.mxu0 %v3504
      %v3630 = vpop.f32.mrf.mxu0
      %v3631 = vadd.f32 0.0, %v3630
      %3632 = vmatmul.f32.gmra.mxu0 %v3505
      %v3633 = vpop.f32.mrf.mxu0
      %v3634 = vadd.f32 0.0, %v3633
      %3635 = vdwg.mxu0
      %v3636 = vadd.f32 %v3441, %v3541
      %v3637 = vadd.f32 %v3442, %v3544
      %v3638 = vadd.f32 %v3443, %v3547
      %v3639 = vadd.f32 %v3444, %v3550
      %v3640 = vadd.f32 %v3445, %v3553
      %v3641 = vadd.f32 %v3446, %v3556
      %v3642 = vadd.f32 %v3447, %v3559
      %v3643 = vadd.f32 %v3448, %v3562
      %v3644 = vadd.f32 %v3449, %v3565
      %v3645 = vadd.f32 %v3450, %v3568
      %v3646 = vadd.f32 %v3451, %v3571
      %v3647 = vadd.f32 %v3452, %v3574
      %v3648 = vadd.f32 %v3453, %v3577
      %v3649 = vadd.f32 %v3454, %v3580
      %v3650 = vadd.f32 %v3455, %v3583
      %v3651 = vadd.f32 %v3456, %v3586
      %v3652 = vadd.f32 %v3457, %v3589
      %v3653 = vadd.f32 %v3458, %v3592
      %v3654 = vadd.f32 %v3459, %v3595
      %v3655 = vadd.f32 %v3460, %v3598
      %v3656 = vadd.f32 %v3461, %v3601
      %v3657 = vadd.f32 %v3462, %v3604
      %v3658 = vadd.f32 %v3463, %v3607
      %v3659 = vadd.f32 %v3464, %v3610
      %v3660 = vadd.f32 %v3465, %v3613
      %v3661 = vadd.f32 %v3466, %v3616
      %v3662 = vadd.f32 %v3467, %v3619
      %v3663 = vadd.f32 %v3468, %v3622
      %v3664 = vadd.f32 %v3469, %v3625
      %v3665 = vadd.f32 %v3470, %v3628
      %v3666 = vadd.f32 %v3471, %v3631
      %v3667 = vadd.f32 %v3472, %v3634
      %v3668 = vld [vmem:[%s3473 + $0x1] sm:$0xff]
      %v3669 = vld [vmem:[%s3473 + $0x9] sm:$0xff]
      %v3670 = vld [vmem:[%s3473 + $0x19] sm:$0xff]
      %v3671 = vld [vmem:[%s3473 + $0x21] sm:$0xff]
      %v3672 = vld [vmem:[%s3473 + $0x31] sm:$0xff]
      %v3673 = vld [vmem:[%s3473 + $0x39] sm:$0xff]
      %v3674 = vld [vmem:[%s3473 + $0x49] sm:$0xff]
      %v3675 = vld [vmem:[%s3473 + $0x51] sm:$0xff]
      %v3676 = vld [vmem:[%s3473 + $0x61] sm:$0xff]
      %v3677 = vld [vmem:[%s3473 + $0x69] sm:$0xff]
      %v3678 = vld [vmem:[%s3473 + $0x79] sm:$0xff]
      %v3679 = vld [vmem:[%s3473 + $0x81] sm:$0xff]
      %v3680 = vld [vmem:[%s3473 + $0x91] sm:$0xff]
      %v3681 = vld [vmem:[%s3473 + $0x99] sm:$0xff]
      %v3682 = vld [vmem:[%s3473 + $0xa9] sm:$0xff]
      %v3683 = vld [vmem:[%s3473 + $0xb1] sm:$0xff]
      %v3684 = vld [vmem:[%s3473 + $0xc1] sm:$0xff]
      %v3685 = vld [vmem:[%s3473 + $0xc9] sm:$0xff]
      %v3686 = vld [vmem:[%s3473 + $0xd9] sm:$0xff]
      %v3687 = vld [vmem:[%s3473 + $0xe1] sm:$0xff]
      %v3688 = vld [vmem:[%s3473 + $0xf1] sm:$0xff]
      %v3689 = vld [vmem:[%s3473 + $0xf9] sm:$0xff]
      %v3690 = vld [vmem:[%s3473 + $0x109] sm:$0xff]
      %v3691 = vld [vmem:[%s3473 + $0x111] sm:$0xff]
      %v3692 = vld [vmem:[%s3473 + $0x121] sm:$0xff]
      %v3693 = vld [vmem:[%s3473 + $0x129] sm:$0xff]
      %v3694 = vld [vmem:[%s3473 + $0x139] sm:$0xff]
      %v3695 = vld [vmem:[%s3473 + $0x141] sm:$0xff]
      %v3696 = vld [vmem:[%s3473 + $0x151] sm:$0xff]
      %v3697 = vld [vmem:[%s3473 + $0x159] sm:$0xff]
      %v3698 = vld [vmem:[%s3473 + $0x169] sm:$0xff]
      %v3699 = vld [vmem:[%s3473 + $0x171] sm:$0xff]
      %s3700 = scalar_lea.vmem %s3, 896
      %v3701 = vld [vmem:[%s3700] sm:$0xff]
      %v3702 = vld [vmem:[%s3700 + $0x8] sm:$0xff]
      %v3703 = vld [vmem:[%s3700 + $0x10] sm:$0xff]
      %v3704 = vld [vmem:[%s3700 + $0x18] sm:$0xff]
      %v3705 = vld [vmem:[%s3700 + $0x20] sm:$0xff]
      %v3706 = vld [vmem:[%s3700 + $0x28] sm:$0xff]
      %v3707 = vld [vmem:[%s3700 + $0x30] sm:$0xff]
      %v3708 = vld [vmem:[%s3700 + $0x38] sm:$0xff]
      %v3709 = vld [vmem:[%s3700 + $0x40] sm:$0xff]
      %v3710 = vld [vmem:[%s3700 + $0x48] sm:$0xff]
      %v3711 = vld [vmem:[%s3700 + $0x50] sm:$0xff]
      %v3712 = vld [vmem:[%s3700 + $0x58] sm:$0xff]
      %v3713 = vld [vmem:[%s3700 + $0x60] sm:$0xff]
      %v3714 = vld [vmem:[%s3700 + $0x68] sm:$0xff]
      %v3715 = vld [vmem:[%s3700 + $0x70] sm:$0xff]
      %v3716 = vld [vmem:[%s3700 + $0x78] sm:$0xff]
      %3717 = vmatpush.msra.mxu0 %v3716
      %3718 = vmatpush.msra.mxu0 %v3715
      %3719 = vmatpush.msra.mxu0 %v3714
      %3720 = vmatpush.msra.mxu0 %v3713
      %3721 = vmatpush.msra.mxu0 %v3712
      %3722 = vmatpush.msra.mxu0 %v3711
      %3723 = vmatpush.msra.mxu0 %v3710
      %3724 = vmatpush.msra.mxu0 %v3709
      %3725 = vmatpush.msra.mxu0 %v3708
      %3726 = vmatpush.msra.mxu0 %v3707
      %3727 = vmatpush.msra.mxu0 %v3706
      %3728 = vmatpush.msra.mxu0 %v3705
      %3729 = vmatpush.msra.mxu0 %v3704
      %3730 = vmatpush.msra.mxu0 %v3703
      %3731 = vmatpush.msra.mxu0 %v3702
      %3732 = vmatpush.msra.mxu0 %v3701
      %3733 = vmatmul.f32.gmra.mxu0 %v3668
      %v3734 = vpop.f32.mrf.mxu0
      %v3735 = vadd.f32 0.0, %v3734
      %3736 = vmatmul.f32.gmra.mxu0 %v3669
      %v3737 = vpop.f32.mrf.mxu0
      %v3738 = vadd.f32 0.0, %v3737
      %3739 = vmatmul.f32.gmra.mxu0 %v3670
      %v3740 = vpop.f32.mrf.mxu0
      %v3741 = vadd.f32 0.0, %v3740
      %3742 = vmatmul.f32.gmra.mxu0 %v3671
      %v3743 = vpop.f32.mrf.mxu0
      %v3744 = vadd.f32 0.0, %v3743
      %3745 = vmatmul.f32.gmra.mxu0 %v3672
      %v3746 = vpop.f32.mrf.mxu0
      %v3747 = vadd.f32 0.0, %v3746
      %3748 = vmatmul.f32.gmra.mxu0 %v3673
      %v3749 = vpop.f32.mrf.mxu0
      %v3750 = vadd.f32 0.0, %v3749
      %3751 = vmatmul.f32.gmra.mxu0 %v3674
      %v3752 = vpop.f32.mrf.mxu0
      %v3753 = vadd.f32 0.0, %v3752
      %3754 = vmatmul.f32.gmra.mxu0 %v3675
      %v3755 = vpop.f32.mrf.mxu0
      %v3756 = vadd.f32 0.0, %v3755
      %3757 = vmatmul.f32.gmra.mxu0 %v3676
      %v3758 = vpop.f32.mrf.mxu0
      %v3759 = vadd.f32 0.0, %v3758
      %3760 = vmatmul.f32.gmra.mxu0 %v3677
      %v3761 = vpop.f32.mrf.mxu0
      %v3762 = vadd.f32 0.0, %v3761
      %3763 = vmatmul.f32.gmra.mxu0 %v3678
      %v3764 = vpop.f32.mrf.mxu0
      %v3765 = vadd.f32 0.0, %v3764
      %3766 = vmatmul.f32.gmra.mxu0 %v3679
      %v3767 = vpop.f32.mrf.mxu0
      %v3768 = vadd.f32 0.0, %v3767
      %3769 = vmatmul.f32.gmra.mxu0 %v3680
      %v3770 = vpop.f32.mrf.mxu0
      %v3771 = vadd.f32 0.0, %v3770
      %3772 = vmatmul.f32.gmra.mxu0 %v3681
      %v3773 = vpop.f32.mrf.mxu0
      %v3774 = vadd.f32 0.0, %v3773
      %3775 = vmatmul.f32.gmra.mxu0 %v3682
      %v3776 = vpop.f32.mrf.mxu0
      %v3777 = vadd.f32 0.0, %v3776
      %3778 = vmatmul.f32.gmra.mxu0 %v3683
      %v3779 = vpop.f32.mrf.mxu0
      %v3780 = vadd.f32 0.0, %v3779
      %3781 = vmatmul.f32.gmra.mxu0 %v3684
      %v3782 = vpop.f32.mrf.mxu0
      %v3783 = vadd.f32 0.0, %v3782
      %3784 = vmatmul.f32.gmra.mxu0 %v3685
      %v3785 = vpop.f32.mrf.mxu0
      %v3786 = vadd.f32 0.0, %v3785
      %3787 = vmatmul.f32.gmra.mxu0 %v3686
      %v3788 = vpop.f32.mrf.mxu0
      %v3789 = vadd.f32 0.0, %v3788
      %3790 = vmatmul.f32.gmra.mxu0 %v3687
      %v3791 = vpop.f32.mrf.mxu0
      %v3792 = vadd.f32 0.0, %v3791
      %3793 = vmatmul.f32.gmra.mxu0 %v3688
      %v3794 = vpop.f32.mrf.mxu0
      %v3795 = vadd.f32 0.0, %v3794
      %3796 = vmatmul.f32.gmra.mxu0 %v3689
      %v3797 = vpop.f32.mrf.mxu0
      %v3798 = vadd.f32 0.0, %v3797
      %3799 = vmatmul.f32.gmra.mxu0 %v3690
      %v3800 = vpop.f32.mrf.mxu0
      %v3801 = vadd.f32 0.0, %v3800
      %3802 = vmatmul.f32.gmra.mxu0 %v3691
      %v3803 = vpop.f32.mrf.mxu0
      %v3804 = vadd.f32 0.0, %v3803
      %3805 = vmatmul.f32.gmra.mxu0 %v3692
      %v3806 = vpop.f32.mrf.mxu0
      %v3807 = vadd.f32 0.0, %v3806
      %3808 = vmatmul.f32.gmra.mxu0 %v3693
      %v3809 = vpop.f32.mrf.mxu0
      %v3810 = vadd.f32 0.0, %v3809
      %3811 = vmatmul.f32.gmra.mxu0 %v3694
      %v3812 = vpop.f32.mrf.mxu0
      %v3813 = vadd.f32 0.0, %v3812
      %3814 = vmatmul.f32.gmra.mxu0 %v3695
      %v3815 = vpop.f32.mrf.mxu0
      %v3816 = vadd.f32 0.0, %v3815
      %3817 = vmatmul.f32.gmra.mxu0 %v3696
      %v3818 = vpop.f32.mrf.mxu0
      %v3819 = vadd.f32 0.0, %v3818
      %3820 = vmatmul.f32.gmra.mxu0 %v3697
      %v3821 = vpop.f32.mrf.mxu0
      %v3822 = vadd.f32 0.0, %v3821
      %3823 = vmatmul.f32.gmra.mxu0 %v3698
      %v3824 = vpop.f32.mrf.mxu0
      %v3825 = vadd.f32 0.0, %v3824
      %3826 = vmatmul.f32.gmra.mxu0 %v3699
      %v3827 = vpop.f32.mrf.mxu0
      %v3828 = vadd.f32 0.0, %v3827
      %3829 = vdwg.mxu0
      %v3830 = vadd.f32 %v3636, %v3735
      %v3831 = vadd.f32 %v3637, %v3738
      %v3832 = vadd.f32 %v3638, %v3741
      %v3833 = vadd.f32 %v3639, %v3744
      %v3834 = vadd.f32 %v3640, %v3747
      %v3835 = vadd.f32 %v3641, %v3750
      %v3836 = vadd.f32 %v3642, %v3753
      %v3837 = vadd.f32 %v3643, %v3756
      %v3838 = vadd.f32 %v3644, %v3759
      %v3839 = vadd.f32 %v3645, %v3762
      %v3840 = vadd.f32 %v3646, %v3765
      %v3841 = vadd.f32 %v3647, %v3768
      %v3842 = vadd.f32 %v3648, %v3771
      %v3843 = vadd.f32 %v3649, %v3774
      %v3844 = vadd.f32 %v3650, %v3777
      %v3845 = vadd.f32 %v3651, %v3780
      %v3846 = vadd.f32 %v3652, %v3783
      %v3847 = vadd.f32 %v3653, %v3786
      %v3848 = vadd.f32 %v3654, %v3789
      %v3849 = vadd.f32 %v3655, %v3792
      %v3850 = vadd.f32 %v3656, %v3795
      %v3851 = vadd.f32 %v3657, %v3798
      %v3852 = vadd.f32 %v3658, %v3801
      %v3853 = vadd.f32 %v3659, %v3804
      %v3854 = vadd.f32 %v3660, %v3807
      %v3855 = vadd.f32 %v3661, %v3810
      %v3856 = vadd.f32 %v3662, %v3813
      %v3857 = vadd.f32 %v3663, %v3816
      %v3858 = vadd.f32 %v3664, %v3819
      %v3859 = vadd.f32 %v3665, %v3822
      %v3860 = vadd.f32 %v3666, %v3825
      %v3861 = vadd.f32 %v3667, %v3828
      %v3862 = vld [vmem:[%s3473 + $0x2] sm:$0xff]
      %v3863 = vld [vmem:[%s3473 + $0xa] sm:$0xff]
      %v3864 = vld [vmem:[%s3473 + $0x1a] sm:$0xff]
      %v3865 = vld [vmem:[%s3473 + $0x22] sm:$0xff]
      %v3866 = vld [vmem:[%s3473 + $0x32] sm:$0xff]
      %v3867 = vld [vmem:[%s3473 + $0x3a] sm:$0xff]
      %v3868 = vld [vmem:[%s3473 + $0x4a] sm:$0xff]
      %v3869 = vld [vmem:[%s3473 + $0x52] sm:$0xff]
      %v3870 = vld [vmem:[%s3473 + $0x62] sm:$0xff]
      %v3871 = vld [vmem:[%s3473 + $0x6a] sm:$0xff]
      %v3872 = vld [vmem:[%s3473 + $0x7a] sm:$0xff]
      %v3873 = vld [vmem:[%s3473 + $0x82] sm:$0xff]
      %v3874 = vld [vmem:[%s3473 + $0x92] sm:$0xff]
      %v3875 = vld [vmem:[%s3473 + $0x9a] sm:$0xff]
      %v3876 = vld [vmem:[%s3473 + $0xaa] sm:$0xff]
      %v3877 = vld [vmem:[%s3473 + $0xb2] sm:$0xff]
      %v3878 = vld [vmem:[%s3473 + $0xc2] sm:$0xff]
      %v3879 = vld [vmem:[%s3473 + $0xca] sm:$0xff]
      %v3880 = vld [vmem:[%s3473 + $0xda] sm:$0xff]
      %v3881 = vld [vmem:[%s3473 + $0xe2] sm:$0xff]
      %v3882 = vld [vmem:[%s3473 + $0xf2] sm:$0xff]
      %v3883 = vld [vmem:[%s3473 + $0xfa] sm:$0xff]
      %v3884 = vld [vmem:[%s3473 + $0x10a] sm:$0xff]
      %v3885 = vld [vmem:[%s3473 + $0x112] sm:$0xff]
      %v3886 = vld [vmem:[%s3473 + $0x122] sm:$0xff]
      %v3887 = vld [vmem:[%s3473 + $0x12a] sm:$0xff]
      %v3888 = vld [vmem:[%s3473 + $0x13a] sm:$0xff]
      %v3889 = vld [vmem:[%s3473 + $0x142] sm:$0xff]
      %v3890 = vld [vmem:[%s3473 + $0x152] sm:$0xff]
      %v3891 = vld [vmem:[%s3473 + $0x15a] sm:$0xff]
      %v3892 = vld [vmem:[%s3473 + $0x16a] sm:$0xff]
      %v3893 = vld [vmem:[%s3473 + $0x172] sm:$0xff]
      %s3894 = scalar_lea.vmem %s3, 1024
      %v3895 = vld [vmem:[%s3894] sm:$0xff]
      %v3896 = vld [vmem:[%s3894 + $0x8] sm:$0xff]
      %v3897 = vld [vmem:[%s3894 + $0x10] sm:$0xff]
      %v3898 = vld [vmem:[%s3894 + $0x18] sm:$0xff]
      %v3899 = vld [vmem:[%s3894 + $0x20] sm:$0xff]
      %v3900 = vld [vmem:[%s3894 + $0x28] sm:$0xff]
      %v3901 = vld [vmem:[%s3894 + $0x30] sm:$0xff]
      %v3902 = vld [vmem:[%s3894 + $0x38] sm:$0xff]
      %v3903 = vld [vmem:[%s3894 + $0x40] sm:$0xff]
      %v3904 = vld [vmem:[%s3894 + $0x48] sm:$0xff]
      %v3905 = vld [vmem:[%s3894 + $0x50] sm:$0xff]
      %v3906 = vld [vmem:[%s3894 + $0x58] sm:$0xff]
      %v3907 = vld [vmem:[%s3894 + $0x60] sm:$0xff]
      %v3908 = vld [vmem:[%s3894 + $0x68] sm:$0xff]
      %v3909 = vld [vmem:[%s3894 + $0x70] sm:$0xff]
      %v3910 = vld [vmem:[%s3894 + $0x78] sm:$0xff]
      %3911 = vmatpush.msra.mxu0 %v3910
      %3912 = vmatpush.msra.mxu0 %v3909
      %3913 = vmatpush.msra.mxu0 %v3908
      %3914 = vmatpush.msra.mxu0 %v3907
      %3915 = vmatpush.msra.mxu0 %v3906
      %3916 = vmatpush.msra.mxu0 %v3905
      %3917 = vmatpush.msra.mxu0 %v3904
      %3918 = vmatpush.msra.mxu0 %v3903
      %3919 = vmatpush.msra.mxu0 %v3902
      %3920 = vmatpush.msra.mxu0 %v3901
      %3921 = vmatpush.msra.mxu0 %v3900
      %3922 = vmatpush.msra.mxu0 %v3899
      %3923 = vmatpush.msra.mxu0 %v3898
      %3924 = vmatpush.msra.mxu0 %v3897
      %3925 = vmatpush.msra.mxu0 %v3896
      %3926 = vmatpush.msra.mxu0 %v3895
      %3927 = vmatmul.f32.gmra.mxu0 %v3862
      %v3928 = vpop.f32.mrf.mxu0
      %v3929 = vadd.f32 0.0, %v3928
      %3930 = vmatmul.f32.gmra.mxu0 %v3863
      %v3931 = vpop.f32.mrf.mxu0
      %v3932 = vadd.f32 0.0, %v3931
      %3933 = vmatmul.f32.gmra.mxu0 %v3864
      %v3934 = vpop.f32.mrf.mxu0
      %v3935 = vadd.f32 0.0, %v3934
      %3936 = vmatmul.f32.gmra.mxu0 %v3865
      %v3937 = vpop.f32.mrf.mxu0
      %v3938 = vadd.f32 0.0, %v3937
      %3939 = vmatmul.f32.gmra.mxu0 %v3866
      %v3940 = vpop.f32.mrf.mxu0
      %v3941 = vadd.f32 0.0, %v3940
      %3942 = vmatmul.f32.gmra.mxu0 %v3867
      %v3943 = vpop.f32.mrf.mxu0
      %v3944 = vadd.f32 0.0, %v3943
      %3945 = vmatmul.f32.gmra.mxu0 %v3868
      %v3946 = vpop.f32.mrf.mxu0
      %v3947 = vadd.f32 0.0, %v3946
      %3948 = vmatmul.f32.gmra.mxu0 %v3869
      %v3949 = vpop.f32.mrf.mxu0
      %v3950 = vadd.f32 0.0, %v3949
      %3951 = vmatmul.f32.gmra.mxu0 %v3870
      %v3952 = vpop.f32.mrf.mxu0
      %v3953 = vadd.f32 0.0, %v3952
      %3954 = vmatmul.f32.gmra.mxu0 %v3871
      %v3955 = vpop.f32.mrf.mxu0
      %v3956 = vadd.f32 0.0, %v3955
      %3957 = vmatmul.f32.gmra.mxu0 %v3872
      %v3958 = vpop.f32.mrf.mxu0
      %v3959 = vadd.f32 0.0, %v3958
      %3960 = vmatmul.f32.gmra.mxu0 %v3873
      %v3961 = vpop.f32.mrf.mxu0
      %v3962 = vadd.f32 0.0, %v3961
      %3963 = vmatmul.f32.gmra.mxu0 %v3874
      %v3964 = vpop.f32.mrf.mxu0
      %v3965 = vadd.f32 0.0, %v3964
      %3966 = vmatmul.f32.gmra.mxu0 %v3875
      %v3967 = vpop.f32.mrf.mxu0
      %v3968 = vadd.f32 0.0, %v3967
      %3969 = vmatmul.f32.gmra.mxu0 %v3876
      %v3970 = vpop.f32.mrf.mxu0
      %v3971 = vadd.f32 0.0, %v3970
      %3972 = vmatmul.f32.gmra.mxu0 %v3877
      %v3973 = vpop.f32.mrf.mxu0
      %v3974 = vadd.f32 0.0, %v3973
      %3975 = vmatmul.f32.gmra.mxu0 %v3878
      %v3976 = vpop.f32.mrf.mxu0
      %v3977 = vadd.f32 0.0, %v3976
      %3978 = vmatmul.f32.gmra.mxu0 %v3879
      %v3979 = vpop.f32.mrf.mxu0
      %v3980 = vadd.f32 0.0, %v3979
      %3981 = vmatmul.f32.gmra.mxu0 %v3880
      %v3982 = vpop.f32.mrf.mxu0
      %v3983 = vadd.f32 0.0, %v3982
      %3984 = vmatmul.f32.gmra.mxu0 %v3881
      %v3985 = vpop.f32.mrf.mxu0
      %v3986 = vadd.f32 0.0, %v3985
      %3987 = vmatmul.f32.gmra.mxu0 %v3882
      %v3988 = vpop.f32.mrf.mxu0
      %v3989 = vadd.f32 0.0, %v3988
      %3990 = vmatmul.f32.gmra.mxu0 %v3883
      %v3991 = vpop.f32.mrf.mxu0
      %v3992 = vadd.f32 0.0, %v3991
      %3993 = vmatmul.f32.gmra.mxu0 %v3884
      %v3994 = vpop.f32.mrf.mxu0
      %v3995 = vadd.f32 0.0, %v3994
      %3996 = vmatmul.f32.gmra.mxu0 %v3885
      %v3997 = vpop.f32.mrf.mxu0
      %v3998 = vadd.f32 0.0, %v3997
      %3999 = vmatmul.f32.gmra.mxu0 %v3886
      %v4000 = vpop.f32.mrf.mxu0
      %v4001 = vadd.f32 0.0, %v4000
      %4002 = vmatmul.f32.gmra.mxu0 %v3887
      %v4003 = vpop.f32.mrf.mxu0
      %v4004 = vadd.f32 0.0, %v4003
      %4005 = vmatmul.f32.gmra.mxu0 %v3888
      %v4006 = vpop.f32.mrf.mxu0
      %v4007 = vadd.f32 0.0, %v4006
      %4008 = vmatmul.f32.gmra.mxu0 %v3889
      %v4009 = vpop.f32.mrf.mxu0
      %v4010 = vadd.f32 0.0, %v4009
      %4011 = vmatmul.f32.gmra.mxu0 %v3890
      %v4012 = vpop.f32.mrf.mxu0
      %v4013 = vadd.f32 0.0, %v4012
      %4014 = vmatmul.f32.gmra.mxu0 %v3891
      %v4015 = vpop.f32.mrf.mxu0
      %v4016 = vadd.f32 0.0, %v4015
      %4017 = vmatmul.f32.gmra.mxu0 %v3892
      %v4018 = vpop.f32.mrf.mxu0
      %v4019 = vadd.f32 0.0, %v4018
      %4020 = vmatmul.f32.gmra.mxu0 %v3893
      %v4021 = vpop.f32.mrf.mxu0
      %v4022 = vadd.f32 0.0, %v4021
      %4023 = vdwg.mxu0
      %v4024 = vadd.f32 %v3830, %v3929
      %v4025 = vadd.f32 %v3831, %v3932
      %v4026 = vadd.f32 %v3832, %v3935
      %v4027 = vadd.f32 %v3833, %v3938
      %v4028 = vadd.f32 %v3834, %v3941
      %v4029 = vadd.f32 %v3835, %v3944
      %v4030 = vadd.f32 %v3836, %v3947
      %v4031 = vadd.f32 %v3837, %v3950
      %v4032 = vadd.f32 %v3838, %v3953
      %v4033 = vadd.f32 %v3839, %v3956
      %v4034 = vadd.f32 %v3840, %v3959
      %v4035 = vadd.f32 %v3841, %v3962
      %v4036 = vadd.f32 %v3842, %v3965
      %v4037 = vadd.f32 %v3843, %v3968
      %v4038 = vadd.f32 %v3844, %v3971
      %v4039 = vadd.f32 %v3845, %v3974
      %v4040 = vadd.f32 %v3846, %v3977
      %v4041 = vadd.f32 %v3847, %v3980
      %v4042 = vadd.f32 %v3848, %v3983
      %v4043 = vadd.f32 %v3849, %v3986
      %v4044 = vadd.f32 %v3850, %v3989
      %v4045 = vadd.f32 %v3851, %v3992
      %v4046 = vadd.f32 %v3852, %v3995
      %v4047 = vadd.f32 %v3853, %v3998
      %v4048 = vadd.f32 %v3854, %v4001
      %v4049 = vadd.f32 %v3855, %v4004
      %v4050 = vadd.f32 %v3856, %v4007
      %v4051 = vadd.f32 %v3857, %v4010
      %v4052 = vadd.f32 %v3858, %v4013
      %v4053 = vadd.f32 %v3859, %v4016
      %v4054 = vadd.f32 %v3860, %v4019
      %v4055 = vadd.f32 %v3861, %v4022
      %v4056 = vld [vmem:[%s4] sm:$0x1]
      %v4058 = vperm.slane %v4056, 0
      %v4060 = vadd.f32 %v4024, %v4058
      %v4061 = vadd.f32 %v4025, %v4058
      %v4062 = vadd.f32 %v4026, %v4058
      %v4063 = vadd.f32 %v4027, %v4058
      %v4064 = vadd.f32 %v4028, %v4058
      %v4065 = vadd.f32 %v4029, %v4058
      %v4066 = vadd.f32 %v4030, %v4058
      %v4067 = vadd.f32 %v4031, %v4058
      %v4068 = vadd.f32 %v4032, %v4058
      %v4069 = vadd.f32 %v4033, %v4058
      %v4070 = vadd.f32 %v4034, %v4058
      %v4071 = vadd.f32 %v4035, %v4058
      %v4072 = vadd.f32 %v4036, %v4058
      %v4073 = vadd.f32 %v4037, %v4058
      %v4074 = vadd.f32 %v4038, %v4058
      %v4075 = vadd.f32 %v4039, %v4058
      %v4076 = vadd.f32 %v4040, %v4058
      %v4077 = vadd.f32 %v4041, %v4058
      %v4078 = vadd.f32 %v4042, %v4058
      %v4079 = vadd.f32 %v4043, %v4058
      %v4080 = vadd.f32 %v4044, %v4058
      %v4081 = vadd.f32 %v4045, %v4058
      %v4082 = vadd.f32 %v4046, %v4058
      %v4083 = vadd.f32 %v4047, %v4058
      %v4084 = vadd.f32 %v4048, %v4058
      %v4085 = vadd.f32 %v4049, %v4058
      %v4086 = vadd.f32 %v4050, %v4058
      %v4087 = vadd.f32 %v4051, %v4058
      %v4088 = vadd.f32 %v4052, %v4058
      %v4089 = vadd.f32 %v4053, %v4058
      %v4090 = vadd.f32 %v4054, %v4058
      %v4091 = vadd.f32 %v4055, %v4058
      %v4092 = vld [vmem:[%s1571 + $0x1] sm:$0xff]
      %v4093 = vld [vmem:[%s1571 + $0x9] sm:$0xff]
      %v4094 = vld [vmem:[%s1571 + $0x19] sm:$0xff]
      %v4095 = vld [vmem:[%s1571 + $0x21] sm:$0xff]
      %v4096 = vld [vmem:[%s1571 + $0x31] sm:$0xff]
      %v4097 = vld [vmem:[%s1571 + $0x39] sm:$0xff]
      %v4098 = vld [vmem:[%s1571 + $0x49] sm:$0xff]
      %v4099 = vld [vmem:[%s1571 + $0x51] sm:$0xff]
      %v4100 = vld [vmem:[%s1571 + $0x61] sm:$0xff]
      %v4101 = vld [vmem:[%s1571 + $0x69] sm:$0xff]
      %v4102 = vld [vmem:[%s1571 + $0x79] sm:$0xff]
      %v4103 = vld [vmem:[%s1571 + $0x81] sm:$0xff]
      %v4104 = vld [vmem:[%s1571 + $0x91] sm:$0xff]
      %v4105 = vld [vmem:[%s1571 + $0x99] sm:$0xff]
      %v4106 = vld [vmem:[%s1571 + $0xa9] sm:$0xff]
      %v4107 = vld [vmem:[%s1571 + $0xb1] sm:$0xff]
      %v4108 = vld [vmem:[%s1571 + $0xc1] sm:$0xff]
      %v4109 = vld [vmem:[%s1571 + $0xc9] sm:$0xff]
      %v4110 = vld [vmem:[%s1571 + $0xd9] sm:$0xff]
      %v4111 = vld [vmem:[%s1571 + $0xe1] sm:$0xff]
      %v4112 = vld [vmem:[%s1571 + $0xf1] sm:$0xff]
      %v4113 = vld [vmem:[%s1571 + $0xf9] sm:$0xff]
      %v4114 = vld [vmem:[%s1571 + $0x109] sm:$0xff]
      %v4115 = vld [vmem:[%s1571 + $0x111] sm:$0xff]
      %v4116 = vld [vmem:[%s1571 + $0x121] sm:$0xff]
      %v4117 = vld [vmem:[%s1571 + $0x129] sm:$0xff]
      %v4118 = vld [vmem:[%s1571 + $0x139] sm:$0xff]
      %v4119 = vld [vmem:[%s1571 + $0x141] sm:$0xff]
      %v4120 = vld [vmem:[%s1571 + $0x151] sm:$0xff]
      %v4121 = vld [vmem:[%s1571 + $0x159] sm:$0xff]
      %v4122 = vld [vmem:[%s1571 + $0x169] sm:$0xff]
      %v4123 = vld [vmem:[%s1571 + $0x171] sm:$0xff]
      %v4124 = vadd.f32 %v4060, %v4092
      %v4125 = vadd.f32 %v4061, %v4093
      %v4126 = vadd.f32 %v4062, %v4094
      %v4127 = vadd.f32 %v4063, %v4095
      %v4128 = vadd.f32 %v4064, %v4096
      %v4129 = vadd.f32 %v4065, %v4097
      %v4130 = vadd.f32 %v4066, %v4098
      %v4131 = vadd.f32 %v4067, %v4099
      %v4132 = vadd.f32 %v4068, %v4100
      %v4133 = vadd.f32 %v4069, %v4101
      %v4134 = vadd.f32 %v4070, %v4102
      %v4135 = vadd.f32 %v4071, %v4103
      %v4136 = vadd.f32 %v4072, %v4104
      %v4137 = vadd.f32 %v4073, %v4105
      %v4138 = vadd.f32 %v4074, %v4106
      %v4139 = vadd.f32 %v4075, %v4107
      %v4140 = vadd.f32 %v4076, %v4108
      %v4141 = vadd.f32 %v4077, %v4109
      %v4142 = vadd.f32 %v4078, %v4110
      %v4143 = vadd.f32 %v4079, %v4111
      %v4144 = vadd.f32 %v4080, %v4112
      %v4145 = vadd.f32 %v4081, %v4113
      %v4146 = vadd.f32 %v4082, %v4114
      %v4147 = vadd.f32 %v4083, %v4115
      %v4148 = vadd.f32 %v4084, %v4116
      %v4149 = vadd.f32 %v4085, %v4117
      %v4150 = vadd.f32 %v4086, %v4118
      %v4151 = vadd.f32 %v4087, %v4119
      %v4152 = vadd.f32 %v4088, %v4120
      %v4153 = vadd.f32 %v4089, %v4121
      %v4154 = vadd.f32 %v4090, %v4122
      %v4155 = vadd.f32 %v4091, %v4123
      %v4156 = vmax.f32 %v4124, 0.0
      %v4157 = vmax.f32 %v4125, 0.0
      %v4158 = vmax.f32 %v4126, 0.0
      %v4159 = vmax.f32 %v4127, 0.0
      %v4160 = vmax.f32 %v4128, 0.0
      %v4161 = vmax.f32 %v4129, 0.0
      %v4162 = vmax.f32 %v4130, 0.0
      %v4163 = vmax.f32 %v4131, 0.0
      %v4164 = vmax.f32 %v4132, 0.0
      %v4165 = vmax.f32 %v4133, 0.0
      %v4166 = vmax.f32 %v4134, 0.0
      %v4167 = vmax.f32 %v4135, 0.0
      %v4168 = vmax.f32 %v4136, 0.0
      %v4169 = vmax.f32 %v4137, 0.0
      %v4170 = vmax.f32 %v4138, 0.0
      %v4171 = vmax.f32 %v4139, 0.0
      %v4172 = vmax.f32 %v4140, 0.0
      %v4173 = vmax.f32 %v4141, 0.0
      %v4174 = vmax.f32 %v4142, 0.0
      %v4175 = vmax.f32 %v4143, 0.0
      %v4176 = vmax.f32 %v4144, 0.0
      %v4177 = vmax.f32 %v4145, 0.0
      %v4178 = vmax.f32 %v4146, 0.0
      %v4179 = vmax.f32 %v4147, 0.0
      %v4180 = vmax.f32 %v4148, 0.0
      %v4181 = vmax.f32 %v4149, 0.0
      %v4182 = vmax.f32 %v4150, 0.0
      %v4183 = vmax.f32 %v4151, 0.0
      %v4184 = vmax.f32 %v4152, 0.0
      %v4185 = vmax.f32 %v4153, 0.0
      %v4186 = vmax.f32 %v4154, 0.0
      %v4187 = vmax.f32 %v4155, 0.0
      %4188 = vst [vmem:[%s202] sm:$0xff] %v4156
      %4189 = vst [vmem:[%s202 + $0x8] sm:$0xff] %v4157
      %4190 = vst [vmem:[%s202 + $0x10] sm:$0xff] %v4158
      %4191 = vst [vmem:[%s202 + $0x18] sm:$0xff] %v4159
      %4192 = vst [vmem:[%s202 + $0x20] sm:$0xff] %v4160
      %4193 = vst [vmem:[%s202 + $0x28] sm:$0xff] %v4161
      %4194 = vst [vmem:[%s202 + $0x30] sm:$0xff] %v4162
      %4195 = vst [vmem:[%s202 + $0x38] sm:$0xff] %v4163
      %4196 = vst [vmem:[%s202 + $0x40] sm:$0xff] %v4164
      %4197 = vst [vmem:[%s202 + $0x48] sm:$0xff] %v4165
      %4198 = vst [vmem:[%s202 + $0x50] sm:$0xff] %v4166
      %4199 = vst [vmem:[%s202 + $0x58] sm:$0xff] %v4167
      %4200 = vst [vmem:[%s202 + $0x60] sm:$0xff] %v4168
      %4201 = vst [vmem:[%s202 + $0x68] sm:$0xff] %v4169
      %4202 = vst [vmem:[%s202 + $0x70] sm:$0xff] %v4170
      %4203 = vst [vmem:[%s202 + $0x78] sm:$0xff] %v4171
      %4204 = vst [vmem:[%s202 + $0x80] sm:$0xff] %v4172
      %4205 = vst [vmem:[%s202 + $0x88] sm:$0xff] %v4173
      %4206 = vst [vmem:[%s202 + $0x90] sm:$0xff] %v4174
      %4207 = vst [vmem:[%s202 + $0x98] sm:$0xff] %v4175
      %4208 = vst [vmem:[%s202 + $0xa0] sm:$0xff] %v4176
      %4209 = vst [vmem:[%s202 + $0xa8] sm:$0xff] %v4177
      %4210 = vst [vmem:[%s202 + $0xb0] sm:$0xff] %v4178
      %4211 = vst [vmem:[%s202 + $0xb8] sm:$0xff] %v4179
      %4212 = vst [vmem:[%s202 + $0xc0] sm:$0xff] %v4180
      %4213 = vst [vmem:[%s202 + $0xc8] sm:$0xff] %v4181
      %4214 = vst [vmem:[%s202 + $0xd0] sm:$0xff] %v4182
      %4215 = vst [vmem:[%s202 + $0xd8] sm:$0xff] %v4183
      %4216 = vst [vmem:[%s202 + $0xe0] sm:$0xff] %v4184
      %4217 = vst [vmem:[%s202 + $0xe8] sm:$0xff] %v4185
      %4218 = vst [vmem:[%s202 + $0xf0] sm:$0xff] %v4186
      %4219 = vst [vmem:[%s202 + $0xf8] sm:$0xff] %v4187
      %s4220 = smul.u32 16, %s21
      %p4221 = scmp.lt.s32.totalorder %s20, 1
      %s4222 = scalar_select %p4221, %s20, 1
      %p4223 = scmp.lt.s32.totalorder %s4220, 15
      %s4224 = scalar_select %p4223, %s4220, 15
      %s4225 = smul.addr %s4224, 2
      %s4226 = smul.addr %s4222, 32
      %s4227 = sadd.s32 %s4225, %s4226
      %s4228 = smul.addr %s4227, 8
      %s4229 = scalar_lea.vmem %s5, %s4228
      // Predicated region
      $region63: #{_lambda_.1} parent=35 // pred_check
        %p4230 = pneg %p132
      $region64: #{_lambda_.1} parent=35 // pred_check_branch
        %4232 = sbr.rel (%p4230) target = $region66
      $region65: #{_lambda_.1} parent=35 // pred_region
        %s4233 = smul.u32 16, %s21
      $region66: #{_lambda_.1} parent=35 // pred_fallthru
        _
    $region36: #{_lambda_.1} parent=5 // pred_fallthru
      _
    %p4234 = scmp.le.s32.totalorder 2, %s11
    // Predicated region
    $region67: #{_lambda_.1} parent=5 // pred_check
      %p4235 = pneg %p4234
    $region68: #{_lambda_.1} parent=5 // pred_check_branch
      %4237 = sbr.rel (%p4235) target = $region70
    $region69: #{_lambda_.1} parent=5 // pred_region
      %s4238 = ssub.s32 %s11, 2
      // Predicated region
      $region71: #{_lambda_.1} parent=69 // pred_check
        %p4239 = pneg %p138
      $region72: #{_lambda_.1} parent=69 // pred_check_branch
        %4241 = sbr.rel (%p4239) target = $region74
      $region73: #{_lambda_.1} parent=69 // pred_region
        %s4242 = smul.u32 16, %s23
        %p4243 = scmp.lt.s32.totalorder %s22, 1
        %s4244 = scalar_select %p4243, %s22, 1
        %p4245 = scmp.lt.s32.totalorder %s4242, 15
        %s4246 = scalar_select %p4245, %s4242, 15
        %s4247 = smul.addr %s4246, 2
        %s4248 = smul.addr %s4244, 32
        %s4249 = sadd.s32 %s4247, %s4248
        %s4250 = smul.addr %s4249, 8
        %s4251 = scalar_lea.vmem %s5, %s4250
      $region74: #{_lambda_.1} parent=69 // pred_fallthru
        _
    $region70: #{_lambda_.1} parent=5 // pred_fallthru
      _
  $region6: #{_lambda_.1} parent=0 // loop_footer
    %s15 = sadd.s32 1, %s11
  $region7: #{_lambda_.1} parent=0 // loop_footer_branch
    %10 = sbr.rel target = $region3
  $region8: #{_lambda_.1} parent=0 // loop_exit
    _
  %4252 = vsyncmov [#allocation4]
  %s4253 = vpop.sfrf %4252
  %p4254 = scmp.eq.s32.totalorder %s4253, 0
  %p4255 = pneg %p4254
  %4257 = shalt.err (%p4255)

</llo_original>
